<compile_context>
chip_gen: v7x
topology: tpu7x:2x2x1
jax: 0.10.0
libtpu: 0.0.40
codegen_flags: <defaults>
</compile_context>

<pallas_src>
import functools

import jax
import jax.numpy as jnp
from jax.experimental import pallas as pl
from jax.experimental.pallas import tpu as pltpu


def _language_head_kernel(x_ref, aux_ref, w1x_ref, w1aux_ref, b1_ref,
                          w2_ref, b2_ref, wh_ref, bh_ref,
                          out_ref, acc_ref, *, n_logits):
    j = pl.program_id(0)

    @pl.when(j == 0)
    def _():
        acc_ref[...] = jnp.zeros_like(acc_ref)

    # --- fc1 column tile + relu (bf16 operands, f32 accumulate) ---
    h1 = (jnp.dot(x_ref[...], w1x_ref[...], preferred_element_type=jnp.float32)
          + jnp.dot(aux_ref[...], w1aux_ref[...],
                    preferred_element_type=jnp.float32)
          + b1_ref[...])
    h1 = jnp.maximum(h1, 0.0).astype(jnp.bfloat16)

    # --- fc2 partial product accumulated over the grid (bf16 x bf16 -> f32) ---
    acc_ref[...] += jnp.dot(h1, w2_ref[...], preferred_element_type=jnp.float32)

    # --- finalize on the last tile ---
    @pl.when(j == pl.num_programs(0) - 1)
    def _():
        h2 = jnp.maximum(acc_ref[...] + b2_ref[...], 0.0).astype(jnp.bfloat16)

        # fused, lane-dense heads: cols [0:n_logits) = logits, next = values,
        # remainder zero-padded.  bf16 matmul, f32 accumulate, f32 bias.
        h = jnp.dot(h2, wh_ref[...], preferred_element_type=jnp.float32) + bh_ref[...]

        col = jax.lax.broadcasted_iota(jnp.int32, h.shape, 1)
        is_logit = col < n_logits

        l = jnp.maximum(h, 0.0)                       # relu on logits
        l_masked = jnp.where(is_logit, l, -jnp.inf)   # mask padded lanes
        m = jnp.max(l_masked, axis=-1, keepdims=True)
        p = jnp.exp(l_masked - m)                     # exp(-inf) -> 0
        lse = jnp.log(jnp.sum(p, axis=-1, keepdims=True))
        logp = (l - m) - lse

        # logit lanes carry log-probs, other lanes the raw head output
        # (value lanes) -- the wrapper slices out the valid columns.
        out_ref[...] = jnp.where(is_logit, logp, h)


def _round_up(n, m):
    return ((n + m - 1) // m) * m


def pack_params(params, *, identifier=True, agent='speaker'):
    """One-time packing of PyTorch-equivalent params into kernel layout."""
    w1, b1, w2, b2, wl, bl, wv, bv = params
    aux_dim = 20 * int(bool(identifier)) + 20 * int(agent == 'listener')
    x_dim = w1.shape[0] - aux_dim

    # Split fc1 into the x part (tile-aligned K=1024) and the aux part,
    # zero-padded to a small multiple of 32 (bf16-friendly, block = full dim).
    ka_pad = max(32, _round_up(max(aux_dim, 1), 32))
    w1x = w1[:x_dim]
    if aux_dim == 0:
        w1aux = jnp.zeros((ka_pad, w1.shape[1]), jnp.float32)
    else:
        w1aux = jnp.pad(w1[x_dim:], ((0, ka_pad - aux_dim), (0, 0)))

    # Fuse logits/values heads into one lane-dense, 128-padded weight.
    n_l, n_v = wl.shape[1], wv.shape[1]
    nh = max(128, _round_up(n_l + n_v, 128))
    wh = jnp.zeros((wl.shape[0], nh), jnp.float32)
    wh = wh.at[:, :n_l].set(wl).at[:, n_l:n_l + n_v].set(wv)
    bh = jnp.zeros((1, nh), jnp.float32)
    bh = bh.at[:, :n_l].set(bl).at[:, n_l:n_l + n_v].set(bv)

    return dict(
        w1x=w1x.astype(jnp.bfloat16),      # streamed bf16 (HBM-bandwidth bound)
        w1aux=w1aux.astype(jnp.bfloat16),
        b1=b1.astype(jnp.float32),
        w2=w2.astype(jnp.bfloat16),
        b2=b2.astype(jnp.float32),
        wh=wh.astype(jnp.bfloat16),
        bh=bh.astype(jnp.float32),
        n_logits=n_l, n_values=n_v,
        x_dim=x_dim, aux_dim=aux_dim, ka_pad=ka_pad,
        identifier=identifier, agent=agent,
    )


def language_head_forward(x, m, i, packed, *, tile_n=512):
    """Mirrors LanguageHead.forward((x, m, i)); returns (log_softmax(logits), values)."""
    identifier, agent = packed['identifier'], packed['agent']

    # same branching as the PyTorch module's torch.cat, but x stays separate
    if identifier:
        aux = jnp.concatenate((m, i), axis=1) if agent == 'listener' else i
    elif agent == 'listener':
        aux = m
    else:
        aux = None

    w1x, w1aux = packed['w1x'], packed['w1aux']
    b1, w2, b2 = packed['b1'], packed['w2'], packed['b2']
    wh, bh = packed['wh'], packed['bh']
    n_l, n_v = packed['n_logits'], packed['n_values']

    B = x.shape[0]
    Kx = w1x.shape[0]
    Ka = w1aux.shape[0]
    H = w2.shape[0]
    NH = wh.shape[1]
    assert x.shape[1] == Kx
    assert H % tile_n == 0
    n_tiles = H // tile_n

    # activations enter the kernel already in bf16 (native bf16 MXU path)
    x_b = x.astype(jnp.bfloat16)
    if aux is None:
        aux_p = jnp.zeros((B, Ka), jnp.bfloat16)
    else:
        aux_p = jnp.pad(aux.astype(jnp.bfloat16),
                        ((0, 0), (0, Ka - aux.shape[1])))

    flops = 2 * B * (Kx * H + packed['aux_dim'] * H + H * H + H * (n_l + n_v))
    bytes_accessed = int(x_b.size * 2 + aux_p.size * 2 + w1x.nbytes
                         + w1aux.nbytes + b1.nbytes + w2.nbytes + b2.nbytes
                         + wh.nbytes + bh.nbytes + B * NH * 4)

    kernel = functools.partial(_language_head_kernel, n_logits=n_l)

    out = pl.pallas_call(
        kernel,
        out_shape=jax.ShapeDtypeStruct((B, NH), jnp.float32),
        grid_spec=pltpu.PrefetchScalarGridSpec(
            num_scalar_prefetch=0,
            grid=(n_tiles,),
            in_specs=[
                pl.BlockSpec((B, Kx), lambda j: (0, 0)),        # x (resident, bf16)
                pl.BlockSpec((B, Ka), lambda j: (0, 0)),        # aux (resident, bf16)
                pl.BlockSpec((Kx, tile_n), lambda j: (0, j)),   # w1 x-part column tile
                pl.BlockSpec((Ka, tile_n), lambda j: (0, j)),   # w1 aux-part column tile
                pl.BlockSpec((1, tile_n), lambda j: (0, j)),    # b1 tile
                pl.BlockSpec((tile_n, H), lambda j: (j, 0)),    # w2 row tile
                pl.BlockSpec((1, H), lambda j: (0, 0)),         # b2 (resident)
                pl.BlockSpec((H, NH), lambda j: (0, 0)),        # fused head weight (bf16)
                pl.BlockSpec((1, NH), lambda j: (0, 0)),        # fused head bias (f32)
            ],
            out_specs=pl.BlockSpec((B, NH), lambda j: (0, 0)),
            scratch_shapes=[pltpu.VMEM((B, H), jnp.float32)],   # fc2 accumulator
        ),
        compiler_params=pltpu.CompilerParams(
            # single reduction axis; for large B add a leading "parallel" axis
            dimension_semantics=("arbitrary",),
        ),
        cost_estimate=pl.CostEstimate(
            flops=flops, transcendentals=B * NH, bytes_accessed=bytes_accessed),
    )(x_b, aux_p, w1x, w1aux, b1, w2, b2, wh, bh)

    return out[:, :n_l], out[:, n_l:n_l + n_v]


def init_params(key, in_features, hidden=1024, n_logits=19, n_values=19):
    """Deterministic init mirroring the module's layer shapes (weights stored
    transposed vs PyTorch, i.e. (in, out); biases as (1, out) rows)."""
    def linear(key, fan_in, fan_out):
        kw, kb = jax.random.split(key)
        bound_w = jnp.sqrt(6.0 / fan_in) * jnp.sqrt(2.0)  # kaiming_uniform, relu gain
        w = jax.random.uniform(kw, (fan_in, fan_out), jnp.float32, -bound_w, bound_w)
        bound_b = 1.0 / jnp.sqrt(fan_in)
        b = jax.random.uniform(kb, (1, fan_out), jnp.float32, -bound_b, bound_b)
        return w, b

    k1, k2, k3, k4 = jax.random.split(key, 4)
    w1, b1 = linear(k1, in_features, hidden)
    w2, b2 = linear(k2, hidden, hidden)
    wl, bl = linear(k3, hidden, n_logits)
    wv, bv = linear(k4, hidden, n_values)
    return (w1, b1, w2, b2, wl, bl, wv, bv)


def _reference_forward(x, m, i, params, *, identifier=True, agent='speaker'):
    """Pure-JAX reference mirroring the kernel's bf16 quantization of both
    weights and activations (f32 accumulation)."""
    if identifier:
        xcat = jnp.concatenate((x, m, i), axis=1) if agent == 'listener' \
            else jnp.concatenate((x, i), axis=1)
    elif agent == 'listener':
        xcat = jnp.concatenate((x, m), axis=1)
    else:
        xcat = x
    w1, b1, w2, b2, wl, bl, wv, bv = params
    bf = jnp.bfloat16
    xcat = xcat.astype(bf)
    h1 = jax.nn.relu(jnp.dot(xcat, w1.astype(bf),
                             preferred_element_type=jnp.float32) + b1)
    h1 = h1.astype(bf)
    h2 = jax.nn.relu(jnp.dot(h1, w2.astype(bf),
                             preferred_element_type=jnp.float32) + b2)
    h2 = h2.astype(bf)
    l = jax.nn.relu(jnp.dot(h2, wl.astype(bf),
                            preferred_element_type=jnp.float32) + bl)
    v = jnp.dot(h2, wv.astype(bf), preferred_element_type=jnp.float32) + bv
    return jax.nn.log_softmax(l, axis=1), v


if __name__ == "__main__":
    # Config: identifier=True, agent='speaker', mode='q_critic'
    #   calculate_input() = 1*20 + 1024 + 0*20 = 1044
    identifier = True
    agent = 'speaker'
    B = 8
    X_DIM = 1024
    AUX_DIM = 20
    IN_FEATURES = 20 * int(identifier) + X_DIM + 20 * int(agent == 'listener')  # 1044

    key = jax.random.PRNGKey(0)
    kx, km, ki, kp = jax.random.split(key, 4)
    x = jax.random.normal(kx, (B, X_DIM), jnp.float32)
    m = jax.random.normal(km, (B, AUX_DIM), jnp.float32)
    i = jax.random.normal(ki, (B, AUX_DIM), jnp.float32)

    params = init_params(kp, IN_FEATURES, hidden=1024, n_logits=19, n_values=19)
    packed = pack_params(params, identifier=identifier, agent=agent)

    logp, v = language_head_forward(x, m, i, packed)
    jax.block_until_ready((logp, v))

    # sanity check against a pure-JAX reference (same bf16 quantization)
    logp_ref, v_ref = _reference_forward(x, m, i, params,
                                         identifier=identifier, agent=agent)
    assert logp.shape == (B, 19) and v.shape == (B, 19)
    assert jnp.allclose(logp, logp_ref, atol=2e-3, rtol=2e-3), \
        float(jnp.max(jnp.abs(logp - logp_ref)))
    assert jnp.allclose(v, v_ref, atol=2e-3, rtol=2e-3), \
        float(jnp.max(jnp.abs(v - v_ref)))

    print("KERNEL_OK")
</pallas_src>

<mosaic_0001>
module attributes {stable_mosaic.version = 11 : i64} {
  func.func @_language_head_kernel(%arg0: i32, %arg1: memref<8x1024xbf16, #tpu.memory_space<vmem>>, %arg2: memref<8x32xbf16, #tpu.memory_space<vmem>>, %arg3: memref<1024x512xbf16, #tpu.memory_space<vmem>>, %arg4: memref<32x512xbf16, #tpu.memory_space<vmem>>, %arg5: memref<1x512xf32, #tpu.memory_space<vmem>>, %arg6: memref<512x1024xbf16, #tpu.memory_space<vmem>>, %arg7: memref<1x1024xf32, #tpu.memory_space<vmem>>, %arg8: memref<1024x128xbf16, #tpu.memory_space<vmem>>, %arg9: memref<1x128xf32, #tpu.memory_space<vmem>>, %arg10: memref<8x128xf32, #tpu.memory_space<vmem>>, %arg11: memref<8x1024xf32, #tpu.memory_space<vmem>>) attributes {dimension_semantics = [#tpu.dimension_semantics<arbitrary>], iteration_bounds = array<i64: 2>, scalar_prefetch = 0 : i64, scratch_operands = 1 : i64, tpu.core_type = #tpu.core_type<tc>, window_params = [{pipeline_mode = #tpu.pipeline_mode<synchronous>, transform_indices = @transform_0, window_bounds = array<i64: 8, 1024>}, {pipeline_mode = #tpu.pipeline_mode<synchronous>, transform_indices = @transform_1, window_bounds = array<i64: 8, 32>}, {transform_indices = @transform_2, window_bounds = array<i64: 1024, 512>}, {transform_indices = @transform_3, window_bounds = array<i64: 32, 512>}, {transform_indices = @transform_4, window_bounds = array<i64: 1, 512>}, {transform_indices = @transform_5, window_bounds = array<i64: 512, 1024>}, {pipeline_mode = #tpu.pipeline_mode<synchronous>, transform_indices = @transform_6, window_bounds = array<i64: 1, 1024>}, {pipeline_mode = #tpu.pipeline_mode<synchronous>, transform_indices = @transform_7, window_bounds = array<i64: 1024, 128>}, {pipeline_mode = #tpu.pipeline_mode<synchronous>, transform_indices = @transform_8, window_bounds = array<i64: 1, 128>}, {pipeline_mode = #tpu.pipeline_mode<synchronous>, transform_indices = @transform_9, window_bounds = array<i64: 8, 128>}]} {
    %c0_i32 = arith.constant 0 : i32
    %0 = arith.cmpi eq, %arg0, %c0_i32 : i32
    %1 = arith.extui %0 : i1 to i32
    %c0_i32_0 = arith.constant 0 : i32
    %2 = arith.cmpi ne, %1, %c0_i32_0 : i32
    scf.if %2 {
      %cst_20 = arith.constant 0.000000e+00 : f32
      %24 = vector.broadcast %cst_20 : f32 to vector<8x1024xf32>
      %c0_21 = arith.constant 0 : index
      %c0_22 = arith.constant 0 : index
      %25 = vector.load %arg11[%c0_21, %c0_22] : memref<8x1024xf32, #tpu.memory_space<vmem>>, vector<8x1024xf32>
      tpu.vector_store %arg11[%c0_21, %c0_22], %24 {strides = array<i32>} : memref<8x1024xf32, #tpu.memory_space<vmem>>, vector<8x1024xf32>,
    } else {
    }
    %c0 = arith.constant 0 : index
    %c0_1 = arith.constant 0 : index
    %3 = vector.load %arg1[%c0, %c0_1] : memref<8x1024xbf16, #tpu.memory_space<vmem>>, vector<8x1024xbf16>
    %c0_2 = arith.constant 0 : index
    %c0_3 = arith.constant 0 : index
    %4 = vector.load %arg3[%c0_2, %c0_3] : memref<1024x512xbf16, #tpu.memory_space<vmem>>, vector<1024x512xbf16>
    %cst = arith.constant dense<0.000000e+00> : vector<8x512xf32>
    %5 = tpu.matmul %3, %4, %cst {dimension_numbers = #tpu.dot_dimension_numbers<[1], [0], [0], [1], [0, 0, 1, 1], [], []>} : vector<8x1024xbf16>, vector<1024x512xbf16>, vector<8x512xf32> -> vector<8x512xf32>
    %c0_4 = arith.constant 0 : index
    %c0_5 = arith.constant 0 : index
    %6 = vector.load %arg2[%c0_4, %c0_5] : memref<8x32xbf16, #tpu.memory_space<vmem>>, vector<8x32xbf16>
    %c0_6 = arith.constant 0 : index
    %c0_7 = arith.constant 0 : index
    %7 = vector.load %arg4[%c0_6, %c0_7] : memref<32x512xbf16, #tpu.memory_space<vmem>>, vector<32x512xbf16>
    %cst_8 = arith.constant dense<0.000000e+00> : vector<8x512xf32>
    %8 = tpu.matmul %6, %7, %cst_8 {dimension_numbers = #tpu.dot_dimension_numbers<[1], [0], [0], [1], [0, 0, 1, 1], [], []>} : vector<8x32xbf16>, vector<32x512xbf16>, vector<8x512xf32> -> vector<8x512xf32>
    %9 = arith.addf %5, %8 : vector<8x512xf32>
    %c0_9 = arith.constant 0 : index
    %c0_10 = arith.constant 0 : index
    %10 = vector.load %arg5[%c0_9, %c0_10] : memref<1x512xf32, #tpu.memory_space<vmem>>, vector<1x512xf32>
    %11 = vector.broadcast %10 : vector<1x512xf32> to vector<8x512xf32>
    %12 = arith.addf %9, %11 : vector<8x512xf32>
    %cst_11 = arith.constant 0.000000e+00 : f32
    %13 = vector.broadcast %cst_11 : f32 to vector<8x512xf32>
    %14 = arith.maximumf %12, %13 : vector<8x512xf32>
    %15 = arith.truncf %14 : vector<8x512xf32> to vector<8x512xbf16>
    %c0_12 = arith.constant 0 : index
    %c0_13 = arith.constant 0 : index
    %16 = vector.load %arg11[%c0_12, %c0_13] : memref<8x1024xf32, #tpu.memory_space<vmem>>, vector<8x1024xf32>
    %c0_14 = arith.constant 0 : index
    %c0_15 = arith.constant 0 : index
    %17 = vector.load %arg6[%c0_14, %c0_15] : memref<512x1024xbf16, #tpu.memory_space<vmem>>, vector<512x1024xbf16>
    %cst_16 = arith.constant dense<0.000000e+00> : vector<8x1024xf32>
    %18 = tpu.matmul %15, %17, %cst_16 {dimension_numbers = #tpu.dot_dimension_numbers<[1], [0], [0], [1], [0, 0, 1, 1], [], []>} : vector<8x512xbf16>, vector<512x1024xbf16>, vector<8x1024xf32> -> vector<8x1024xf32>
    %19 = arith.addf %16, %18 : vector<8x1024xf32>
    %c0_17 = arith.constant 0 : index
    %c0_18 = arith.constant 0 : index
    %20 = vector.load %arg11[%c0_17, %c0_18] : memref<8x1024xf32, #tpu.memory_space<vmem>>, vector<8x1024xf32>
    tpu.vector_store %arg11[%c0_17, %c0_18], %19 {strides = array<i32>} : memref<8x1024xf32, #tpu.memory_space<vmem>>, vector<8x1024xf32>,
    %c1_i32 = arith.constant 1 : i32
    %21 = arith.cmpi eq, %arg0, %c1_i32 : i32
    %22 = arith.extui %21 : i1 to i32
    %c0_i32_19 = arith.constant 0 : i32
    %23 = arith.cmpi ne, %22, %c0_i32_19 : i32
    scf.if %23 {
      %c0_20 = arith.constant 0 : index
      %c0_21 = arith.constant 0 : index
      %24 = vector.load %arg11[%c0_20, %c0_21] : memref<8x1024xf32, #tpu.memory_space<vmem>>, vector<8x1024xf32>
      %c0_22 = arith.constant 0 : index
      %c0_23 = arith.constant 0 : index
      %25 = vector.load %arg7[%c0_22, %c0_23] : memref<1x1024xf32, #tpu.memory_space<vmem>>, vector<1x1024xf32>
      %26 = vector.broadcast %25 : vector<1x1024xf32> to vector<8x1024xf32>
      %27 = arith.addf %24, %26 : vector<8x1024xf32>
      %cst_24 = arith.constant 0.000000e+00 : f32
      %28 = vector.broadcast %cst_24 : f32 to vector<8x1024xf32>
      %29 = arith.maximumf %27, %28 : vector<8x1024xf32>
      %30 = arith.truncf %29 : vector<8x1024xf32> to vector<8x1024xbf16>
      %c0_25 = arith.constant 0 : index
      %c0_26 = arith.constant 0 : index
      %31 = vector.load %arg8[%c0_25, %c0_26] : memref<1024x128xbf16, #tpu.memory_space<vmem>>, vector<1024x128xbf16>
      %cst_27 = arith.constant dense<0.000000e+00> : vector<8x128xf32>
      %32 = tpu.matmul %30, %31, %cst_27 {dimension_numbers = #tpu.dot_dimension_numbers<[1], [0], [0], [1], [0, 0, 1, 1], [], []>} : vector<8x1024xbf16>, vector<1024x128xbf16>, vector<8x128xf32> -> vector<8x128xf32>
      %c0_28 = arith.constant 0 : index
      %c0_29 = arith.constant 0 : index
      %33 = vector.load %arg9[%c0_28, %c0_29] : memref<1x128xf32, #tpu.memory_space<vmem>>, vector<1x128xf32>
      %34 = vector.broadcast %33 : vector<1x128xf32> to vector<8x128xf32>
      %35 = arith.addf %32, %34 : vector<8x128xf32>
      %36 = tpu.iota {dimensions = array<i32: 1>} : vector<8x128xi32>
      %c19_i32 = arith.constant 19 : i32
      %37 = vector.broadcast %c19_i32 : i32 to vector<8x128xi32>
      %38 = arith.cmpi slt, %36, %37 : vector<8x128xi32>
      %cst_30 = arith.constant 0.000000e+00 : f32
      %39 = vector.broadcast %cst_30 : f32 to vector<8x128xf32>
      %40 = arith.maximumf %35, %39 : vector<8x128xf32>
      %cst_31 = arith.constant 0xFF800000 : f32
      %41 = vector.broadcast %cst_31 : f32 to vector<8x128xf32>
      %42 = arith.select %38, %40, %41 : vector<8x128xi1>, vector<8x128xf32>
      %cst_32 = arith.constant dense<0xFF800000> : vector<8xf32>
      %43 = vector.multi_reduction <maximumf>, %42, %cst_32 [1] : vector<8x128xf32> to vector<8xf32>
      %44 = vector.shape_cast %43 : vector<8xf32> to vector<8x1xf32>
      %45 = vector.broadcast %44 : vector<8x1xf32> to vector<8x128xf32>
      %46 = arith.subf %42, %45 : vector<8x128xf32>
      %47 = math.exp %46 : vector<8x128xf32>
      %cst_33 = arith.constant dense<0.000000e+00> : vector<8xf32>
      %48 = vector.multi_reduction <add>, %47, %cst_33 [1] : vector<8x128xf32> to vector<8xf32>
      %49 = vector.shape_cast %48 : vector<8xf32> to vector<8x1xf32>
      %50 = math.log %49 : vector<8x1xf32>
      %51 = vector.broadcast %44 : vector<8x1xf32> to vector<8x128xf32>
      %52 = arith.subf %40, %51 : vector<8x128xf32>
      %53 = vector.broadcast %50 : vector<8x1xf32> to vector<8x128xf32>
      %54 = arith.subf %52, %53 : vector<8x128xf32>
      %55 = arith.select %38, %54, %35 : vector<8x128xi1>, vector<8x128xf32>
      %c0_34 = arith.constant 0 : index
      %c0_35 = arith.constant 0 : index
      %56 = vector.load %arg10[%c0_34, %c0_35] : memref<8x128xf32, #tpu.memory_space<vmem>>, vector<8x128xf32>
      tpu.vector_store %arg10[%c0_34, %c0_35], %55 {strides = array<i32>} : memref<8x128xf32, #tpu.memory_space<vmem>>, vector<8x128xf32>,
    } else {
    }
    return
  }
  func.func @transform_0(%arg0: i32) -> (i32, i32) {
    %c0_i32 = arith.constant 0 : i32
    %c0_i32_0 = arith.constant 0 : i32
    %c0_i32_1 = arith.constant 0 : i32
    return %c0_i32, %c0_i32_0 : i32, i32
  }
  func.func @transform_1(%arg0: i32) -> (i32, i32) {
    %c0_i32 = arith.constant 0 : i32
    %c0_i32_0 = arith.constant 0 : i32
    %c0_i32_1 = arith.constant 0 : i32
    return %c0_i32, %c0_i32_0 : i32, i32
  }
  func.func @transform_2(%arg0: i32) -> (i32, i32) {
    %c0_i32 = arith.constant 0 : i32
    %c0_i32_0 = arith.constant 0 : i32
    return %c0_i32, %arg0 : i32, i32
  }
  func.func @transform_3(%arg0: i32) -> (i32, i32) {
    %c0_i32 = arith.constant 0 : i32
    %c0_i32_0 = arith.constant 0 : i32
    return %c0_i32, %arg0 : i32, i32
  }
  func.func @transform_4(%arg0: i32) -> (i32, i32) {
    %c0_i32 = arith.constant 0 : i32
    %c0_i32_0 = arith.constant 0 : i32
    return %c0_i32, %arg0 : i32, i32
  }
  func.func @transform_5(%arg0: i32) -> (i32, i32) {
    %c0_i32 = arith.constant 0 : i32
    %c0_i32_0 = arith.constant 0 : i32
    return %arg0, %c0_i32 : i32, i32
  }
  func.func @transform_6(%arg0: i32) -> (i32, i32) {
    %c0_i32 = arith.constant 0 : i32
    %c0_i32_0 = arith.constant 0 : i32
    %c0_i32_1 = arith.constant 0 : i32
    return %c0_i32, %c0_i32_0 : i32, i32
  }
  func.func @transform_7(%arg0: i32) -> (i32, i32) {
    %c0_i32 = arith.constant 0 : i32
    %c0_i32_0 = arith.constant 0 : i32
    %c0_i32_1 = arith.constant 0 : i32
    return %c0_i32, %c0_i32_0 : i32, i32
  }
  func.func @transform_8(%arg0: i32) -> (i32, i32) {
    %c0_i32 = arith.constant 0 : i32
    %c0_i32_0 = arith.constant 0 : i32
    %c0_i32_1 = arith.constant 0 : i32
    return %c0_i32, %c0_i32_0 : i32, i32
  }
  func.func @transform_9(%arg0: i32) -> (i32, i32) {
    %c0_i32 = arith.constant 0 : i32
    %c0_i32_0 = arith.constant 0 : i32
    %c0_i32_1 = arith.constant 0 : i32
    return %c0_i32, %c0_i32_0 : i32, i32
  }
}

</mosaic_0001>

<llo_original>
// kernel: tpu_custom_call.1
$region0: #{tpu_custom_call.1}
  #allocation0 [shape = 'u32[]', space=smem, size = 0x4, offset = 0x4, fixed_abs, tag = 'smem constant byte address 0x4 - core index']
  #allocation1 [shape = 'u32[144,128]{1,0:T(1,128)}', space=vmem, size = 0x12000, scoped, tag = 'internal scratch']
  #allocation2 [shape = 'f32[8,1024]{1,0:T(8,128)}', space=vmem, size = 0x8000, scoped, tag = 'scratch operand']
  %s0 = inlined_call_operand.hbm [shape: bf16[8,1024], index: 0, kind: input, shape index: {}]
  %s1 = inlined_call_operand.hbm [shape: bf16[8,32], index: 1, kind: input, shape index: {}]
  %s2 = inlined_call_operand.hbm [shape: bf16[1024,1024], index: 2, kind: input, shape index: {}]
  %s3 = inlined_call_operand.hbm [shape: bf16[32,1024], index: 3, kind: input, shape index: {}]
  %s4 = inlined_call_operand.hbm [shape: f32[1,1024], index: 4, kind: input, shape index: {}]
  %s5 = inlined_call_operand.hbm [shape: bf16[1024,1024], index: 5, kind: input, shape index: {}]
  %s6 = inlined_call_operand.hbm [shape: f32[1,1024], index: 6, kind: input, shape index: {}]
  %s7 = inlined_call_operand.hbm [shape: bf16[1024,128], index: 7, kind: input, shape index: {}]
  %s8 = inlined_call_operand.hbm [shape: f32[1,128], index: 8, kind: input, shape index: {}]
  %s9 = inlined_call_operand.hbm [shape: f32[8,128], index: 9, kind: output, shape index: {}]
  %s10 = sld [smem:[#allocation0]]
  $region113: #{tpu_custom_call.1} parent=0
    _
  %s12 = ssub.s32 1, %s10
  %s13 = scalar_select 0, %s12, %s10
  $region1: #{tpu_custom_call.1} parent=0
    #allocation3 [shape = 'u8[16384]{0}', space=vmem, size = 0x4000, scoped, tag = 'input window, operand 0, single buffered']
    #allocation4 [shape = 's32[2]{0}', space=sflag, size = 0x8, scoped, tag = 'scoped memory for tpu_custom_call.1']
    #allocation5 [shape = 's32[2]{0}', space=sflag, size = 0x8, scoped, tag = 'scoped memory for tpu_custom_call.1']
    #allocation6 [shape = 'u8[2048]{0}', space=vmem, size = 0x800, scoped, tag = 'input window, operand 1, single buffered']
    #allocation7 [shape = 's32[1]{0}', space=sflag, size = 0x4, scoped, tag = 'scoped memory for tpu_custom_call.1']
    #allocation8 [shape = 'u8[2097152]{0}', space=vmem, size = 0x200000, scoped, tag = 'input window, operand 2']
    #allocation9 [shape = 'u8[65536]{0}', space=vmem, size = 0x10000, scoped, tag = 'input window, operand 3']
    #allocation10 [shape = 'u8[4096]{0}', space=vmem, size = 0x1000, scoped, tag = 'input window, operand 4']
    #allocation11 [shape = 'u8[2097152]{0}', space=vmem, size = 0x200000, scoped, tag = 'input window, operand 5']
    #allocation12 [shape = 'u8[4096]{0}', space=vmem, size = 0x1000, scoped, tag = 'input window, operand 6, single buffered']
    #allocation13 [shape = 'u8[262144]{0}', space=vmem, size = 0x40000, scoped, tag = 'input window, operand 7, single buffered']
    #allocation14 [shape = 's32[1]{0}', space=sflag, size = 0x4, scoped, tag = 'scoped memory for tpu_custom_call.1']
    #allocation15 [shape = 'u8[512]{0}', space=vmem, size = 0x400, scoped, tag = 'input window, operand 8, single buffered']
    #allocation16 [shape = 'u8[4096]{0}', space=vmem, size = 0x1000, scoped, tag = 'output window, operand 0, single buffered']
    %14 = vsyncpa [#allocation4], 0
    %15 = vsyncpa [#allocation7], 0
    %16 = vsyncpa [#allocation14], 0
    %17 = vsyncpa [#allocation5], 0
    loop: start=0, step=1, limit=4
    $region2: #{tpu_custom_call.1} parent=1 // loop_pre_header
      _
    $region3: #{tpu_custom_call.1} parent=1 // loop_header
      %s19 = sphi 0, %s23
      %p20 = scmp.ge.s32.totalorder %s19, 4
      %s27 = sphi 0, %s27
      %s29 = sphi 0, %s27
      %s30 = sphi 0, %s29
      %s44 = sphi 0, %s30
      %s48 = sphi 0, %s48
      %s50 = sphi 0, %s48
      %s51 = sphi 0, %s50
      %s65 = sphi 0, %s51
      %s71 = sphi 0, %s73
      %s74 = sphi 0, %s71
      %s75 = sphi 0, %s74
      %s91 = sphi 0, %s75
      %s97 = sphi 0, %s99
      %s100 = sphi 0, %s97
      %s101 = sphi 0, %s100
      %s117 = sphi 0, %s101
      %s123 = sphi 0, %s125
      %s126 = sphi 0, %s123
      %s127 = sphi 0, %s126
      %s143 = sphi 0, %s127
      %s149 = sphi 0, %s151
      %s152 = sphi 0, %s149
      %s153 = sphi 0, %s152
      %s169 = sphi 0, %s153
      %s173 = sphi 0, %s173
      %s175 = sphi 0, %s173
      %s176 = sphi 0, %s175
      %s190 = sphi 0, %s176
      %s194 = sphi 0, %s194
      %s196 = sphi 0, %s194
      %s197 = sphi 0, %s196
      %s211 = sphi 0, %s197
      %s215 = sphi 0, %s215
      %s217 = sphi 0, %s215
      %s218 = sphi 0, %s217
      %s232 = sphi 0, %s218
      %s236 = sphi 0, %s236
      %s238 = sphi 0, %s236
      %s239 = sphi 0, %s238
      %s253 = sphi 0, %s239
    $region4: #{tpu_custom_call.1} parent=1 // loop_header_branch
      %22 = sbr.rel (%p20) target = $region8
    $region5: #{tpu_custom_call.1} parent=1 // loop_body
      %s24 = ssub.s32 %s19, 1
      %s25 = ssub.s32 %s19, 2
      %s26 = sadd.s32 %s19, 1
      %s28 = sadd.s32 %s27, 1
      %p31 = scmp.eq.s32.totalorder %s19, 1
      %p32 = scmp.ne.s32.totalorder %s27, %s29
      %p33 = scmp.eq.s32.totalorder %s19, 0
      %p34 = por %p32, %p33
      %p35 = scmp.ne.s32.totalorder %s27, %s29
      %p36 = scmp.eq.s32.totalorder %s24, 1
      %p37 = por %p35, %p36
      %p38 = scmp.ne.s32.totalorder %s29, %s30
      %p39 = scmp.eq.s32.totalorder %s24, 0
      %p40 = por %p38, %p39
      %p41 = scmp.ne.s32.totalorder %s29, %s30
      %p42 = scmp.eq.s32.totalorder %s25, 1
      %p43 = por %p41, %p42
      %p45 = scmp.ne.s32.totalorder %s30, %s44
      %p46 = scmp.eq.s32.totalorder %s25, 0
      %p47 = por %p45, %p46
      %s49 = sadd.s32 %s48, 1
      %p52 = scmp.eq.s32.totalorder %s19, 1
      %p53 = scmp.ne.s32.totalorder %s48, %s50
      %p54 = scmp.eq.s32.totalorder %s19, 0
      %p55 = por %p53, %p54
      %p56 = scmp.ne.s32.totalorder %s48, %s50
      %p57 = scmp.eq.s32.totalorder %s24, 1
      %p58 = por %p56, %p57
      %p59 = scmp.ne.s32.totalorder %s50, %s51
      %p60 = scmp.eq.s32.totalorder %s24, 0
      %p61 = por %p59, %p60
      %p62 = scmp.ne.s32.totalorder %s50, %s51
      %p63 = scmp.eq.s32.totalorder %s25, 1
      %p64 = por %p62, %p63
      %p66 = scmp.ne.s32.totalorder %s51, %s65
      %p67 = scmp.eq.s32.totalorder %s25, 0
      %p68 = por %p66, %p67
      %s69 = ssub.s32 %s19, %s26
      %p70 = scmp.eq.s32.totalorder %s69, 0
      %s72 = sadd.s32 %s71, 1
      %s73 = scalar_select %p70, %s71, %s72
      %p76 = pneg %p70
      %p77 = scmp.eq.s32.totalorder %s19, 1
      %p78 = por %p76, %p77
      %p79 = scmp.ne.s32.totalorder %s71, %s74
      %p80 = scmp.eq.s32.totalorder %s19, 0
      %p81 = por %p79, %p80
      %p82 = scmp.ne.s32.totalorder %s71, %s74
      %p83 = scmp.eq.s32.totalorder %s24, 1
      %p84 = por %p82, %p83
      %p85 = scmp.ne.s32.totalorder %s74, %s75
      %p86 = scmp.eq.s32.totalorder %s24, 0
      %p87 = por %p85, %p86
      %p88 = scmp.ne.s32.totalorder %s74, %s75
      %p89 = scmp.eq.s32.totalorder %s25, 1
      %p90 = por %p88, %p89
      %p92 = scmp.ne.s32.totalorder %s75, %s91
      %p93 = scmp.eq.s32.totalorder %s25, 0
      %p94 = por %p92, %p93
      %s95 = ssub.s32 %s19, %s26
      %p96 = scmp.eq.s32.totalorder %s95, 0
      %s98 = sadd.s32 %s97, 1
      %s99 = scalar_select %p96, %s97, %s98
      %p102 = pneg %p96
      %p103 = scmp.eq.s32.totalorder %s19, 1
      %p104 = por %p102, %p103
      %p105 = scmp.ne.s32.totalorder %s97, %s100
      %p106 = scmp.eq.s32.totalorder %s19, 0
      %p107 = por %p105, %p106
      %p108 = scmp.ne.s32.totalorder %s97, %s100
      %p109 = scmp.eq.s32.totalorder %s24, 1
      %p110 = por %p108, %p109
      %p111 = scmp.ne.s32.totalorder %s100, %s101
      %p112 = scmp.eq.s32.totalorder %s24, 0
      %p113 = por %p111, %p112
      %p114 = scmp.ne.s32.totalorder %s100, %s101
      %p115 = scmp.eq.s32.totalorder %s25, 1
      %p116 = por %p114, %p115
      %p118 = scmp.ne.s32.totalorder %s101, %s117
      %p119 = scmp.eq.s32.totalorder %s25, 0
      %p120 = por %p118, %p119
      %s121 = ssub.s32 %s19, %s26
      %p122 = scmp.eq.s32.totalorder %s121, 0
      %s124 = sadd.s32 %s123, 1
      %s125 = scalar_select %p122, %s123, %s124
      %p128 = pneg %p122
      %p129 = scmp.eq.s32.totalorder %s19, 1
      %p130 = por %p128, %p129
      %p131 = scmp.ne.s32.totalorder %s123, %s126
      %p132 = scmp.eq.s32.totalorder %s19, 0
      %p133 = por %p131, %p132
      %p134 = scmp.ne.s32.totalorder %s123, %s126
      %p135 = scmp.eq.s32.totalorder %s24, 1
      %p136 = por %p134, %p135
      %p137 = scmp.ne.s32.totalorder %s126, %s127
      %p138 = scmp.eq.s32.totalorder %s24, 0
      %p139 = por %p137, %p138
      %p140 = scmp.ne.s32.totalorder %s126, %s127
      %p141 = scmp.eq.s32.totalorder %s25, 1
      %p142 = por %p140, %p141
      %p144 = scmp.ne.s32.totalorder %s127, %s143
      %p145 = scmp.eq.s32.totalorder %s25, 0
      %p146 = por %p144, %p145
      %s147 = ssub.s32 %s19, %s26
      %p148 = scmp.eq.s32.totalorder %s147, 0
      %s150 = sadd.s32 %s149, 1
      %s151 = scalar_select %p148, %s149, %s150
      %p154 = pneg %p148
      %p155 = scmp.eq.s32.totalorder %s19, 1
      %p156 = por %p154, %p155
      %p157 = scmp.ne.s32.totalorder %s149, %s152
      %p158 = scmp.eq.s32.totalorder %s19, 0
      %p159 = por %p157, %p158
      %p160 = scmp.ne.s32.totalorder %s149, %s152
      %p161 = scmp.eq.s32.totalorder %s24, 1
      %p162 = por %p160, %p161
      %p163 = scmp.ne.s32.totalorder %s152, %s153
      %p164 = scmp.eq.s32.totalorder %s24, 0
      %p165 = por %p163, %p164
      %p166 = scmp.ne.s32.totalorder %s152, %s153
      %p167 = scmp.eq.s32.totalorder %s25, 1
      %p168 = por %p166, %p167
      %p170 = scmp.ne.s32.totalorder %s153, %s169
      %p171 = scmp.eq.s32.totalorder %s25, 0
      %p172 = por %p170, %p171
      %s174 = sadd.s32 %s173, 1
      %p177 = scmp.eq.s32.totalorder %s19, 1
      %p178 = scmp.ne.s32.totalorder %s173, %s175
      %p179 = scmp.eq.s32.totalorder %s19, 0
      %p180 = por %p178, %p179
      %p181 = scmp.ne.s32.totalorder %s173, %s175
      %p182 = scmp.eq.s32.totalorder %s24, 1
      %p183 = por %p181, %p182
      %p184 = scmp.ne.s32.totalorder %s175, %s176
      %p185 = scmp.eq.s32.totalorder %s24, 0
      %p186 = por %p184, %p185
      %p187 = scmp.ne.s32.totalorder %s175, %s176
      %p188 = scmp.eq.s32.totalorder %s25, 1
      %p189 = por %p187, %p188
      %p191 = scmp.ne.s32.totalorder %s176, %s190
      %p192 = scmp.eq.s32.totalorder %s25, 0
      %p193 = por %p191, %p192
      %s195 = sadd.s32 %s194, 1
      %p198 = scmp.eq.s32.totalorder %s19, 1
      %p199 = scmp.ne.s32.totalorder %s194, %s196
      %p200 = scmp.eq.s32.totalorder %s19, 0
      %p201 = por %p199, %p200
      %p202 = scmp.ne.s32.totalorder %s194, %s196
      %p203 = scmp.eq.s32.totalorder %s24, 1
      %p204 = por %p202, %p203
      %p205 = scmp.ne.s32.totalorder %s196, %s197
      %p206 = scmp.eq.s32.totalorder %s24, 0
      %p207 = por %p205, %p206
      %p208 = scmp.ne.s32.totalorder %s196, %s197
      %p209 = scmp.eq.s32.totalorder %s25, 1
      %p210 = por %p208, %p209
      %p212 = scmp.ne.s32.totalorder %s197, %s211
      %p213 = scmp.eq.s32.totalorder %s25, 0
      %p214 = por %p212, %p213
      %s216 = sadd.s32 %s215, 1
      %p219 = scmp.eq.s32.totalorder %s19, 1
      %p220 = scmp.ne.s32.totalorder %s215, %s217
      %p221 = scmp.eq.s32.totalorder %s19, 0
      %p222 = por %p220, %p221
      %p223 = scmp.ne.s32.totalorder %s215, %s217
      %p224 = scmp.eq.s32.totalorder %s24, 1
      %p225 = por %p223, %p224
      %p226 = scmp.ne.s32.totalorder %s217, %s218
      %p227 = scmp.eq.s32.totalorder %s24, 0
      %p228 = por %p226, %p227
      %p229 = scmp.ne.s32.totalorder %s217, %s218
      %p230 = scmp.eq.s32.totalorder %s25, 1
      %p231 = por %p229, %p230
      %p233 = scmp.ne.s32.totalorder %s218, %s232
      %p234 = scmp.eq.s32.totalorder %s25, 0
      %p235 = por %p233, %p234
      %s237 = sadd.s32 %s236, 1
      %p240 = scmp.eq.s32.totalorder %s19, 1
      %p241 = scmp.ne.s32.totalorder %s236, %s238
      %p242 = scmp.eq.s32.totalorder %s19, 0
      %p243 = por %p241, %p242
      %p244 = scmp.ne.s32.totalorder %s236, %s238
      %p245 = scmp.eq.s32.totalorder %s24, 1
      %p246 = por %p244, %p245
      %p247 = scmp.ne.s32.totalorder %s238, %s239
      %p248 = scmp.eq.s32.totalorder %s24, 0
      %p249 = por %p247, %p248
      %p250 = scmp.ne.s32.totalorder %s238, %s239
      %p251 = scmp.eq.s32.totalorder %s25, 1
      %p252 = por %p250, %p251
      %p254 = scmp.ne.s32.totalorder %s239, %s253
      %p255 = scmp.eq.s32.totalorder %s25, 0
      %p256 = por %p254, %p255
      %p257 = scmp.le.s32.totalorder 1, %s19
      %p258 = scmp.lt.s32.totalorder %s19, 3
      %p259 = pnand %p257, %p258
      %p260 = pneg %p259
      // Predicated region
      $region9: #{tpu_custom_call.1} parent=5 // pred_check
        _
      $region10: #{tpu_custom_call.1} parent=5 // pred_check_branch
        %262 = sbr.rel (%p259) target = $region12
      $region11: #{tpu_custom_call.1} parent=5 // pred_region
        %s263 = ssub.s32 %s19, 1
        // Predicated region
        $region13: #{tpu_custom_call.1} parent=11 // pred_check
          %p264 = pneg %p40
        $region14: #{tpu_custom_call.1} parent=11 // pred_check_branch
          %266 = sbr.rel (%p264) target = $region16
        $region15: #{tpu_custom_call.1} parent=11 // pred_region
          %s268 = ssub.s32 512, 512
          %269 = vsyncadd [#allocation4], %s268
          %s271 = sshll.u32 [#allocation3], 4
          %s272 = int_to_ptr.vmem [resolvable:$true] %s271
          %274 = dma.hbm_to_vmem [thread:$0]  %s0, 512, %s272, [#allocation4]
        $region16: #{tpu_custom_call.1} parent=11 // pred_fallthru
          _
        // Predicated region
        $region17: #{tpu_custom_call.1} parent=11 // pred_check
          %p275 = pneg %p61
        $region18: #{tpu_custom_call.1} parent=11 // pred_check_branch
          %277 = sbr.rel (%p275) target = $region20
        $region19: #{tpu_custom_call.1} parent=11 // pred_region
          %s279 = ssub.s32 64, 64
          %280 = vsyncadd [#allocation7], %s279
          %s282 = sshll.u32 [#allocation6], 4
          %s283 = int_to_ptr.vmem [resolvable:$true] %s282
          %285 = dma.hbm_to_vmem [thread:$0]  %s1, 64, %s283, [#allocation7]
        $region20: #{tpu_custom_call.1} parent=11 // pred_fallthru
          _
        // Predicated region
        $region21: #{tpu_custom_call.1} parent=11 // pred_check
          %p286 = pneg %p186
        $region22: #{tpu_custom_call.1} parent=11 // pred_check_branch
          %288 = sbr.rel (%p286) target = $region24
        $region23: #{tpu_custom_call.1} parent=11 // pred_region
          %s290 = ssub.s32 128, 128
          %291 = vsyncadd [#allocation7], %s290
          %s293 = sshll.u32 [#allocation12], 4
          %s294 = int_to_ptr.vmem [resolvable:$true] %s293
          %296 = dma.hbm_to_vmem [thread:$0]  %s6, 128, %s294, [#allocation7]
        $region24: #{tpu_custom_call.1} parent=11 // pred_fallthru
          _
        // Predicated region
        $region25: #{tpu_custom_call.1} parent=11 // pred_check
          %p297 = pneg %p207
        $region26: #{tpu_custom_call.1} parent=11 // pred_check_branch
          %299 = sbr.rel (%p297) target = $region28
        $region27: #{tpu_custom_call.1} parent=11 // pred_region
          %s301 = ssub.s32 8192, 8192
          %302 = vsyncadd [#allocation14], %s301
          %s303 = sshll.u32 [#allocation13], 4
          %s304 = int_to_ptr.vmem [resolvable:$true] %s303
          %309 = dma.hbm_to_vmem [thread:$0]  %s7, 8192, %s304, [#allocation14], 64, 64, 4
        $region28: #{tpu_custom_call.1} parent=11 // pred_fallthru
          _
        // Predicated region
        $region29: #{tpu_custom_call.1} parent=11 // pred_check
          %p310 = pneg %p228
        $region30: #{tpu_custom_call.1} parent=11 // pred_check_branch
          %312 = sbr.rel (%p310) target = $region32
        $region31: #{tpu_custom_call.1} parent=11 // pred_region
          %s314 = ssub.s32 16, 16
          %315 = vsyncadd [#allocation14], %s314
          %s317 = sshll.u32 [#allocation15], 4
          %s318 = int_to_ptr.vmem [resolvable:$true] %s317
          %320 = dma.hbm_to_vmem [thread:$0]  %s8, 16, %s318, [#allocation14]
        $region32: #{tpu_custom_call.1} parent=11 // pred_fallthru
          _
      $region12: #{tpu_custom_call.1} parent=5 // pred_fallthru
        _
      %p321 = scmp.lt.s32.totalorder %s19, 2
      // Predicated region
      $region33: #{tpu_custom_call.1} parent=5 // pred_check
        %p322 = pneg %p321
      $region34: #{tpu_custom_call.1} parent=5 // pred_check_branch
        %324 = sbr.rel (%p322) target = $region36
      $region35: #{tpu_custom_call.1} parent=5 // pred_region
        // Predicated region
        $region37: #{tpu_custom_call.1} parent=35 // pred_check
          %p325 = pneg %p81
        $region38: #{tpu_custom_call.1} parent=35 // pred_check_branch
          %327 = sbr.rel (%p325) target = $region40
        $region39: #{tpu_custom_call.1} parent=35 // pred_region
          %s328 = sand.u32 %s19, 1
          %s329 = scalar_lea.sflag [#allocation4], %s328
          %s330 = sand.u32 %s71, 1
          %s331 = smul.addr %s330, 2048
          %s332 = scalar_lea.vmem [#allocation8], %s331
          %s333 = smul.u32 4, %s19
          %s335 = ssub.s32 32768, 32768
          %336 = vsyncadd %s329, %s335
          %s337 = smul.addr %s333, 64
          %s338 = scalar_lea.hbm %s2, %s337
          %s339 = sshll.u32 %s332, 4
          %s340 = int_to_ptr.vmem [resolvable:$true] %s339
          %345 = dma.hbm_to_vmem [thread:$0]  %s338, 32768, %s340, %s329, 512, 256, 16
        $region40: #{tpu_custom_call.1} parent=35 // pred_fallthru
          _
        // Predicated region
        $region41: #{tpu_custom_call.1} parent=35 // pred_check
          %p346 = pneg %p107
        $region42: #{tpu_custom_call.1} parent=35 // pred_check_branch
          %348 = sbr.rel (%p346) target = $region44
        $region43: #{tpu_custom_call.1} parent=35 // pred_region
          %s349 = sand.u32 %s19, 1
          %s350 = scalar_lea.sflag [#allocation4], %s349
          %s351 = sand.u32 %s97, 1
          %s352 = smul.addr %s351, 64
          %s353 = scalar_lea.vmem [#allocation9], %s352
          %s354 = smul.u32 4, %s19
          %s356 = ssub.s32 1024, 1024
          %357 = vsyncadd %s350, %s356
          %s358 = smul.addr %s354, 64
          %s359 = scalar_lea.hbm %s3, %s358
          %s360 = sshll.u32 %s353, 4
          %s361 = int_to_ptr.vmem [resolvable:$true] %s360
          %366 = dma.hbm_to_vmem [thread:$0]  %s359, 1024, %s361, %s350, 512, 256, 16
        $region44: #{tpu_custom_call.1} parent=35 // pred_fallthru
          _
        // Predicated region
        $region45: #{tpu_custom_call.1} parent=35 // pred_check
          %p367 = pneg %p133
        $region46: #{tpu_custom_call.1} parent=35 // pred_check_branch
          %369 = sbr.rel (%p367) target = $region48
        $region47: #{tpu_custom_call.1} parent=35 // pred_region
          %s370 = sand.u32 %s19, 1
          %s371 = scalar_lea.sflag [#allocation4], %s370
          %s372 = sand.u32 %s123, 1
          %s373 = smul.addr %s372, 4
          %s374 = scalar_lea.vmem [#allocation10], %s373
          %s375 = smul.u32 4, %s19
          %s377 = ssub.s32 64, 64
          %378 = vsyncadd %s371, %s377
          %s379 = smul.addr %s375, 16
          %s380 = scalar_lea.hbm %s4, %s379
          %s382 = sshll.u32 %s374, 4
          %s383 = int_to_ptr.vmem [resolvable:$true] %s382
          %385 = dma.hbm_to_vmem [thread:$0]  %s380, 64, %s383, %s371
        $region48: #{tpu_custom_call.1} parent=35 // pred_fallthru
          _
        // Predicated region
        $region49: #{tpu_custom_call.1} parent=35 // pred_check
          %p386 = pneg %p159
        $region50: #{tpu_custom_call.1} parent=35 // pred_check_branch
          %388 = sbr.rel (%p386) target = $region52
        $region51: #{tpu_custom_call.1} parent=35 // pred_region
          %s389 = sand.u32 %s19, 1
          %s390 = scalar_lea.sflag [#allocation4], %s389
          %s391 = sand.u32 %s149, 1
          %s392 = smul.addr %s391, 2048
          %s393 = scalar_lea.vmem [#allocation11], %s392
          %s394 = smul.u32 64, %s19
          %s396 = ssub.s32 32768, 32768
          %397 = vsyncadd %s390, %s396
          %s398 = smul.addr %s394, 8
          %s399 = smul.addr %s398, 64
          %s400 = scalar_lea.hbm %s5, %s399
          %s401 = sshll.u32 %s393, 4
          %s402 = int_to_ptr.vmem [resolvable:$true] %s401
          %407 = dma.hbm_to_vmem [thread:$0]  %s400, 32768, %s402, %s390, 512, 512, 32
        $region52: #{tpu_custom_call.1} parent=35 // pred_fallthru
          _
      $region36: #{tpu_custom_call.1} parent=5 // pred_fallthru
        _
      %p408 = scmp.le.s32.totalorder 1, %s19
      %p409 = scmp.lt.s32.totalorder %s19, 3
      %p410 = pnand %p408, %p409
      %p411 = pneg %p410
      // Predicated region
      $region53: #{tpu_custom_call.1} parent=5 // pred_check
        _
      $region54: #{tpu_custom_call.1} parent=5 // pred_check_branch
        %413 = sbr.rel (%p410) target = $region56
      $region55: #{tpu_custom_call.1} parent=5 // pred_region
        %s414 = ssub.s32 %s19, 1
        // Predicated region
        $region57: #{tpu_custom_call.1} parent=55 // pred_check
          %p415 = pneg %p40
        $region58: #{tpu_custom_call.1} parent=55 // pred_check_branch
          %417 = sbr.rel (%p415) target = $region60
        $region59: #{tpu_custom_call.1} parent=55 // pred_region
          %418 = dma.done [#allocation4], 512
        $region60: #{tpu_custom_call.1} parent=55 // pred_fallthru
          _
        // Predicated region
        $region61: #{tpu_custom_call.1} parent=55 // pred_check
          %p419 = pneg %p61
        $region62: #{tpu_custom_call.1} parent=55 // pred_check_branch
          %421 = sbr.rel (%p419) target = $region64
        $region63: #{tpu_custom_call.1} parent=55 // pred_region
          %422 = dma.done [#allocation7], 64
        $region64: #{tpu_custom_call.1} parent=55 // pred_fallthru
          _
        %s423 = sand.u32 %s24, 1
        %s424 = scalar_lea.sflag [#allocation4], %s423
        %s425 = sand.u32 %s74, 1
        %s426 = smul.addr %s425, 2048
        %s427 = scalar_lea.vmem [#allocation8], %s426
        // Predicated region
        $region65: #{tpu_custom_call.1} parent=55 // pred_check
          %p428 = pneg %p87
        $region66: #{tpu_custom_call.1} parent=55 // pred_check_branch
          %430 = sbr.rel (%p428) target = $region68
        $region67: #{tpu_custom_call.1} parent=55 // pred_region
          %431 = dma.done %s424, 32768
        $region68: #{tpu_custom_call.1} parent=55 // pred_fallthru
          _
        %s432 = sand.u32 %s24, 1
        %s433 = scalar_lea.sflag [#allocation4], %s432
        %s434 = sand.u32 %s100, 1
        %s435 = smul.addr %s434, 64
        %s436 = scalar_lea.vmem [#allocation9], %s435
        // Predicated region
        $region69: #{tpu_custom_call.1} parent=55 // pred_check
          %p437 = pneg %p113
        $region70: #{tpu_custom_call.1} parent=55 // pred_check_branch
          %439 = sbr.rel (%p437) target = $region72
        $region71: #{tpu_custom_call.1} parent=55 // pred_region
          %440 = dma.done %s433, 1024
        $region72: #{tpu_custom_call.1} parent=55 // pred_fallthru
          _
        %s441 = sand.u32 %s24, 1
        %s442 = scalar_lea.sflag [#allocation4], %s441
        %s443 = sand.u32 %s126, 1
        %s444 = smul.addr %s443, 4
        %s445 = scalar_lea.vmem [#allocation10], %s444
        // Predicated region
        $region73: #{tpu_custom_call.1} parent=55 // pred_check
          %p446 = pneg %p139
        $region74: #{tpu_custom_call.1} parent=55 // pred_check_branch
          %448 = sbr.rel (%p446) target = $region76
        $region75: #{tpu_custom_call.1} parent=55 // pred_region
          %449 = dma.done %s442, 64
        $region76: #{tpu_custom_call.1} parent=55 // pred_fallthru
          _
        %s450 = sand.u32 %s24, 1
        %s451 = scalar_lea.sflag [#allocation4], %s450
        %s452 = sand.u32 %s152, 1
        %s453 = smul.addr %s452, 2048
        %s454 = scalar_lea.vmem [#allocation11], %s453
        // Predicated region
        $region77: #{tpu_custom_call.1} parent=55 // pred_check
          %p455 = pneg %p165
        $region78: #{tpu_custom_call.1} parent=55 // pred_check_branch
          %457 = sbr.rel (%p455) target = $region80
        $region79: #{tpu_custom_call.1} parent=55 // pred_region
          %458 = dma.done %s451, 32768
        $region80: #{tpu_custom_call.1} parent=55 // pred_fallthru
          _
        // Predicated region
        $region81: #{tpu_custom_call.1} parent=55 // pred_check
          %p459 = pneg %p186
        $region82: #{tpu_custom_call.1} parent=55 // pred_check_branch
          %461 = sbr.rel (%p459) target = $region84
        $region83: #{tpu_custom_call.1} parent=55 // pred_region
          %462 = dma.done [#allocation7], 128
        $region84: #{tpu_custom_call.1} parent=55 // pred_fallthru
          _
        // Predicated region
        $region85: #{tpu_custom_call.1} parent=55 // pred_check
          %p463 = pneg %p207
        $region86: #{tpu_custom_call.1} parent=55 // pred_check_branch
          %465 = sbr.rel (%p463) target = $region88
        $region87: #{tpu_custom_call.1} parent=55 // pred_region
          %466 = dma.done [#allocation14], 8192
        $region88: #{tpu_custom_call.1} parent=55 // pred_fallthru
          _
        // Predicated region
        $region89: #{tpu_custom_call.1} parent=55 // pred_check
          %p467 = pneg %p228
        $region90: #{tpu_custom_call.1} parent=55 // pred_check_branch
          %469 = sbr.rel (%p467) target = $region92
        $region91: #{tpu_custom_call.1} parent=55 // pred_region
          %470 = dma.done [#allocation14], 16
        $region92: #{tpu_custom_call.1} parent=55 // pred_fallthru
          _
        %p471 = pneg %p40
        %p472 = pneg %p37
        %p473 = pneg %p61
        %p474 = pneg %p58
        %s475 = sand.u32 %s24, 1
        %s476 = scalar_lea.sflag [#allocation4], %s475
        %s477 = sand.u32 %s74, 1
        %s478 = smul.addr %s477, 2048
        %s479 = scalar_lea.vmem [#allocation8], %s478
        %p480 = pneg %p87
        %p481 = pneg %p84
        %s482 = sand.u32 %s24, 1
        %s483 = scalar_lea.sflag [#allocation4], %s482
        %s484 = sand.u32 %s100, 1
        %s485 = smul.addr %s484, 64
        %s486 = scalar_lea.vmem [#allocation9], %s485
        %p487 = pneg %p113
        %p488 = pneg %p110
        %s489 = sand.u32 %s24, 1
        %s490 = scalar_lea.sflag [#allocation4], %s489
        %s491 = sand.u32 %s126, 1
        %s492 = smul.addr %s491, 4
        %s493 = scalar_lea.vmem [#allocation10], %s492
        %p494 = pneg %p139
        %p495 = pneg %p136
        %s496 = sand.u32 %s24, 1
        %s497 = scalar_lea.sflag [#allocation4], %s496
        %s498 = sand.u32 %s152, 1
        %s499 = smul.addr %s498, 2048
        %s500 = scalar_lea.vmem [#allocation11], %s499
        %p501 = pneg %p165
        %p502 = pneg %p162
        %p503 = pneg %p186
        %p504 = pneg %p183
        %p505 = pneg %p207
        %p506 = pneg %p204
        %p507 = pneg %p228
        %p508 = pneg %p225
        %p509 = pneg %p249
        %p510 = pneg %p246
        %s511 = smul.u32 4, %s24
        %s512 = smul.u32 4, %s24
        %s513 = smul.u32 4, %s24
        %s514 = smul.u32 64, %s24
        %p516 = scmp.eq.s32.totalorder %s24, 0
        // Predicated region
        $region93: #{tpu_custom_call.1} parent=55 // pred_check
          %p517 = pneg %p516
        $region94: #{tpu_custom_call.1} parent=55 // pred_check_branch
          %519 = sbr.rel (%p517) target = $region96
        $region95: #{tpu_custom_call.1} parent=55 // pred_region
          %520 = vst [vmem:[#allocation2] sm:$0xff] 0.0
          %521 = vst [vmem:[#allocation2 + $0x8] sm:$0xff] 0.0
          %522 = vst [vmem:[#allocation2 + $0x10] sm:$0xff] 0.0
          %523 = vst [vmem:[#allocation2 + $0x18] sm:$0xff] 0.0
          %524 = vst [vmem:[#allocation2 + $0x20] sm:$0xff] 0.0
          %525 = vst [vmem:[#allocation2 + $0x28] sm:$0xff] 0.0
          %526 = vst [vmem:[#allocation2 + $0x30] sm:$0xff] 0.0
          %527 = vst [vmem:[#allocation2 + $0x38] sm:$0xff] 0.0
        $region96: #{tpu_custom_call.1} parent=55 // pred_fallthru
          _
        %v528 = vld [vmem:[#allocation3] sm:$0xff]
        %v529 = vld [vmem:[#allocation3 + $0x8] sm:$0xff]
        %v530 = vld [vmem:[#allocation3 + $0x10] sm:$0xff]
        %v531 = vld [vmem:[#allocation3 + $0x18] sm:$0xff]
        %v532 = vld [vmem:[%s427] sm:$0xff]
        %v533 = vld [vmem:[%s427 + $0x8] sm:$0xff]
        %v534 = vld [vmem:[%s427 + $0x10] sm:$0xff]
        %v535 = vld [vmem:[%s427 + $0x18] sm:$0xff]
        %v536 = vld [vmem:[%s427 + $0x20] sm:$0xff]
        %v537 = vld [vmem:[%s427 + $0x28] sm:$0xff]
        %v538 = vld [vmem:[%s427 + $0x30] sm:$0xff]
        %v539 = vld [vmem:[%s427 + $0x38] sm:$0xff]
        %v540 = vld [vmem:[%s427 + $0x40] sm:$0xff]
        %v541 = vld [vmem:[%s427 + $0x48] sm:$0xff]
        %v542 = vld [vmem:[%s427 + $0x50] sm:$0xff]
        %v543 = vld [vmem:[%s427 + $0x58] sm:$0xff]
        %v544 = vld [vmem:[%s427 + $0x60] sm:$0xff]
        %v545 = vld [vmem:[%s427 + $0x68] sm:$0xff]
        %v546 = vld [vmem:[%s427 + $0x70] sm:$0xff]
        %v547 = vld [vmem:[%s427 + $0x78] sm:$0xff]
        %v548 = vld [vmem:[%s427 + $0x80] sm:$0xff]
        %v549 = vld [vmem:[%s427 + $0x88] sm:$0xff]
        %v550 = vld [vmem:[%s427 + $0x90] sm:$0xff]
        %v551 = vld [vmem:[%s427 + $0x98] sm:$0xff]
        %v552 = vld [vmem:[%s427 + $0xa0] sm:$0xff]
        %v553 = vld [vmem:[%s427 + $0xa8] sm:$0xff]
        %v554 = vld [vmem:[%s427 + $0xb0] sm:$0xff]
        %v555 = vld [vmem:[%s427 + $0xb8] sm:$0xff]
        %v556 = vld [vmem:[%s427 + $0xc0] sm:$0xff]
        %v557 = vld [vmem:[%s427 + $0xc8] sm:$0xff]
        %v558 = vld [vmem:[%s427 + $0xd0] sm:$0xff]
        %v559 = vld [vmem:[%s427 + $0xd8] sm:$0xff]
        %v560 = vld [vmem:[%s427 + $0xe0] sm:$0xff]
        %v561 = vld [vmem:[%s427 + $0xe8] sm:$0xff]
        %v562 = vld [vmem:[%s427 + $0xf0] sm:$0xff]
        %v563 = vld [vmem:[%s427 + $0xf8] sm:$0xff]
        %v564 = vld [vmem:[%s427 + $0x100] sm:$0xff]
        %v565 = vld [vmem:[%s427 + $0x108] sm:$0xff]
        %v566 = vld [vmem:[%s427 + $0x110] sm:$0xff]
        %v567 = vld [vmem:[%s427 + $0x118] sm:$0xff]
        %v568 = vld [vmem:[%s427 + $0x120] sm:$0xff]
        %v569 = vld [vmem:[%s427 + $0x128] sm:$0xff]
        %v570 = vld [vmem:[%s427 + $0x130] sm:$0xff]
        %v571 = vld [vmem:[%s427 + $0x138] sm:$0xff]
        %v572 = vld [vmem:[%s427 + $0x140] sm:$0xff]
        %v573 = vld [vmem:[%s427 + $0x148] sm:$0xff]
        %v574 = vld [vmem:[%s427 + $0x150] sm:$0xff]
        %v575 = vld [vmem:[%s427 + $0x158] sm:$0xff]
        %v576 = vld [vmem:[%s427 + $0x160] sm:$0xff]
        %v577 = vld [vmem:[%s427 + $0x168] sm:$0xff]
        %v578 = vld [vmem:[%s427 + $0x170] sm:$0xff]
        %v579 = vld [vmem:[%s427 + $0x178] sm:$0xff]
        %v580 = vld [vmem:[%s427 + $0x180] sm:$0xff]
        %v581 = vld [vmem:[%s427 + $0x188] sm:$0xff]
        %v582 = vld [vmem:[%s427 + $0x190] sm:$0xff]
        %v583 = vld [vmem:[%s427 + $0x198] sm:$0xff]
        %v584 = vld [vmem:[%s427 + $0x1a0] sm:$0xff]
        %v585 = vld [vmem:[%s427 + $0x1a8] sm:$0xff]
        %v586 = vld [vmem:[%s427 + $0x1b0] sm:$0xff]
        %v587 = vld [vmem:[%s427 + $0x1b8] sm:$0xff]
        %v588 = vld [vmem:[%s427 + $0x1c0] sm:$0xff]
        %v589 = vld [vmem:[%s427 + $0x1c8] sm:$0xff]
        %v590 = vld [vmem:[%s427 + $0x1d0] sm:$0xff]
        %v591 = vld [vmem:[%s427 + $0x1d8] sm:$0xff]
        %v592 = vld [vmem:[%s427 + $0x1e0] sm:$0xff]
        %v593 = vld [vmem:[%s427 + $0x1e8] sm:$0xff]
        %v594 = vld [vmem:[%s427 + $0x1f0] sm:$0xff]
        %v595 = vld [vmem:[%s427 + $0x1f8] sm:$0xff]
        %v596 = vld [vmem:[%s427 + $0x200] sm:$0xff]
        %v597 = vld [vmem:[%s427 + $0x208] sm:$0xff]
        %v598 = vld [vmem:[%s427 + $0x210] sm:$0xff]
        %v599 = vld [vmem:[%s427 + $0x218] sm:$0xff]
        %v600 = vld [vmem:[%s427 + $0x220] sm:$0xff]
        %v601 = vld [vmem:[%s427 + $0x228] sm:$0xff]
        %v602 = vld [vmem:[%s427 + $0x230] sm:$0xff]
        %v603 = vld [vmem:[%s427 + $0x238] sm:$0xff]
        %v604 = vld [vmem:[%s427 + $0x240] sm:$0xff]
        %v605 = vld [vmem:[%s427 + $0x248] sm:$0xff]
        %v606 = vld [vmem:[%s427 + $0x250] sm:$0xff]
        %v607 = vld [vmem:[%s427 + $0x258] sm:$0xff]
        %v608 = vld [vmem:[%s427 + $0x260] sm:$0xff]
        %v609 = vld [vmem:[%s427 + $0x268] sm:$0xff]
        %v610 = vld [vmem:[%s427 + $0x270] sm:$0xff]
        %v611 = vld [vmem:[%s427 + $0x278] sm:$0xff]
        %v612 = vld [vmem:[%s427 + $0x280] sm:$0xff]
        %v613 = vld [vmem:[%s427 + $0x288] sm:$0xff]
        %v614 = vld [vmem:[%s427 + $0x290] sm:$0xff]
        %v615 = vld [vmem:[%s427 + $0x298] sm:$0xff]
        %v616 = vld [vmem:[%s427 + $0x2a0] sm:$0xff]
        %v617 = vld [vmem:[%s427 + $0x2a8] sm:$0xff]
        %v618 = vld [vmem:[%s427 + $0x2b0] sm:$0xff]
        %v619 = vld [vmem:[%s427 + $0x2b8] sm:$0xff]
        %v620 = vld [vmem:[%s427 + $0x2c0] sm:$0xff]
        %v621 = vld [vmem:[%s427 + $0x2c8] sm:$0xff]
        %v622 = vld [vmem:[%s427 + $0x2d0] sm:$0xff]
        %v623 = vld [vmem:[%s427 + $0x2d8] sm:$0xff]
        %v624 = vld [vmem:[%s427 + $0x2e0] sm:$0xff]
        %v625 = vld [vmem:[%s427 + $0x2e8] sm:$0xff]
        %v626 = vld [vmem:[%s427 + $0x2f0] sm:$0xff]
        %v627 = vld [vmem:[%s427 + $0x2f8] sm:$0xff]
        %v628 = vld [vmem:[%s427 + $0x300] sm:$0xff]
        %v629 = vld [vmem:[%s427 + $0x308] sm:$0xff]
        %v630 = vld [vmem:[%s427 + $0x310] sm:$0xff]
        %v631 = vld [vmem:[%s427 + $0x318] sm:$0xff]
        %v632 = vld [vmem:[%s427 + $0x320] sm:$0xff]
        %v633 = vld [vmem:[%s427 + $0x328] sm:$0xff]
        %v634 = vld [vmem:[%s427 + $0x330] sm:$0xff]
        %v635 = vld [vmem:[%s427 + $0x338] sm:$0xff]
        %v636 = vld [vmem:[%s427 + $0x340] sm:$0xff]
        %v637 = vld [vmem:[%s427 + $0x348] sm:$0xff]
        %v638 = vld [vmem:[%s427 + $0x350] sm:$0xff]
        %v639 = vld [vmem:[%s427 + $0x358] sm:$0xff]
        %v640 = vld [vmem:[%s427 + $0x360] sm:$0xff]
        %v641 = vld [vmem:[%s427 + $0x368] sm:$0xff]
        %v642 = vld [vmem:[%s427 + $0x370] sm:$0xff]
        %v643 = vld [vmem:[%s427 + $0x378] sm:$0xff]
        %v644 = vld [vmem:[%s427 + $0x380] sm:$0xff]
        %v645 = vld [vmem:[%s427 + $0x388] sm:$0xff]
        %v646 = vld [vmem:[%s427 + $0x390] sm:$0xff]
        %v647 = vld [vmem:[%s427 + $0x398] sm:$0xff]
        %v648 = vld [vmem:[%s427 + $0x3a0] sm:$0xff]
        %v649 = vld [vmem:[%s427 + $0x3a8] sm:$0xff]
        %v650 = vld [vmem:[%s427 + $0x3b0] sm:$0xff]
        %v651 = vld [vmem:[%s427 + $0x3b8] sm:$0xff]
        %v652 = vld [vmem:[%s427 + $0x3c0] sm:$0xff]
        %v653 = vld [vmem:[%s427 + $0x3c8] sm:$0xff]
        %v654 = vld [vmem:[%s427 + $0x3d0] sm:$0xff]
        %v655 = vld [vmem:[%s427 + $0x3d8] sm:$0xff]
        %v656 = vld [vmem:[%s427 + $0x3e0] sm:$0xff]
        %v657 = vld [vmem:[%s427 + $0x3e8] sm:$0xff]
        %v658 = vld [vmem:[%s427 + $0x3f0] sm:$0xff]
        %v659 = vld [vmem:[%s427 + $0x3f8] sm:$0xff]
        %v660 = vld [vmem:[%s427 + $0x400] sm:$0xff]
        %v661 = vld [vmem:[%s427 + $0x408] sm:$0xff]
        %v662 = vld [vmem:[%s427 + $0x410] sm:$0xff]
        %v663 = vld [vmem:[%s427 + $0x418] sm:$0xff]
        %v664 = vld [vmem:[%s427 + $0x420] sm:$0xff]
        %v665 = vld [vmem:[%s427 + $0x428] sm:$0xff]
        %v666 = vld [vmem:[%s427 + $0x430] sm:$0xff]
        %v667 = vld [vmem:[%s427 + $0x438] sm:$0xff]
        %v668 = vld [vmem:[%s427 + $0x440] sm:$0xff]
        %v669 = vld [vmem:[%s427 + $0x448] sm:$0xff]
        %v670 = vld [vmem:[%s427 + $0x450] sm:$0xff]
        %v671 = vld [vmem:[%s427 + $0x458] sm:$0xff]
        %v672 = vld [vmem:[%s427 + $0x460] sm:$0xff]
        %v673 = vld [vmem:[%s427 + $0x468] sm:$0xff]
        %v674 = vld [vmem:[%s427 + $0x470] sm:$0xff]
        %v675 = vld [vmem:[%s427 + $0x478] sm:$0xff]
        %v676 = vld [vmem:[%s427 + $0x480] sm:$0xff]
        %v677 = vld [vmem:[%s427 + $0x488] sm:$0xff]
        %v678 = vld [vmem:[%s427 + $0x490] sm:$0xff]
        %v679 = vld [vmem:[%s427 + $0x498] sm:$0xff]
        %v680 = vld [vmem:[%s427 + $0x4a0] sm:$0xff]
        %v681 = vld [vmem:[%s427 + $0x4a8] sm:$0xff]
        %v682 = vld [vmem:[%s427 + $0x4b0] sm:$0xff]
        %v683 = vld [vmem:[%s427 + $0x4b8] sm:$0xff]
        %v684 = vld [vmem:[%s427 + $0x4c0] sm:$0xff]
        %v685 = vld [vmem:[%s427 + $0x4c8] sm:$0xff]
        %v686 = vld [vmem:[%s427 + $0x4d0] sm:$0xff]
        %v687 = vld [vmem:[%s427 + $0x4d8] sm:$0xff]
        %v688 = vld [vmem:[%s427 + $0x4e0] sm:$0xff]
        %v689 = vld [vmem:[%s427 + $0x4e8] sm:$0xff]
        %v690 = vld [vmem:[%s427 + $0x4f0] sm:$0xff]
        %v691 = vld [vmem:[%s427 + $0x4f8] sm:$0xff]
        %v692 = vld [vmem:[%s427 + $0x500] sm:$0xff]
        %v693 = vld [vmem:[%s427 + $0x508] sm:$0xff]
        %v694 = vld [vmem:[%s427 + $0x510] sm:$0xff]
        %v695 = vld [vmem:[%s427 + $0x518] sm:$0xff]
        %v696 = vld [vmem:[%s427 + $0x520] sm:$0xff]
        %v697 = vld [vmem:[%s427 + $0x528] sm:$0xff]
        %v698 = vld [vmem:[%s427 + $0x530] sm:$0xff]
        %v699 = vld [vmem:[%s427 + $0x538] sm:$0xff]
        %v700 = vld [vmem:[%s427 + $0x540] sm:$0xff]
        %v701 = vld [vmem:[%s427 + $0x548] sm:$0xff]
        %v702 = vld [vmem:[%s427 + $0x550] sm:$0xff]
        %v703 = vld [vmem:[%s427 + $0x558] sm:$0xff]
        %v704 = vld [vmem:[%s427 + $0x560] sm:$0xff]
        %v705 = vld [vmem:[%s427 + $0x568] sm:$0xff]
        %v706 = vld [vmem:[%s427 + $0x570] sm:$0xff]
        %v707 = vld [vmem:[%s427 + $0x578] sm:$0xff]
        %v708 = vld [vmem:[%s427 + $0x580] sm:$0xff]
        %v709 = vld [vmem:[%s427 + $0x588] sm:$0xff]
        %v710 = vld [vmem:[%s427 + $0x590] sm:$0xff]
        %v711 = vld [vmem:[%s427 + $0x598] sm:$0xff]
        %v712 = vld [vmem:[%s427 + $0x5a0] sm:$0xff]
        %v713 = vld [vmem:[%s427 + $0x5a8] sm:$0xff]
        %v714 = vld [vmem:[%s427 + $0x5b0] sm:$0xff]
        %v715 = vld [vmem:[%s427 + $0x5b8] sm:$0xff]
        %v716 = vld [vmem:[%s427 + $0x5c0] sm:$0xff]
        %v717 = vld [vmem:[%s427 + $0x5c8] sm:$0xff]
        %v718 = vld [vmem:[%s427 + $0x5d0] sm:$0xff]
        %v719 = vld [vmem:[%s427 + $0x5d8] sm:$0xff]
        %v720 = vld [vmem:[%s427 + $0x5e0] sm:$0xff]
        %v721 = vld [vmem:[%s427 + $0x5e8] sm:$0xff]
        %v722 = vld [vmem:[%s427 + $0x5f0] sm:$0xff]
        %v723 = vld [vmem:[%s427 + $0x5f8] sm:$0xff]
        %v724 = vld [vmem:[%s427 + $0x600] sm:$0xff]
        %v725 = vld [vmem:[%s427 + $0x608] sm:$0xff]
        %v726 = vld [vmem:[%s427 + $0x610] sm:$0xff]
        %v727 = vld [vmem:[%s427 + $0x618] sm:$0xff]
        %v728 = vld [vmem:[%s427 + $0x620] sm:$0xff]
        %v729 = vld [vmem:[%s427 + $0x628] sm:$0xff]
        %v730 = vld [vmem:[%s427 + $0x630] sm:$0xff]
        %v731 = vld [vmem:[%s427 + $0x638] sm:$0xff]
        %v732 = vld [vmem:[%s427 + $0x640] sm:$0xff]
        %v733 = vld [vmem:[%s427 + $0x648] sm:$0xff]
        %v734 = vld [vmem:[%s427 + $0x650] sm:$0xff]
        %v735 = vld [vmem:[%s427 + $0x658] sm:$0xff]
        %v736 = vld [vmem:[%s427 + $0x660] sm:$0xff]
        %v737 = vld [vmem:[%s427 + $0x668] sm:$0xff]
        %v738 = vld [vmem:[%s427 + $0x670] sm:$0xff]
        %v739 = vld [vmem:[%s427 + $0x678] sm:$0xff]
        %v740 = vld [vmem:[%s427 + $0x680] sm:$0xff]
        %v741 = vld [vmem:[%s427 + $0x688] sm:$0xff]
        %v742 = vld [vmem:[%s427 + $0x690] sm:$0xff]
        %v743 = vld [vmem:[%s427 + $0x698] sm:$0xff]
        %v744 = vld [vmem:[%s427 + $0x6a0] sm:$0xff]
        %v745 = vld [vmem:[%s427 + $0x6a8] sm:$0xff]
        %v746 = vld [vmem:[%s427 + $0x6b0] sm:$0xff]
        %v747 = vld [vmem:[%s427 + $0x6b8] sm:$0xff]
        %v748 = vld [vmem:[%s427 + $0x6c0] sm:$0xff]
        %v749 = vld [vmem:[%s427 + $0x6c8] sm:$0xff]
        %v750 = vld [vmem:[%s427 + $0x6d0] sm:$0xff]
        %v751 = vld [vmem:[%s427 + $0x6d8] sm:$0xff]
        %v752 = vld [vmem:[%s427 + $0x6e0] sm:$0xff]
        %v753 = vld [vmem:[%s427 + $0x6e8] sm:$0xff]
        %v754 = vld [vmem:[%s427 + $0x6f0] sm:$0xff]
        %v755 = vld [vmem:[%s427 + $0x6f8] sm:$0xff]
        %v756 = vld [vmem:[%s427 + $0x700] sm:$0xff]
        %v757 = vld [vmem:[%s427 + $0x708] sm:$0xff]
        %v758 = vld [vmem:[%s427 + $0x710] sm:$0xff]
        %v759 = vld [vmem:[%s427 + $0x718] sm:$0xff]
        %v760 = vld [vmem:[%s427 + $0x720] sm:$0xff]
        %v761 = vld [vmem:[%s427 + $0x728] sm:$0xff]
        %v762 = vld [vmem:[%s427 + $0x730] sm:$0xff]
        %v763 = vld [vmem:[%s427 + $0x738] sm:$0xff]
        %v764 = vld [vmem:[%s427 + $0x740] sm:$0xff]
        %v765 = vld [vmem:[%s427 + $0x748] sm:$0xff]
        %v766 = vld [vmem:[%s427 + $0x750] sm:$0xff]
        %v767 = vld [vmem:[%s427 + $0x758] sm:$0xff]
        %v768 = vld [vmem:[%s427 + $0x760] sm:$0xff]
        %v769 = vld [vmem:[%s427 + $0x768] sm:$0xff]
        %v770 = vld [vmem:[%s427 + $0x770] sm:$0xff]
        %v771 = vld [vmem:[%s427 + $0x778] sm:$0xff]
        %v772 = vld [vmem:[%s427 + $0x780] sm:$0xff]
        %v773 = vld [vmem:[%s427 + $0x788] sm:$0xff]
        %v774 = vld [vmem:[%s427 + $0x790] sm:$0xff]
        %v775 = vld [vmem:[%s427 + $0x798] sm:$0xff]
        %v776 = vld [vmem:[%s427 + $0x7a0] sm:$0xff]
        %v777 = vld [vmem:[%s427 + $0x7a8] sm:$0xff]
        %v778 = vld [vmem:[%s427 + $0x7b0] sm:$0xff]
        %v779 = vld [vmem:[%s427 + $0x7b8] sm:$0xff]
        %v780 = vld [vmem:[%s427 + $0x7c0] sm:$0xff]
        %v781 = vld [vmem:[%s427 + $0x7c8] sm:$0xff]
        %v782 = vld [vmem:[%s427 + $0x7d0] sm:$0xff]
        %v783 = vld [vmem:[%s427 + $0x7d8] sm:$0xff]
        %v784 = vld [vmem:[%s427 + $0x7e0] sm:$0xff]
        %v785 = vld [vmem:[%s427 + $0x7e8] sm:$0xff]
        %v786 = vld [vmem:[%s427 + $0x7f0] sm:$0xff]
        %v787 = vld [vmem:[%s427 + $0x7f8] sm:$0xff]
        %v788 = vld [vmem:[#allocation6] sm:$0xf]
        %v789 = vld [vmem:[%s436] sm:$0xff]
        %v790 = vld [vmem:[%s436 + $0x8] sm:$0xff]
        %v791 = vld [vmem:[%s436 + $0x10] sm:$0xff]
        %v792 = vld [vmem:[%s436 + $0x18] sm:$0xff]
        %v793 = vld [vmem:[%s436 + $0x20] sm:$0xff]
        %v794 = vld [vmem:[%s436 + $0x28] sm:$0xff]
        %v795 = vld [vmem:[%s436 + $0x30] sm:$0xff]
        %v796 = vld [vmem:[%s436 + $0x38] sm:$0xff]
        %v805 = vunpack.c.l.b16 %v789
        %v806 = vunpack.c.h.b16 %v789
        %v807 = vunpack.c.l.b16 %v790
        %v808 = vunpack.c.h.b16 %v790
        %v809 = vunpack.c.l.b16 %v791
        %v810 = vunpack.c.h.b16 %v791
        %v811 = vunpack.c.l.b16 %v792
        %v812 = vunpack.c.h.b16 %v792
        %v813 = vunpack.c.l.b16 %v793
        %v814 = vunpack.c.h.b16 %v793
        %v815 = vunpack.c.l.b16 %v794
        %v816 = vunpack.c.h.b16 %v794
        %v817 = vunpack.c.l.b16 %v795
        %v818 = vunpack.c.h.b16 %v795
        %v819 = vunpack.c.l.b16 %v796
        %v820 = vunpack.c.h.b16 %v796
        %v821 = vpack.c.b16 %v809, %v805
        %v822 = vpack.c.b16 %v810, %v806
        %v823 = vpack.c.b16 %v811, %v807
        %v824 = vpack.c.b16 %v812, %v808
        %v825 = vpack.c.b16 %v817, %v813
        %v826 = vpack.c.b16 %v818, %v814
        %v827 = vpack.c.b16 %v819, %v815
        %v828 = vpack.c.b16 %v820, %v816
        %vm837 = vcmask 261120
        %v839 = vsel %vm837, %v788, 0
        %841 = vmatprep.subr.bf16.mxu0 %v822
        %842 = vmatpush1.bf16.msra.mxu0 %v821
        %843 = vmatprep.subr.bf16.mxu0 %v826
        %844 = vmatpush1.bf16.msra.mxu0 %v825
        %845 = vmatprep.subr.bf16.mxu0 0
        %846 = vmatpush1.bf16.msra.mxu0 0
        %847 = vmatprep.subr.bf16.mxu0 0
        %848 = vmatpush1.bf16.msra.mxu0 0
        %849 = vmatprep.subr.bf16.mxu0 0
        %850 = vmatpush1.bf16.msra.mxu0 0
        %851 = vmatprep.subr.bf16.mxu0 0
        %852 = vmatpush1.bf16.msra.mxu0 0
        %853 = vmatprep.subr.bf16.mxu0 0
        %854 = vmatpush1.bf16.msra.mxu0 0
        %855 = vmatprep.subr.bf16.mxu0 0
        %856 = vmatpush1.bf16.msra.mxu0 0
        %857 = vmatprep.subr.bf16.mxu0 0
        %858 = vmatpush1.bf16.msra.mxu0 0
        %859 = vmatprep.subr.bf16.mxu0 0
        %860 = vmatpush1.bf16.msra.mxu0 0
        %861 = vmatprep.subr.bf16.mxu0 0
        %862 = vmatpush1.bf16.msra.mxu0 0
        %863 = vmatprep.subr.bf16.mxu0 0
        %864 = vmatpush1.bf16.msra.mxu0 0
        %865 = vmatprep.subr.bf16.mxu0 0
        %866 = vmatpush1.bf16.msra.mxu0 0
        %867 = vmatprep.subr.bf16.mxu0 0
        %868 = vmatpush1.bf16.msra.mxu0 0
        %869 = vmatprep.subr.bf16.mxu0 0
        %870 = vmatpush1.bf16.msra.mxu0 0
        %871 = vmatprep.subr.bf16.mxu0 0
        %872 = vmatpush1.bf16.msra.mxu0 0
        %873 = vmatprep.mubr.bf16.mxu0 0
        %874 = vmatmul.mubr.bf16.gmra.mrb[0].mxu0 %v839
        %v875 = vpop.f32.mrb[0].mxu0
        %v876 = vadd.f32 0.0, %v875
        %v877 = vpop.f32.mrb[0].mxu0
        %v878 = vadd.f32 0.0, %v877
        %v879 = vpop.f32.mrb[0].mxu0
        %v880 = vpop.f32.mrb[0].mxu0
        %881 = vdwg.mxu0
        %882 = vmatprep.subr.bf16.mxu0 %v824
        %883 = vmatpush1.bf16.msra.mxu0 %v823
        %884 = vmatprep.subr.bf16.mxu0 %v828
        %885 = vmatpush1.bf16.msra.mxu0 %v827
        %886 = vmatprep.subr.bf16.mxu0 0
        %887 = vmatpush1.bf16.msra.mxu0 0
        %888 = vmatprep.subr.bf16.mxu0 0
        %889 = vmatpush1.bf16.msra.mxu0 0
        %890 = vmatprep.subr.bf16.mxu0 0
        %891 = vmatpush1.bf16.msra.mxu0 0
        %892 = vmatprep.subr.bf16.mxu0 0
        %893 = vmatpush1.bf16.msra.mxu0 0
        %894 = vmatprep.subr.bf16.mxu0 0
        %895 = vmatpush1.bf16.msra.mxu0 0
        %896 = vmatprep.subr.bf16.mxu0 0
        %897 = vmatpush1.bf16.msra.mxu0 0
        %898 = vmatprep.subr.bf16.mxu0 0
        %899 = vmatpush1.bf16.msra.mxu0 0
        %900 = vmatprep.subr.bf16.mxu0 0
        %901 = vmatpush1.bf16.msra.mxu0 0
        %902 = vmatprep.subr.bf16.mxu0 0
        %903 = vmatpush1.bf16.msra.mxu0 0
        %904 = vmatprep.subr.bf16.mxu0 0
        %905 = vmatpush1.bf16.msra.mxu0 0
        %906 = vmatprep.subr.bf16.mxu0 0
        %907 = vmatpush1.bf16.msra.mxu0 0
        %908 = vmatprep.subr.bf16.mxu0 0
        %909 = vmatpush1.bf16.msra.mxu0 0
        %910 = vmatprep.subr.bf16.mxu0 0
        %911 = vmatpush1.bf16.msra.mxu0 0
        %912 = vmatprep.subr.bf16.mxu0 0
        %913 = vmatpush1.bf16.msra.mxu0 0
        %914 = vmatprep.mubr.bf16.mxu0 0
        %915 = vmatmul.mubr.bf16.gmra.mrb[0].mxu0 %v839
        %v916 = vpop.f32.mrb[0].mxu0
        %v917 = vadd.f32 0.0, %v916
        %v918 = vpop.f32.mrb[0].mxu0
        %v919 = vadd.f32 0.0, %v918
        %v920 = vpop.f32.mrb[0].mxu0
        %v921 = vpop.f32.mrb[0].mxu0
        %922 = vdwg.mxu0
        %v927 = vunpack.c.l.b16 %v528
        %v928 = vunpack.c.h.b16 %v528
        %v929 = vunpack.c.l.b16 %v529
        %v930 = vunpack.c.h.b16 %v529
        %v931 = vunpack.c.l.b16 %v530
        %v932 = vunpack.c.h.b16 %v530
        %v933 = vunpack.c.l.b16 %v531
        %v934 = vunpack.c.h.b16 %v531
        %v935 = vpack.c.b16 %v927, %v927
        %v936 = vpack.c.b16 %v928, %v928
        %v937 = vpack.c.b16 %v929, %v929
        %v938 = vpack.c.b16 %v930, %v930
        %v939 = vpack.c.b16 %v931, %v931
        %v940 = vpack.c.b16 %v932, %v932
        %v941 = vpack.c.b16 %v933, %v933
        %v942 = vpack.c.b16 %v934, %v934
        %v1207 = vunpack.c.l.b16 %v532
        %v1208 = vunpack.c.h.b16 %v532
        %v1209 = vunpack.c.l.b16 %v533
        %v1210 = vunpack.c.h.b16 %v533
        %v1211 = vunpack.c.l.b16 %v534
        %v1212 = vunpack.c.h.b16 %v534
        %v1213 = vunpack.c.l.b16 %v535
        %v1214 = vunpack.c.h.b16 %v535
        %v1215 = vunpack.c.l.b16 %v536
        %v1216 = vunpack.c.h.b16 %v536
        %v1217 = vunpack.c.l.b16 %v537
        %v1218 = vunpack.c.h.b16 %v537
        %v1219 = vunpack.c.l.b16 %v538
        %v1220 = vunpack.c.h.b16 %v538
        %v1221 = vunpack.c.l.b16 %v539
        %v1222 = vunpack.c.h.b16 %v539
        %v1223 = vunpack.c.l.b16 %v540
        %v1224 = vunpack.c.h.b16 %v540
        %v1225 = vunpack.c.l.b16 %v541
        %v1226 = vunpack.c.h.b16 %v541
        %v1227 = vunpack.c.l.b16 %v542
        %v1228 = vunpack.c.h.b16 %v542
        %v1229 = vunpack.c.l.b16 %v543
        %v1230 = vunpack.c.h.b16 %v543
        %v1231 = vunpack.c.l.b16 %v544
        %v1232 = vunpack.c.h.b16 %v544
        %v1233 = vunpack.c.l.b16 %v545
        %v1234 = vunpack.c.h.b16 %v545
        %v1235 = vunpack.c.l.b16 %v546
        %v1236 = vunpack.c.h.b16 %v546
        %v1237 = vunpack.c.l.b16 %v547
        %v1238 = vunpack.c.h.b16 %v547
        %v1239 = vunpack.c.l.b16 %v548
        %v1240 = vunpack.c.h.b16 %v548
        %v1241 = vunpack.c.l.b16 %v549
        %v1242 = vunpack.c.h.b16 %v549
        %v1243 = vunpack.c.l.b16 %v550
        %v1244 = vunpack.c.h.b16 %v550
        %v1245 = vunpack.c.l.b16 %v551
        %v1246 = vunpack.c.h.b16 %v551
        %v1247 = vunpack.c.l.b16 %v552
        %v1248 = vunpack.c.h.b16 %v552
        %v1249 = vunpack.c.l.b16 %v553
        %v1250 = vunpack.c.h.b16 %v553
        %v1251 = vunpack.c.l.b16 %v554
        %v1252 = vunpack.c.h.b16 %v554
        %v1253 = vunpack.c.l.b16 %v555
        %v1254 = vunpack.c.h.b16 %v555
        %v1255 = vunpack.c.l.b16 %v556
        %v1256 = vunpack.c.h.b16 %v556
        %v1257 = vunpack.c.l.b16 %v557
        %v1258 = vunpack.c.h.b16 %v557
        %v1259 = vunpack.c.l.b16 %v558
        %v1260 = vunpack.c.h.b16 %v558
        %v1261 = vunpack.c.l.b16 %v559
        %v1262 = vunpack.c.h.b16 %v559
        %v1263 = vunpack.c.l.b16 %v560
        %v1264 = vunpack.c.h.b16 %v560
        %v1265 = vunpack.c.l.b16 %v561
        %v1266 = vunpack.c.h.b16 %v561
        %v1267 = vunpack.c.l.b16 %v562
        %v1268 = vunpack.c.h.b16 %v562
        %v1269 = vunpack.c.l.b16 %v563
        %v1270 = vunpack.c.h.b16 %v563
        %v1271 = vunpack.c.l.b16 %v564
        %v1272 = vunpack.c.h.b16 %v564
        %v1273 = vunpack.c.l.b16 %v565
        %v1274 = vunpack.c.h.b16 %v565
        %v1275 = vunpack.c.l.b16 %v566
        %v1276 = vunpack.c.h.b16 %v566
        %v1277 = vunpack.c.l.b16 %v567
        %v1278 = vunpack.c.h.b16 %v567
        %v1279 = vunpack.c.l.b16 %v568
        %v1280 = vunpack.c.h.b16 %v568
        %v1281 = vunpack.c.l.b16 %v569
        %v1282 = vunpack.c.h.b16 %v569
        %v1283 = vunpack.c.l.b16 %v570
        %v1284 = vunpack.c.h.b16 %v570
        %v1285 = vunpack.c.l.b16 %v571
        %v1286 = vunpack.c.h.b16 %v571
        %v1287 = vunpack.c.l.b16 %v572
        %v1288 = vunpack.c.h.b16 %v572
        %v1289 = vunpack.c.l.b16 %v573
        %v1290 = vunpack.c.h.b16 %v573
        %v1291 = vunpack.c.l.b16 %v574
        %v1292 = vunpack.c.h.b16 %v574
        %v1293 = vunpack.c.l.b16 %v575
        %v1294 = vunpack.c.h.b16 %v575
        %v1295 = vunpack.c.l.b16 %v576
        %v1296 = vunpack.c.h.b16 %v576
        %v1297 = vunpack.c.l.b16 %v577
        %v1298 = vunpack.c.h.b16 %v577
        %v1299 = vunpack.c.l.b16 %v578
        %v1300 = vunpack.c.h.b16 %v578
        %v1301 = vunpack.c.l.b16 %v579
        %v1302 = vunpack.c.h.b16 %v579
        %v1303 = vunpack.c.l.b16 %v580
        %v1304 = vunpack.c.h.b16 %v580
        %v1305 = vunpack.c.l.b16 %v581
        %v1306 = vunpack.c.h.b16 %v581
        %v1307 = vunpack.c.l.b16 %v582
        %v1308 = vunpack.c.h.b16 %v582
        %v1309 = vunpack.c.l.b16 %v583
        %v1310 = vunpack.c.h.b16 %v583
        %v1311 = vunpack.c.l.b16 %v584
        %v1312 = vunpack.c.h.b16 %v584
        %v1313 = vunpack.c.l.b16 %v585
        %v1314 = vunpack.c.h.b16 %v585
        %v1315 = vunpack.c.l.b16 %v586
        %v1316 = vunpack.c.h.b16 %v586
        %v1317 = vunpack.c.l.b16 %v587
        %v1318 = vunpack.c.h.b16 %v587
        %v1319 = vunpack.c.l.b16 %v588
        %v1320 = vunpack.c.h.b16 %v588
        %v1321 = vunpack.c.l.b16 %v589
        %v1322 = vunpack.c.h.b16 %v589
        %v1323 = vunpack.c.l.b16 %v590
        %v1324 = vunpack.c.h.b16 %v590
        %v1325 = vunpack.c.l.b16 %v591
        %v1326 = vunpack.c.h.b16 %v591
        %v1327 = vunpack.c.l.b16 %v592
        %v1328 = vunpack.c.h.b16 %v592
        %v1329 = vunpack.c.l.b16 %v593
        %v1330 = vunpack.c.h.b16 %v593
        %v1331 = vunpack.c.l.b16 %v594
        %v1332 = vunpack.c.h.b16 %v594
        %v1333 = vunpack.c.l.b16 %v595
        %v1334 = vunpack.c.h.b16 %v595
        %v1335 = vunpack.c.l.b16 %v596
        %v1336 = vunpack.c.h.b16 %v596
        %v1337 = vunpack.c.l.b16 %v597
        %v1338 = vunpack.c.h.b16 %v597
        %v1339 = vunpack.c.l.b16 %v598
        %v1340 = vunpack.c.h.b16 %v598
        %v1341 = vunpack.c.l.b16 %v599
        %v1342 = vunpack.c.h.b16 %v599
        %v1343 = vunpack.c.l.b16 %v600
        %v1344 = vunpack.c.h.b16 %v600
        %v1345 = vunpack.c.l.b16 %v601
        %v1346 = vunpack.c.h.b16 %v601
        %v1347 = vunpack.c.l.b16 %v602
        %v1348 = vunpack.c.h.b16 %v602
        %v1349 = vunpack.c.l.b16 %v603
        %v1350 = vunpack.c.h.b16 %v603
        %v1351 = vunpack.c.l.b16 %v604
        %v1352 = vunpack.c.h.b16 %v604
        %v1353 = vunpack.c.l.b16 %v605
        %v1354 = vunpack.c.h.b16 %v605
        %v1355 = vunpack.c.l.b16 %v606
        %v1356 = vunpack.c.h.b16 %v606
        %v1357 = vunpack.c.l.b16 %v607
        %v1358 = vunpack.c.h.b16 %v607
        %v1359 = vunpack.c.l.b16 %v608
        %v1360 = vunpack.c.h.b16 %v608
        %v1361 = vunpack.c.l.b16 %v609
        %v1362 = vunpack.c.h.b16 %v609
        %v1363 = vunpack.c.l.b16 %v610
        %v1364 = vunpack.c.h.b16 %v610
        %v1365 = vunpack.c.l.b16 %v611
        %v1366 = vunpack.c.h.b16 %v611
        %v1367 = vunpack.c.l.b16 %v612
        %v1368 = vunpack.c.h.b16 %v612
        %v1369 = vunpack.c.l.b16 %v613
        %v1370 = vunpack.c.h.b16 %v613
        %v1371 = vunpack.c.l.b16 %v614
        %v1372 = vunpack.c.h.b16 %v614
        %v1373 = vunpack.c.l.b16 %v615
        %v1374 = vunpack.c.h.b16 %v615
        %v1375 = vunpack.c.l.b16 %v616
        %v1376 = vunpack.c.h.b16 %v616
        %v1377 = vunpack.c.l.b16 %v617
        %v1378 = vunpack.c.h.b16 %v617
        %v1379 = vunpack.c.l.b16 %v618
        %v1380 = vunpack.c.h.b16 %v618
        %v1381 = vunpack.c.l.b16 %v619
        %v1382 = vunpack.c.h.b16 %v619
        %v1383 = vunpack.c.l.b16 %v620
        %v1384 = vunpack.c.h.b16 %v620
        %v1385 = vunpack.c.l.b16 %v621
        %v1386 = vunpack.c.h.b16 %v621
        %v1387 = vunpack.c.l.b16 %v622
        %v1388 = vunpack.c.h.b16 %v622
        %v1389 = vunpack.c.l.b16 %v623
        %v1390 = vunpack.c.h.b16 %v623
        %v1391 = vunpack.c.l.b16 %v624
        %v1392 = vunpack.c.h.b16 %v624
        %v1393 = vunpack.c.l.b16 %v625
        %v1394 = vunpack.c.h.b16 %v625
        %v1395 = vunpack.c.l.b16 %v626
        %v1396 = vunpack.c.h.b16 %v626
        %v1397 = vunpack.c.l.b16 %v627
        %v1398 = vunpack.c.h.b16 %v627
        %v1399 = vunpack.c.l.b16 %v628
        %v1400 = vunpack.c.h.b16 %v628
        %v1401 = vunpack.c.l.b16 %v629
        %v1402 = vunpack.c.h.b16 %v629
        %v1403 = vunpack.c.l.b16 %v630
        %v1404 = vunpack.c.h.b16 %v630
        %v1405 = vunpack.c.l.b16 %v631
        %v1406 = vunpack.c.h.b16 %v631
        %v1407 = vunpack.c.l.b16 %v632
        %v1408 = vunpack.c.h.b16 %v632
        %v1409 = vunpack.c.l.b16 %v633
        %v1410 = vunpack.c.h.b16 %v633
        %v1411 = vunpack.c.l.b16 %v634
        %v1412 = vunpack.c.h.b16 %v634
        %v1413 = vunpack.c.l.b16 %v635
        %v1414 = vunpack.c.h.b16 %v635
        %v1415 = vunpack.c.l.b16 %v636
        %v1416 = vunpack.c.h.b16 %v636
        %v1417 = vunpack.c.l.b16 %v637
        %v1418 = vunpack.c.h.b16 %v637
        %v1419 = vunpack.c.l.b16 %v638
        %v1420 = vunpack.c.h.b16 %v638
        %v1421 = vunpack.c.l.b16 %v639
        %v1422 = vunpack.c.h.b16 %v639
        %v1423 = vunpack.c.l.b16 %v640
        %v1424 = vunpack.c.h.b16 %v640
        %v1425 = vunpack.c.l.b16 %v641
        %v1426 = vunpack.c.h.b16 %v641
        %v1427 = vunpack.c.l.b16 %v642
        %v1428 = vunpack.c.h.b16 %v642
        %v1429 = vunpack.c.l.b16 %v643
        %v1430 = vunpack.c.h.b16 %v643
        %v1431 = vunpack.c.l.b16 %v644
        %v1432 = vunpack.c.h.b16 %v644
        %v1433 = vunpack.c.l.b16 %v645
        %v1434 = vunpack.c.h.b16 %v645
        %v1435 = vunpack.c.l.b16 %v646
        %v1436 = vunpack.c.h.b16 %v646
        %v1437 = vunpack.c.l.b16 %v647
        %v1438 = vunpack.c.h.b16 %v647
        %v1439 = vunpack.c.l.b16 %v648
        %v1440 = vunpack.c.h.b16 %v648
        %v1441 = vunpack.c.l.b16 %v649
        %v1442 = vunpack.c.h.b16 %v649
        %v1443 = vunpack.c.l.b16 %v650
        %v1444 = vunpack.c.h.b16 %v650
        %v1445 = vunpack.c.l.b16 %v651
        %v1446 = vunpack.c.h.b16 %v651
        %v1447 = vunpack.c.l.b16 %v652
        %v1448 = vunpack.c.h.b16 %v652
        %v1449 = vunpack.c.l.b16 %v653
        %v1450 = vunpack.c.h.b16 %v653
        %v1451 = vunpack.c.l.b16 %v654
        %v1452 = vunpack.c.h.b16 %v654
        %v1453 = vunpack.c.l.b16 %v655
        %v1454 = vunpack.c.h.b16 %v655
        %v1455 = vunpack.c.l.b16 %v656
        %v1456 = vunpack.c.h.b16 %v656
        %v1457 = vunpack.c.l.b16 %v657
        %v1458 = vunpack.c.h.b16 %v657
        %v1459 = vunpack.c.l.b16 %v658
        %v1460 = vunpack.c.h.b16 %v658
        %v1461 = vunpack.c.l.b16 %v659
        %v1462 = vunpack.c.h.b16 %v659
        %v1463 = vunpack.c.l.b16 %v660
        %v1464 = vunpack.c.h.b16 %v660
        %v1465 = vunpack.c.l.b16 %v661
        %v1466 = vunpack.c.h.b16 %v661
        %v1467 = vunpack.c.l.b16 %v662
        %v1468 = vunpack.c.h.b16 %v662
        %v1469 = vunpack.c.l.b16 %v663
        %v1470 = vunpack.c.h.b16 %v663
        %v1471 = vunpack.c.l.b16 %v664
        %v1472 = vunpack.c.h.b16 %v664
        %v1473 = vunpack.c.l.b16 %v665
        %v1474 = vunpack.c.h.b16 %v665
        %v1475 = vunpack.c.l.b16 %v666
        %v1476 = vunpack.c.h.b16 %v666
        %v1477 = vunpack.c.l.b16 %v667
        %v1478 = vunpack.c.h.b16 %v667
        %v1479 = vunpack.c.l.b16 %v668
        %v1480 = vunpack.c.h.b16 %v668
        %v1481 = vunpack.c.l.b16 %v669
        %v1482 = vunpack.c.h.b16 %v669
        %v1483 = vunpack.c.l.b16 %v670
        %v1484 = vunpack.c.h.b16 %v670
        %v1485 = vunpack.c.l.b16 %v671
        %v1486 = vunpack.c.h.b16 %v671
        %v1487 = vunpack.c.l.b16 %v672
        %v1488 = vunpack.c.h.b16 %v672
        %v1489 = vunpack.c.l.b16 %v673
        %v1490 = vunpack.c.h.b16 %v673
        %v1491 = vunpack.c.l.b16 %v674
        %v1492 = vunpack.c.h.b16 %v674
        %v1493 = vunpack.c.l.b16 %v675
        %v1494 = vunpack.c.h.b16 %v675
        %v1495 = vunpack.c.l.b16 %v676
        %v1496 = vunpack.c.h.b16 %v676
        %v1497 = vunpack.c.l.b16 %v677
        %v1498 = vunpack.c.h.b16 %v677
        %v1499 = vunpack.c.l.b16 %v678
        %v1500 = vunpack.c.h.b16 %v678
        %v1501 = vunpack.c.l.b16 %v679
        %v1502 = vunpack.c.h.b16 %v679
        %v1503 = vunpack.c.l.b16 %v680
        %v1504 = vunpack.c.h.b16 %v680
        %v1505 = vunpack.c.l.b16 %v681
        %v1506 = vunpack.c.h.b16 %v681
        %v1507 = vunpack.c.l.b16 %v682
        %v1508 = vunpack.c.h.b16 %v682
        %v1509 = vunpack.c.l.b16 %v683
        %v1510 = vunpack.c.h.b16 %v683
        %v1511 = vunpack.c.l.b16 %v684
        %v1512 = vunpack.c.h.b16 %v684
        %v1513 = vunpack.c.l.b16 %v685
        %v1514 = vunpack.c.h.b16 %v685
        %v1515 = vunpack.c.l.b16 %v686
        %v1516 = vunpack.c.h.b16 %v686
        %v1517 = vunpack.c.l.b16 %v687
        %v1518 = vunpack.c.h.b16 %v687
        %v1519 = vunpack.c.l.b16 %v688
        %v1520 = vunpack.c.h.b16 %v688
        %v1521 = vunpack.c.l.b16 %v689
        %v1522 = vunpack.c.h.b16 %v689
        %v1523 = vunpack.c.l.b16 %v690
        %v1524 = vunpack.c.h.b16 %v690
        %v1525 = vunpack.c.l.b16 %v691
        %v1526 = vunpack.c.h.b16 %v691
        %v1527 = vunpack.c.l.b16 %v692
        %v1528 = vunpack.c.h.b16 %v692
        %v1529 = vunpack.c.l.b16 %v693
        %v1530 = vunpack.c.h.b16 %v693
        %v1531 = vunpack.c.l.b16 %v694
        %v1532 = vunpack.c.h.b16 %v694
        %v1533 = vunpack.c.l.b16 %v695
        %v1534 = vunpack.c.h.b16 %v695
        %v1535 = vunpack.c.l.b16 %v696
        %v1536 = vunpack.c.h.b16 %v696
        %v1537 = vunpack.c.l.b16 %v697
        %v1538 = vunpack.c.h.b16 %v697
        %v1539 = vunpack.c.l.b16 %v698
        %v1540 = vunpack.c.h.b16 %v698
        %v1541 = vunpack.c.l.b16 %v699
        %v1542 = vunpack.c.h.b16 %v699
        %v1543 = vunpack.c.l.b16 %v700
        %v1544 = vunpack.c.h.b16 %v700
        %v1545 = vunpack.c.l.b16 %v701
        %v1546 = vunpack.c.h.b16 %v701
        %v1547 = vunpack.c.l.b16 %v702
        %v1548 = vunpack.c.h.b16 %v702
        %v1549 = vunpack.c.l.b16 %v703
        %v1550 = vunpack.c.h.b16 %v703
        %v1551 = vunpack.c.l.b16 %v704
        %v1552 = vunpack.c.h.b16 %v704
        %v1553 = vunpack.c.l.b16 %v705
        %v1554 = vunpack.c.h.b16 %v705
        %v1555 = vunpack.c.l.b16 %v706
        %v1556 = vunpack.c.h.b16 %v706
        %v1557 = vunpack.c.l.b16 %v707
        %v1558 = vunpack.c.h.b16 %v707
        %v1559 = vunpack.c.l.b16 %v708
        %v1560 = vunpack.c.h.b16 %v708
        %v1561 = vunpack.c.l.b16 %v709
        %v1562 = vunpack.c.h.b16 %v709
        %v1563 = vunpack.c.l.b16 %v710
        %v1564 = vunpack.c.h.b16 %v710
        %v1565 = vunpack.c.l.b16 %v711
        %v1566 = vunpack.c.h.b16 %v711
        %v1567 = vunpack.c.l.b16 %v712
        %v1568 = vunpack.c.h.b16 %v712
        %v1569 = vunpack.c.l.b16 %v713
        %v1570 = vunpack.c.h.b16 %v713
        %v1571 = vunpack.c.l.b16 %v714
        %v1572 = vunpack.c.h.b16 %v714
        %v1573 = vunpack.c.l.b16 %v715
        %v1574 = vunpack.c.h.b16 %v715
        %v1575 = vunpack.c.l.b16 %v716
        %v1576 = vunpack.c.h.b16 %v716
        %v1577 = vunpack.c.l.b16 %v717
        %v1578 = vunpack.c.h.b16 %v717
        %v1579 = vunpack.c.l.b16 %v718
        %v1580 = vunpack.c.h.b16 %v718
        %v1581 = vunpack.c.l.b16 %v719
        %v1582 = vunpack.c.h.b16 %v719
        %v1583 = vunpack.c.l.b16 %v720
        %v1584 = vunpack.c.h.b16 %v720
        %v1585 = vunpack.c.l.b16 %v721
        %v1586 = vunpack.c.h.b16 %v721
        %v1587 = vunpack.c.l.b16 %v722
        %v1588 = vunpack.c.h.b16 %v722
        %v1589 = vunpack.c.l.b16 %v723
        %v1590 = vunpack.c.h.b16 %v723
        %v1591 = vunpack.c.l.b16 %v724
        %v1592 = vunpack.c.h.b16 %v724
        %v1593 = vunpack.c.l.b16 %v725
        %v1594 = vunpack.c.h.b16 %v725
        %v1595 = vunpack.c.l.b16 %v726
        %v1596 = vunpack.c.h.b16 %v726
        %v1597 = vunpack.c.l.b16 %v727
        %v1598 = vunpack.c.h.b16 %v727
        %v1599 = vunpack.c.l.b16 %v728
        %v1600 = vunpack.c.h.b16 %v728
        %v1601 = vunpack.c.l.b16 %v729
        %v1602 = vunpack.c.h.b16 %v729
        %v1603 = vunpack.c.l.b16 %v730
        %v1604 = vunpack.c.h.b16 %v730
        %v1605 = vunpack.c.l.b16 %v731
        %v1606 = vunpack.c.h.b16 %v731
        %v1607 = vunpack.c.l.b16 %v732
        %v1608 = vunpack.c.h.b16 %v732
        %v1609 = vunpack.c.l.b16 %v733
        %v1610 = vunpack.c.h.b16 %v733
        %v1611 = vunpack.c.l.b16 %v734
        %v1612 = vunpack.c.h.b16 %v734
        %v1613 = vunpack.c.l.b16 %v735
        %v1614 = vunpack.c.h.b16 %v735
        %v1615 = vunpack.c.l.b16 %v736
        %v1616 = vunpack.c.h.b16 %v736
        %v1617 = vunpack.c.l.b16 %v737
        %v1618 = vunpack.c.h.b16 %v737
        %v1619 = vunpack.c.l.b16 %v738
        %v1620 = vunpack.c.h.b16 %v738
        %v1621 = vunpack.c.l.b16 %v739
        %v1622 = vunpack.c.h.b16 %v739
        %v1623 = vunpack.c.l.b16 %v740
        %v1624 = vunpack.c.h.b16 %v740
        %v1625 = vunpack.c.l.b16 %v741
        %v1626 = vunpack.c.h.b16 %v741
        %v1627 = vunpack.c.l.b16 %v742
        %v1628 = vunpack.c.h.b16 %v742
        %v1629 = vunpack.c.l.b16 %v743
        %v1630 = vunpack.c.h.b16 %v743
        %v1631 = vunpack.c.l.b16 %v744
        %v1632 = vunpack.c.h.b16 %v744
        %v1633 = vunpack.c.l.b16 %v745
        %v1634 = vunpack.c.h.b16 %v745
        %v1635 = vunpack.c.l.b16 %v746
        %v1636 = vunpack.c.h.b16 %v746
        %v1637 = vunpack.c.l.b16 %v747
        %v1638 = vunpack.c.h.b16 %v747
        %v1639 = vunpack.c.l.b16 %v748
        %v1640 = vunpack.c.h.b16 %v748
        %v1641 = vunpack.c.l.b16 %v749
        %v1642 = vunpack.c.h.b16 %v749
        %v1643 = vunpack.c.l.b16 %v750
        %v1644 = vunpack.c.h.b16 %v750
        %v1645 = vunpack.c.l.b16 %v751
        %v1646 = vunpack.c.h.b16 %v751
        %v1647 = vunpack.c.l.b16 %v752
        %v1648 = vunpack.c.h.b16 %v752
        %v1649 = vunpack.c.l.b16 %v753
        %v1650 = vunpack.c.h.b16 %v753
        %v1651 = vunpack.c.l.b16 %v754
        %v1652 = vunpack.c.h.b16 %v754
        %v1653 = vunpack.c.l.b16 %v755
        %v1654 = vunpack.c.h.b16 %v755
        %v1655 = vunpack.c.l.b16 %v756
        %v1656 = vunpack.c.h.b16 %v756
        %v1657 = vunpack.c.l.b16 %v757
        %v1658 = vunpack.c.h.b16 %v757
        %v1659 = vunpack.c.l.b16 %v758
        %v1660 = vunpack.c.h.b16 %v758
        %v1661 = vunpack.c.l.b16 %v759
        %v1662 = vunpack.c.h.b16 %v759
        %v1663 = vunpack.c.l.b16 %v760
        %v1664 = vunpack.c.h.b16 %v760
        %v1665 = vunpack.c.l.b16 %v761
        %v1666 = vunpack.c.h.b16 %v761
        %v1667 = vunpack.c.l.b16 %v762
        %v1668 = vunpack.c.h.b16 %v762
        %v1669 = vunpack.c.l.b16 %v763
        %v1670 = vunpack.c.h.b16 %v763
        %v1671 = vunpack.c.l.b16 %v764
        %v1672 = vunpack.c.h.b16 %v764
        %v1673 = vunpack.c.l.b16 %v765
        %v1674 = vunpack.c.h.b16 %v765
        %v1675 = vunpack.c.l.b16 %v766
        %v1676 = vunpack.c.h.b16 %v766
        %v1677 = vunpack.c.l.b16 %v767
        %v1678 = vunpack.c.h.b16 %v767
        %v1679 = vunpack.c.l.b16 %v768
        %v1680 = vunpack.c.h.b16 %v768
        %v1681 = vunpack.c.l.b16 %v769
        %v1682 = vunpack.c.h.b16 %v769
        %v1683 = vunpack.c.l.b16 %v770
        %v1684 = vunpack.c.h.b16 %v770
        %v1685 = vunpack.c.l.b16 %v771
        %v1686 = vunpack.c.h.b16 %v771
        %v1687 = vunpack.c.l.b16 %v772
        %v1688 = vunpack.c.h.b16 %v772
        %v1689 = vunpack.c.l.b16 %v773
        %v1690 = vunpack.c.h.b16 %v773
        %v1691 = vunpack.c.l.b16 %v774
        %v1692 = vunpack.c.h.b16 %v774
        %v1693 = vunpack.c.l.b16 %v775
        %v1694 = vunpack.c.h.b16 %v775
        %v1695 = vunpack.c.l.b16 %v776
        %v1696 = vunpack.c.h.b16 %v776
        %v1697 = vunpack.c.l.b16 %v777
        %v1698 = vunpack.c.h.b16 %v777
        %v1699 = vunpack.c.l.b16 %v778
        %v1700 = vunpack.c.h.b16 %v778
        %v1701 = vunpack.c.l.b16 %v779
        %v1702 = vunpack.c.h.b16 %v779
        %v1703 = vunpack.c.l.b16 %v780
        %v1704 = vunpack.c.h.b16 %v780
        %v1705 = vunpack.c.l.b16 %v781
        %v1706 = vunpack.c.h.b16 %v781
        %v1707 = vunpack.c.l.b16 %v782
        %v1708 = vunpack.c.h.b16 %v782
        %v1709 = vunpack.c.l.b16 %v783
        %v1710 = vunpack.c.h.b16 %v783
        %v1711 = vunpack.c.l.b16 %v784
        %v1712 = vunpack.c.h.b16 %v784
        %v1713 = vunpack.c.l.b16 %v785
        %v1714 = vunpack.c.h.b16 %v785
        %v1715 = vunpack.c.l.b16 %v786
        %v1716 = vunpack.c.h.b16 %v786
        %v1717 = vunpack.c.l.b16 %v787
        %v1718 = vunpack.c.h.b16 %v787
        %v1719 = vpack.c.b16 %v1211, %v1207
        %v1720 = vpack.c.b16 %v1212, %v1208
        %v1721 = vpack.c.b16 %v1213, %v1209
        %v1722 = vpack.c.b16 %v1214, %v1210
        %v1723 = vpack.c.b16 %v1219, %v1215
        %v1724 = vpack.c.b16 %v1220, %v1216
        %v1725 = vpack.c.b16 %v1221, %v1217
        %v1726 = vpack.c.b16 %v1222, %v1218
        %v1727 = vpack.c.b16 %v1227, %v1223
        %v1728 = vpack.c.b16 %v1228, %v1224
        %v1729 = vpack.c.b16 %v1229, %v1225
        %v1730 = vpack.c.b16 %v1230, %v1226
        %v1731 = vpack.c.b16 %v1235, %v1231
        %v1732 = vpack.c.b16 %v1236, %v1232
        %v1733 = vpack.c.b16 %v1237, %v1233
        %v1734 = vpack.c.b16 %v1238, %v1234
        %v1735 = vpack.c.b16 %v1243, %v1239
        %v1736 = vpack.c.b16 %v1244, %v1240
        %v1737 = vpack.c.b16 %v1245, %v1241
        %v1738 = vpack.c.b16 %v1246, %v1242
        %v1739 = vpack.c.b16 %v1251, %v1247
        %v1740 = vpack.c.b16 %v1252, %v1248
        %v1741 = vpack.c.b16 %v1253, %v1249
        %v1742 = vpack.c.b16 %v1254, %v1250
        %v1743 = vpack.c.b16 %v1259, %v1255
        %v1744 = vpack.c.b16 %v1260, %v1256
        %v1745 = vpack.c.b16 %v1261, %v1257
        %v1746 = vpack.c.b16 %v1262, %v1258
        %v1747 = vpack.c.b16 %v1267, %v1263
        %v1748 = vpack.c.b16 %v1268, %v1264
        %v1749 = vpack.c.b16 %v1269, %v1265
        %v1750 = vpack.c.b16 %v1270, %v1266
        %v1751 = vpack.c.b16 %v1275, %v1271
        %v1752 = vpack.c.b16 %v1276, %v1272
        %v1753 = vpack.c.b16 %v1277, %v1273
        %v1754 = vpack.c.b16 %v1278, %v1274
        %v1755 = vpack.c.b16 %v1283, %v1279
        %v1756 = vpack.c.b16 %v1284, %v1280
        %v1757 = vpack.c.b16 %v1285, %v1281
        %v1758 = vpack.c.b16 %v1286, %v1282
        %v1759 = vpack.c.b16 %v1291, %v1287
        %v1760 = vpack.c.b16 %v1292, %v1288
        %v1761 = vpack.c.b16 %v1293, %v1289
        %v1762 = vpack.c.b16 %v1294, %v1290
        %v1763 = vpack.c.b16 %v1299, %v1295
        %v1764 = vpack.c.b16 %v1300, %v1296
        %v1765 = vpack.c.b16 %v1301, %v1297
        %v1766 = vpack.c.b16 %v1302, %v1298
        %v1767 = vpack.c.b16 %v1307, %v1303
        %v1768 = vpack.c.b16 %v1308, %v1304
        %v1769 = vpack.c.b16 %v1309, %v1305
        %v1770 = vpack.c.b16 %v1310, %v1306
        %v1771 = vpack.c.b16 %v1315, %v1311
        %v1772 = vpack.c.b16 %v1316, %v1312
        %v1773 = vpack.c.b16 %v1317, %v1313
        %v1774 = vpack.c.b16 %v1318, %v1314
        %v1775 = vpack.c.b16 %v1323, %v1319
        %v1776 = vpack.c.b16 %v1324, %v1320
        %v1777 = vpack.c.b16 %v1325, %v1321
        %v1778 = vpack.c.b16 %v1326, %v1322
        %v1779 = vpack.c.b16 %v1331, %v1327
        %v1780 = vpack.c.b16 %v1332, %v1328
        %v1781 = vpack.c.b16 %v1333, %v1329
        %v1782 = vpack.c.b16 %v1334, %v1330
        %v1783 = vpack.c.b16 %v1339, %v1335
        %v1784 = vpack.c.b16 %v1340, %v1336
        %v1785 = vpack.c.b16 %v1341, %v1337
        %v1786 = vpack.c.b16 %v1342, %v1338
        %v1787 = vpack.c.b16 %v1347, %v1343
        %v1788 = vpack.c.b16 %v1348, %v1344
        %v1789 = vpack.c.b16 %v1349, %v1345
        %v1790 = vpack.c.b16 %v1350, %v1346
        %v1791 = vpack.c.b16 %v1355, %v1351
        %v1792 = vpack.c.b16 %v1356, %v1352
        %v1793 = vpack.c.b16 %v1357, %v1353
        %v1794 = vpack.c.b16 %v1358, %v1354
        %v1795 = vpack.c.b16 %v1363, %v1359
        %v1796 = vpack.c.b16 %v1364, %v1360
        %v1797 = vpack.c.b16 %v1365, %v1361
        %v1798 = vpack.c.b16 %v1366, %v1362
        %v1799 = vpack.c.b16 %v1371, %v1367
        %v1800 = vpack.c.b16 %v1372, %v1368
        %v1801 = vpack.c.b16 %v1373, %v1369
        %v1802 = vpack.c.b16 %v1374, %v1370
        %v1803 = vpack.c.b16 %v1379, %v1375
        %v1804 = vpack.c.b16 %v1380, %v1376
        %v1805 = vpack.c.b16 %v1381, %v1377
        %v1806 = vpack.c.b16 %v1382, %v1378
        %v1807 = vpack.c.b16 %v1387, %v1383
        %v1808 = vpack.c.b16 %v1388, %v1384
        %v1809 = vpack.c.b16 %v1389, %v1385
        %v1810 = vpack.c.b16 %v1390, %v1386
        %v1811 = vpack.c.b16 %v1395, %v1391
        %v1812 = vpack.c.b16 %v1396, %v1392
        %v1813 = vpack.c.b16 %v1397, %v1393
        %v1814 = vpack.c.b16 %v1398, %v1394
        %v1815 = vpack.c.b16 %v1403, %v1399
        %v1816 = vpack.c.b16 %v1404, %v1400
        %v1817 = vpack.c.b16 %v1405, %v1401
        %v1818 = vpack.c.b16 %v1406, %v1402
        %v1819 = vpack.c.b16 %v1411, %v1407
        %v1820 = vpack.c.b16 %v1412, %v1408
        %v1821 = vpack.c.b16 %v1413, %v1409
        %v1822 = vpack.c.b16 %v1414, %v1410
        %v1823 = vpack.c.b16 %v1419, %v1415
        %v1824 = vpack.c.b16 %v1420, %v1416
        %v1825 = vpack.c.b16 %v1421, %v1417
        %v1826 = vpack.c.b16 %v1422, %v1418
        %v1827 = vpack.c.b16 %v1427, %v1423
        %v1828 = vpack.c.b16 %v1428, %v1424
        %v1829 = vpack.c.b16 %v1429, %v1425
        %v1830 = vpack.c.b16 %v1430, %v1426
        %v1831 = vpack.c.b16 %v1435, %v1431
        %v1832 = vpack.c.b16 %v1436, %v1432
        %v1833 = vpack.c.b16 %v1437, %v1433
        %v1834 = vpack.c.b16 %v1438, %v1434
        %v1835 = vpack.c.b16 %v1443, %v1439
        %v1836 = vpack.c.b16 %v1444, %v1440
        %v1837 = vpack.c.b16 %v1445, %v1441
        %v1838 = vpack.c.b16 %v1446, %v1442
        %v1839 = vpack.c.b16 %v1451, %v1447
        %v1840 = vpack.c.b16 %v1452, %v1448
        %v1841 = vpack.c.b16 %v1453, %v1449
        %v1842 = vpack.c.b16 %v1454, %v1450
        %v1843 = vpack.c.b16 %v1459, %v1455
        %v1844 = vpack.c.b16 %v1460, %v1456
        %v1845 = vpack.c.b16 %v1461, %v1457
        %v1846 = vpack.c.b16 %v1462, %v1458
        %v1847 = vpack.c.b16 %v1467, %v1463
        %v1848 = vpack.c.b16 %v1468, %v1464
        %v1849 = vpack.c.b16 %v1469, %v1465
        %v1850 = vpack.c.b16 %v1470, %v1466
        %v1851 = vpack.c.b16 %v1475, %v1471
        %v1852 = vpack.c.b16 %v1476, %v1472
        %v1853 = vpack.c.b16 %v1477, %v1473
        %v1854 = vpack.c.b16 %v1478, %v1474
        %v1855 = vpack.c.b16 %v1483, %v1479
        %v1856 = vpack.c.b16 %v1484, %v1480
        %v1857 = vpack.c.b16 %v1485, %v1481
        %v1858 = vpack.c.b16 %v1486, %v1482
        %v1859 = vpack.c.b16 %v1491, %v1487
        %v1860 = vpack.c.b16 %v1492, %v1488
        %v1861 = vpack.c.b16 %v1493, %v1489
        %v1862 = vpack.c.b16 %v1494, %v1490
        %v1863 = vpack.c.b16 %v1499, %v1495
        %v1864 = vpack.c.b16 %v1500, %v1496
        %v1865 = vpack.c.b16 %v1501, %v1497
        %v1866 = vpack.c.b16 %v1502, %v1498
        %v1867 = vpack.c.b16 %v1507, %v1503
        %v1868 = vpack.c.b16 %v1508, %v1504
        %v1869 = vpack.c.b16 %v1509, %v1505
        %v1870 = vpack.c.b16 %v1510, %v1506
        %v1871 = vpack.c.b16 %v1515, %v1511
        %v1872 = vpack.c.b16 %v1516, %v1512
        %v1873 = vpack.c.b16 %v1517, %v1513
        %v1874 = vpack.c.b16 %v1518, %v1514
        %v1875 = vpack.c.b16 %v1523, %v1519
        %v1876 = vpack.c.b16 %v1524, %v1520
        %v1877 = vpack.c.b16 %v1525, %v1521
        %v1878 = vpack.c.b16 %v1526, %v1522
        %v1879 = vpack.c.b16 %v1531, %v1527
        %v1880 = vpack.c.b16 %v1532, %v1528
        %v1881 = vpack.c.b16 %v1533, %v1529
        %v1882 = vpack.c.b16 %v1534, %v1530
        %v1883 = vpack.c.b16 %v1539, %v1535
        %v1884 = vpack.c.b16 %v1540, %v1536
        %v1885 = vpack.c.b16 %v1541, %v1537
        %v1886 = vpack.c.b16 %v1542, %v1538
        %v1887 = vpack.c.b16 %v1547, %v1543
        %v1888 = vpack.c.b16 %v1548, %v1544
        %v1889 = vpack.c.b16 %v1549, %v1545
        %v1890 = vpack.c.b16 %v1550, %v1546
        %v1891 = vpack.c.b16 %v1555, %v1551
        %v1892 = vpack.c.b16 %v1556, %v1552
        %v1893 = vpack.c.b16 %v1557, %v1553
        %v1894 = vpack.c.b16 %v1558, %v1554
        %v1895 = vpack.c.b16 %v1563, %v1559
        %v1896 = vpack.c.b16 %v1564, %v1560
        %v1897 = vpack.c.b16 %v1565, %v1561
        %v1898 = vpack.c.b16 %v1566, %v1562
        %v1899 = vpack.c.b16 %v1571, %v1567
        %v1900 = vpack.c.b16 %v1572, %v1568
        %v1901 = vpack.c.b16 %v1573, %v1569
        %v1902 = vpack.c.b16 %v1574, %v1570
        %v1903 = vpack.c.b16 %v1579, %v1575
        %v1904 = vpack.c.b16 %v1580, %v1576
        %v1905 = vpack.c.b16 %v1581, %v1577
        %v1906 = vpack.c.b16 %v1582, %v1578
        %v1907 = vpack.c.b16 %v1587, %v1583
        %v1908 = vpack.c.b16 %v1588, %v1584
        %v1909 = vpack.c.b16 %v1589, %v1585
        %v1910 = vpack.c.b16 %v1590, %v1586
        %v1911 = vpack.c.b16 %v1595, %v1591
        %v1912 = vpack.c.b16 %v1596, %v1592
        %v1913 = vpack.c.b16 %v1597, %v1593
        %v1914 = vpack.c.b16 %v1598, %v1594
        %v1915 = vpack.c.b16 %v1603, %v1599
        %v1916 = vpack.c.b16 %v1604, %v1600
        %v1917 = vpack.c.b16 %v1605, %v1601
        %v1918 = vpack.c.b16 %v1606, %v1602
        %v1919 = vpack.c.b16 %v1611, %v1607
        %v1920 = vpack.c.b16 %v1612, %v1608
        %v1921 = vpack.c.b16 %v1613, %v1609
        %v1922 = vpack.c.b16 %v1614, %v1610
        %v1923 = vpack.c.b16 %v1619, %v1615
        %v1924 = vpack.c.b16 %v1620, %v1616
        %v1925 = vpack.c.b16 %v1621, %v1617
        %v1926 = vpack.c.b16 %v1622, %v1618
        %v1927 = vpack.c.b16 %v1627, %v1623
        %v1928 = vpack.c.b16 %v1628, %v1624
        %v1929 = vpack.c.b16 %v1629, %v1625
        %v1930 = vpack.c.b16 %v1630, %v1626
        %v1931 = vpack.c.b16 %v1635, %v1631
        %v1932 = vpack.c.b16 %v1636, %v1632
        %v1933 = vpack.c.b16 %v1637, %v1633
        %v1934 = vpack.c.b16 %v1638, %v1634
        %v1935 = vpack.c.b16 %v1643, %v1639
        %v1936 = vpack.c.b16 %v1644, %v1640
        %v1937 = vpack.c.b16 %v1645, %v1641
        %v1938 = vpack.c.b16 %v1646, %v1642
        %v1939 = vpack.c.b16 %v1651, %v1647
        %v1940 = vpack.c.b16 %v1652, %v1648
        %v1941 = vpack.c.b16 %v1653, %v1649
        %v1942 = vpack.c.b16 %v1654, %v1650
        %v1943 = vpack.c.b16 %v1659, %v1655
        %v1944 = vpack.c.b16 %v1660, %v1656
        %v1945 = vpack.c.b16 %v1661, %v1657
        %v1946 = vpack.c.b16 %v1662, %v1658
        %v1947 = vpack.c.b16 %v1667, %v1663
        %v1948 = vpack.c.b16 %v1668, %v1664
        %v1949 = vpack.c.b16 %v1669, %v1665
        %v1950 = vpack.c.b16 %v1670, %v1666
        %v1951 = vpack.c.b16 %v1675, %v1671
        %v1952 = vpack.c.b16 %v1676, %v1672
        %v1953 = vpack.c.b16 %v1677, %v1673
        %v1954 = vpack.c.b16 %v1678, %v1674
        %v1955 = vpack.c.b16 %v1683, %v1679
        %v1956 = vpack.c.b16 %v1684, %v1680
        %v1957 = vpack.c.b16 %v1685, %v1681
        %v1958 = vpack.c.b16 %v1686, %v1682
        %v1959 = vpack.c.b16 %v1691, %v1687
        %v1960 = vpack.c.b16 %v1692, %v1688
        %v1961 = vpack.c.b16 %v1693, %v1689
        %v1962 = vpack.c.b16 %v1694, %v1690
        %v1963 = vpack.c.b16 %v1699, %v1695
        %v1964 = vpack.c.b16 %v1700, %v1696
        %v1965 = vpack.c.b16 %v1701, %v1697
        %v1966 = vpack.c.b16 %v1702, %v1698
        %v1967 = vpack.c.b16 %v1707, %v1703
        %v1968 = vpack.c.b16 %v1708, %v1704
        %v1969 = vpack.c.b16 %v1709, %v1705
        %v1970 = vpack.c.b16 %v1710, %v1706
        %v1971 = vpack.c.b16 %v1715, %v1711
        %v1972 = vpack.c.b16 %v1716, %v1712
        %v1973 = vpack.c.b16 %v1717, %v1713
        %v1974 = vpack.c.b16 %v1718, %v1714
        %2231 = vmatprep.subr.bf16.mxu0 %v1720
        %2232 = vmatpush1.bf16.msra.mxu0 %v1719
        %2233 = vmatprep.subr.bf16.mxu0 %v1724
        %2234 = vmatpush1.bf16.msra.mxu0 %v1723
        %2235 = vmatprep.subr.bf16.mxu0 %v1728
        %2236 = vmatpush1.bf16.msra.mxu0 %v1727
        %2237 = vmatprep.subr.bf16.mxu0 %v1732
        %2238 = vmatpush1.bf16.msra.mxu0 %v1731
        %2239 = vmatprep.subr.bf16.mxu0 %v1736
        %2240 = vmatpush1.bf16.msra.mxu0 %v1735
        %2241 = vmatprep.subr.bf16.mxu0 %v1740
        %2242 = vmatpush1.bf16.msra.mxu0 %v1739
        %2243 = vmatprep.subr.bf16.mxu0 %v1744
        %2244 = vmatpush1.bf16.msra.mxu0 %v1743
        %2245 = vmatprep.subr.bf16.mxu0 %v1748
        %2246 = vmatpush1.bf16.msra.mxu0 %v1747
        %2247 = vmatprep.subr.bf16.mxu0 %v1752
        %2248 = vmatpush1.bf16.msra.mxu0 %v1751
        %2249 = vmatprep.subr.bf16.mxu0 %v1756
        %2250 = vmatpush1.bf16.msra.mxu0 %v1755
        %2251 = vmatprep.subr.bf16.mxu0 %v1760
        %2252 = vmatpush1.bf16.msra.mxu0 %v1759
        %2253 = vmatprep.subr.bf16.mxu0 %v1764
        %2254 = vmatpush1.bf16.msra.mxu0 %v1763
        %2255 = vmatprep.subr.bf16.mxu0 %v1768
        %2256 = vmatpush1.bf16.msra.mxu0 %v1767
        %2257 = vmatprep.subr.bf16.mxu0 %v1772
        %2258 = vmatpush1.bf16.msra.mxu0 %v1771
        %2259 = vmatprep.subr.bf16.mxu0 %v1776
        %2260 = vmatpush1.bf16.msra.mxu0 %v1775
        %2261 = vmatprep.subr.bf16.mxu0 %v1780
        %2262 = vmatpush1.bf16.msra.mxu0 %v1779
        %2263 = vmatprep.mubr.bf16.mxu0 %v936
        %2264 = vmatmul.mubr.bf16.gmra.mrb[0].mxu0 %v935
        %v2265 = vpop.f32.mrb[0].mxu0
        %v2266 = vadd.f32 %v876, %v2265
        %v2267 = vpop.f32.mrb[0].mxu0
        %v2268 = vadd.f32 %v878, %v2267
        %v2269 = vpop.f32.mrb[0].mxu0
        %v2270 = vpop.f32.mrb[0].mxu0
        %2271 = vdwg.mxu0
        %2272 = vmatprep.subr.bf16.mxu0 %v1784
        %2273 = vmatpush1.bf16.msra.mxu0 %v1783
        %2274 = vmatprep.subr.bf16.mxu0 %v1788
        %2275 = vmatpush1.bf16.msra.mxu0 %v1787
        %2276 = vmatprep.subr.bf16.mxu0 %v1792
        %2277 = vmatpush1.bf16.msra.mxu0 %v1791
        %2278 = vmatprep.subr.bf16.mxu0 %v1796
        %2279 = vmatpush1.bf16.msra.mxu0 %v1795
        %2280 = vmatprep.subr.bf16.mxu0 %v1800
        %2281 = vmatpush1.bf16.msra.mxu0 %v1799
        %2282 = vmatprep.subr.bf16.mxu0 %v1804
        %2283 = vmatpush1.bf16.msra.mxu0 %v1803
        %2284 = vmatprep.subr.bf16.mxu0 %v1808
        %2285 = vmatpush1.bf16.msra.mxu0 %v1807
        %2286 = vmatprep.subr.bf16.mxu0 %v1812
        %2287 = vmatpush1.bf16.msra.mxu0 %v1811
        %2288 = vmatprep.subr.bf16.mxu0 %v1816
        %2289 = vmatpush1.bf16.msra.mxu0 %v1815
        %2290 = vmatprep.subr.bf16.mxu0 %v1820
        %2291 = vmatpush1.bf16.msra.mxu0 %v1819
        %2292 = vmatprep.subr.bf16.mxu0 %v1824
        %2293 = vmatpush1.bf16.msra.mxu0 %v1823
        %2294 = vmatprep.subr.bf16.mxu0 %v1828
        %2295 = vmatpush1.bf16.msra.mxu0 %v1827
        %2296 = vmatprep.subr.bf16.mxu0 %v1832
        %2297 = vmatpush1.bf16.msra.mxu0 %v1831
        %2298 = vmatprep.subr.bf16.mxu0 %v1836
        %2299 = vmatpush1.bf16.msra.mxu0 %v1835
        %2300 = vmatprep.subr.bf16.mxu0 %v1840
        %2301 = vmatpush1.bf16.msra.mxu0 %v1839
        %2302 = vmatprep.subr.bf16.mxu0 %v1844
        %2303 = vmatpush1.bf16.msra.mxu0 %v1843
        %2304 = vmatprep.mubr.bf16.mxu0 %v938
        %2305 = vmatmul.mubr.bf16.gmra.mrb[0].mxu0 %v937
        %v2306 = vpop.f32.mrb[0].mxu0
        %v2307 = vadd.f32 %v2266, %v2306
        %v2308 = vpop.f32.mrb[0].mxu0
        %v2309 = vadd.f32 %v2268, %v2308
        %v2310 = vpop.f32.mrb[0].mxu0
        %v2311 = vpop.f32.mrb[0].mxu0
        %2312 = vdwg.mxu0
        %2313 = vmatprep.subr.bf16.mxu0 %v1848
        %2314 = vmatpush1.bf16.msra.mxu0 %v1847
        %2315 = vmatprep.subr.bf16.mxu0 %v1852
        %2316 = vmatpush1.bf16.msra.mxu0 %v1851
        %2317 = vmatprep.subr.bf16.mxu0 %v1856
        %2318 = vmatpush1.bf16.msra.mxu0 %v1855
        %2319 = vmatprep.subr.bf16.mxu0 %v1860
        %2320 = vmatpush1.bf16.msra.mxu0 %v1859
        %2321 = vmatprep.subr.bf16.mxu0 %v1864
        %2322 = vmatpush1.bf16.msra.mxu0 %v1863
        %2323 = vmatprep.subr.bf16.mxu0 %v1868
        %2324 = vmatpush1.bf16.msra.mxu0 %v1867
        %2325 = vmatprep.subr.bf16.mxu0 %v1872
        %2326 = vmatpush1.bf16.msra.mxu0 %v1871
        %2327 = vmatprep.subr.bf16.mxu0 %v1876
        %2328 = vmatpush1.bf16.msra.mxu0 %v1875
        %2329 = vmatprep.subr.bf16.mxu0 %v1880
        %2330 = vmatpush1.bf16.msra.mxu0 %v1879
        %2331 = vmatprep.subr.bf16.mxu0 %v1884
        %2332 = vmatpush1.bf16.msra.mxu0 %v1883
        %2333 = vmatprep.subr.bf16.mxu0 %v1888
        %2334 = vmatpush1.bf16.msra.mxu0 %v1887
        %2335 = vmatprep.subr.bf16.mxu0 %v1892
        %2336 = vmatpush1.bf16.msra.mxu0 %v1891
        %2337 = vmatprep.subr.bf16.mxu0 %v1896
        %2338 = vmatpush1.bf16.msra.mxu0 %v1895
        %2339 = vmatprep.subr.bf16.mxu0 %v1900
        %2340 = vmatpush1.bf16.msra.mxu0 %v1899
        %2341 = vmatprep.subr.bf16.mxu0 %v1904
        %2342 = vmatpush1.bf16.msra.mxu0 %v1903
        %2343 = vmatprep.subr.bf16.mxu0 %v1908
        %2344 = vmatpush1.bf16.msra.mxu0 %v1907
        %2345 = vmatprep.mubr.bf16.mxu0 %v940
        %2346 = vmatmul.mubr.bf16.gmra.mrb[0].mxu0 %v939
        %v2347 = vpop.f32.mrb[0].mxu0
        %v2348 = vadd.f32 %v2307, %v2347
        %v2349 = vpop.f32.mrb[0].mxu0
        %v2350 = vadd.f32 %v2309, %v2349
        %v2351 = vpop.f32.mrb[0].mxu0
        %v2352 = vpop.f32.mrb[0].mxu0
        %2353 = vdwg.mxu0
        %2354 = vmatprep.subr.bf16.mxu0 %v1912
        %2355 = vmatpush1.bf16.msra.mxu0 %v1911
        %2356 = vmatprep.subr.bf16.mxu0 %v1916
        %2357 = vmatpush1.bf16.msra.mxu0 %v1915
        %2358 = vmatprep.subr.bf16.mxu0 %v1920
        %2359 = vmatpush1.bf16.msra.mxu0 %v1919
        %2360 = vmatprep.subr.bf16.mxu0 %v1924
        %2361 = vmatpush1.bf16.msra.mxu0 %v1923
        %2362 = vmatprep.subr.bf16.mxu0 %v1928
        %2363 = vmatpush1.bf16.msra.mxu0 %v1927
        %2364 = vmatprep.subr.bf16.mxu0 %v1932
        %2365 = vmatpush1.bf16.msra.mxu0 %v1931
        %2366 = vmatprep.subr.bf16.mxu0 %v1936
        %2367 = vmatpush1.bf16.msra.mxu0 %v1935
        %2368 = vmatprep.subr.bf16.mxu0 %v1940
        %2369 = vmatpush1.bf16.msra.mxu0 %v1939
        %2370 = vmatprep.subr.bf16.mxu0 %v1944
        %2371 = vmatpush1.bf16.msra.mxu0 %v1943
        %2372 = vmatprep.subr.bf16.mxu0 %v1948
        %2373 = vmatpush1.bf16.msra.mxu0 %v1947
        %2374 = vmatprep.subr.bf16.mxu0 %v1952
        %2375 = vmatpush1.bf16.msra.mxu0 %v1951
        %2376 = vmatprep.subr.bf16.mxu0 %v1956
        %2377 = vmatpush1.bf16.msra.mxu0 %v1955
        %2378 = vmatprep.subr.bf16.mxu0 %v1960
        %2379 = vmatpush1.bf16.msra.mxu0 %v1959
        %2380 = vmatprep.subr.bf16.mxu0 %v1964
        %2381 = vmatpush1.bf16.msra.mxu0 %v1963
        %2382 = vmatprep.subr.bf16.mxu0 %v1968
        %2383 = vmatpush1.bf16.msra.mxu0 %v1967
        %2384 = vmatprep.subr.bf16.mxu0 %v1972
        %2385 = vmatpush1.bf16.msra.mxu0 %v1971
        %2386 = vmatprep.mubr.bf16.mxu0 %v942
        %2387 = vmatmul.mubr.bf16.gmra.mrb[0].mxu0 %v941
        %v2388 = vpop.f32.mrb[0].mxu0
        %v2389 = vadd.f32 %v2348, %v2388
        %v2390 = vpop.f32.mrb[0].mxu0
        %v2391 = vadd.f32 %v2350, %v2390
        %v2392 = vpop.f32.mrb[0].mxu0
        %v2393 = vpop.f32.mrb[0].mxu0
        %2394 = vdwg.mxu0
        %2395 = vmatprep.subr.bf16.mxu0 %v1722
        %2396 = vmatpush1.bf16.msra.mxu0 %v1721
        %2397 = vmatprep.subr.bf16.mxu0 %v1726
        %2398 = vmatpush1.bf16.msra.mxu0 %v1725
        %2399 = vmatprep.subr.bf16.mxu0 %v1730
        %2400 = vmatpush1.bf16.msra.mxu0 %v1729
        %2401 = vmatprep.subr.bf16.mxu0 %v1734
        %2402 = vmatpush1.bf16.msra.mxu0 %v1733
        %2403 = vmatprep.subr.bf16.mxu0 %v1738
        %2404 = vmatpush1.bf16.msra.mxu0 %v1737
        %2405 = vmatprep.subr.bf16.mxu0 %v1742
        %2406 = vmatpush1.bf16.msra.mxu0 %v1741
        %2407 = vmatprep.subr.bf16.mxu0 %v1746
        %2408 = vmatpush1.bf16.msra.mxu0 %v1745
        %2409 = vmatprep.subr.bf16.mxu0 %v1750
        %2410 = vmatpush1.bf16.msra.mxu0 %v1749
        %2411 = vmatprep.subr.bf16.mxu0 %v1754
        %2412 = vmatpush1.bf16.msra.mxu0 %v1753
        %2413 = vmatprep.subr.bf16.mxu0 %v1758
        %2414 = vmatpush1.bf16.msra.mxu0 %v1757
        %2415 = vmatprep.subr.bf16.mxu0 %v1762
        %2416 = vmatpush1.bf16.msra.mxu0 %v1761
        %2417 = vmatprep.subr.bf16.mxu0 %v1766
        %2418 = vmatpush1.bf16.msra.mxu0 %v1765
        %2419 = vmatprep.subr.bf16.mxu0 %v1770
        %2420 = vmatpush1.bf16.msra.mxu0 %v1769
        %2421 = vmatprep.subr.bf16.mxu0 %v1774
        %2422 = vmatpush1.bf16.msra.mxu0 %v1773
        %2423 = vmatprep.subr.bf16.mxu0 %v1778
        %2424 = vmatpush1.bf16.msra.mxu0 %v1777
        %2425 = vmatprep.subr.bf16.mxu0 %v1782
        %2426 = vmatpush1.bf16.msra.mxu0 %v1781
        %2427 = vmatprep.mubr.bf16.mxu0 %v936
        %2428 = vmatmul.mubr.bf16.gmra.mrb[0].mxu0 %v935
        %v2429 = vpop.f32.mrb[0].mxu0
        %v2430 = vadd.f32 %v917, %v2429
        %v2431 = vpop.f32.mrb[0].mxu0
        %v2432 = vadd.f32 %v919, %v2431
        %v2433 = vpop.f32.mrb[0].mxu0
        %v2434 = vpop.f32.mrb[0].mxu0
        %2435 = vdwg.mxu0
        %2436 = vmatprep.subr.bf16.mxu0 %v1786
        %2437 = vmatpush1.bf16.msra.mxu0 %v1785
        %2438 = vmatprep.subr.bf16.mxu0 %v1790
        %2439 = vmatpush1.bf16.msra.mxu0 %v1789
        %2440 = vmatprep.subr.bf16.mxu0 %v1794
        %2441 = vmatpush1.bf16.msra.mxu0 %v1793
        %2442 = vmatprep.subr.bf16.mxu0 %v1798
        %2443 = vmatpush1.bf16.msra.mxu0 %v1797
        %2444 = vmatprep.subr.bf16.mxu0 %v1802
        %2445 = vmatpush1.bf16.msra.mxu0 %v1801
        %2446 = vmatprep.subr.bf16.mxu0 %v1806
        %2447 = vmatpush1.bf16.msra.mxu0 %v1805
        %2448 = vmatprep.subr.bf16.mxu0 %v1810
        %2449 = vmatpush1.bf16.msra.mxu0 %v1809
        %2450 = vmatprep.subr.bf16.mxu0 %v1814
        %2451 = vmatpush1.bf16.msra.mxu0 %v1813
        %2452 = vmatprep.subr.bf16.mxu0 %v1818
        %2453 = vmatpush1.bf16.msra.mxu0 %v1817
        %2454 = vmatprep.subr.bf16.mxu0 %v1822
        %2455 = vmatpush1.bf16.msra.mxu0 %v1821
        %2456 = vmatprep.subr.bf16.mxu0 %v1826
        %2457 = vmatpush1.bf16.msra.mxu0 %v1825
        %2458 = vmatprep.subr.bf16.mxu0 %v1830
        %2459 = vmatpush1.bf16.msra.mxu0 %v1829
        %2460 = vmatprep.subr.bf16.mxu0 %v1834
        %2461 = vmatpush1.bf16.msra.mxu0 %v1833
        %2462 = vmatprep.subr.bf16.mxu0 %v1838
        %2463 = vmatpush1.bf16.msra.mxu0 %v1837
        %2464 = vmatprep.subr.bf16.mxu0 %v1842
        %2465 = vmatpush1.bf16.msra.mxu0 %v1841
        %2466 = vmatprep.subr.bf16.mxu0 %v1846
        %2467 = vmatpush1.bf16.msra.mxu0 %v1845
        %2468 = vmatprep.mubr.bf16.mxu0 %v938
        %2469 = vmatmul.mubr.bf16.gmra.mrb[0].mxu0 %v937
        %v2470 = vpop.f32.mrb[0].mxu0
        %v2471 = vadd.f32 %v2430, %v2470
        %v2472 = vpop.f32.mrb[0].mxu0
        %v2473 = vadd.f32 %v2432, %v2472
        %v2474 = vpop.f32.mrb[0].mxu0
        %v2475 = vpop.f32.mrb[0].mxu0
        %2476 = vdwg.mxu0
        %2477 = vmatprep.subr.bf16.mxu0 %v1850
        %2478 = vmatpush1.bf16.msra.mxu0 %v1849
        %2479 = vmatprep.subr.bf16.mxu0 %v1854
        %2480 = vmatpush1.bf16.msra.mxu0 %v1853
        %2481 = vmatprep.subr.bf16.mxu0 %v1858
        %2482 = vmatpush1.bf16.msra.mxu0 %v1857
        %2483 = vmatprep.subr.bf16.mxu0 %v1862
        %2484 = vmatpush1.bf16.msra.mxu0 %v1861
        %2485 = vmatprep.subr.bf16.mxu0 %v1866
        %2486 = vmatpush1.bf16.msra.mxu0 %v1865
        %2487 = vmatprep.subr.bf16.mxu0 %v1870
        %2488 = vmatpush1.bf16.msra.mxu0 %v1869
        %2489 = vmatprep.subr.bf16.mxu0 %v1874
        %2490 = vmatpush1.bf16.msra.mxu0 %v1873
        %2491 = vmatprep.subr.bf16.mxu0 %v1878
        %2492 = vmatpush1.bf16.msra.mxu0 %v1877
        %2493 = vmatprep.subr.bf16.mxu0 %v1882
        %2494 = vmatpush1.bf16.msra.mxu0 %v1881
        %2495 = vmatprep.subr.bf16.mxu0 %v1886
        %2496 = vmatpush1.bf16.msra.mxu0 %v1885
        %2497 = vmatprep.subr.bf16.mxu0 %v1890
        %2498 = vmatpush1.bf16.msra.mxu0 %v1889
        %2499 = vmatprep.subr.bf16.mxu0 %v1894
        %2500 = vmatpush1.bf16.msra.mxu0 %v1893
        %2501 = vmatprep.subr.bf16.mxu0 %v1898
        %2502 = vmatpush1.bf16.msra.mxu0 %v1897
        %2503 = vmatprep.subr.bf16.mxu0 %v1902
        %2504 = vmatpush1.bf16.msra.mxu0 %v1901
        %2505 = vmatprep.subr.bf16.mxu0 %v1906
        %2506 = vmatpush1.bf16.msra.mxu0 %v1905
        %2507 = vmatprep.subr.bf16.mxu0 %v1910
        %2508 = vmatpush1.bf16.msra.mxu0 %v1909
        %2509 = vmatprep.mubr.bf16.mxu0 %v940
        %2510 = vmatmul.mubr.bf16.gmra.mrb[0].mxu0 %v939
        %v2511 = vpop.f32.mrb[0].mxu0
        %v2512 = vadd.f32 %v2471, %v2511
        %v2513 = vpop.f32.mrb[0].mxu0
        %v2514 = vadd.f32 %v2473, %v2513
        %v2515 = vpop.f32.mrb[0].mxu0
        %v2516 = vpop.f32.mrb[0].mxu0
        %2517 = vdwg.mxu0
        %2518 = vmatprep.subr.bf16.mxu0 %v1914
        %2519 = vmatpush1.bf16.msra.mxu0 %v1913
        %2520 = vmatprep.subr.bf16.mxu0 %v1918
        %2521 = vmatpush1.bf16.msra.mxu0 %v1917
        %2522 = vmatprep.subr.bf16.mxu0 %v1922
        %2523 = vmatpush1.bf16.msra.mxu0 %v1921
        %2524 = vmatprep.subr.bf16.mxu0 %v1926
        %2525 = vmatpush1.bf16.msra.mxu0 %v1925
        %2526 = vmatprep.subr.bf16.mxu0 %v1930
        %2527 = vmatpush1.bf16.msra.mxu0 %v1929
        %2528 = vmatprep.subr.bf16.mxu0 %v1934
        %2529 = vmatpush1.bf16.msra.mxu0 %v1933
        %2530 = vmatprep.subr.bf16.mxu0 %v1938
        %2531 = vmatpush1.bf16.msra.mxu0 %v1937
        %2532 = vmatprep.subr.bf16.mxu0 %v1942
        %2533 = vmatpush1.bf16.msra.mxu0 %v1941
        %2534 = vmatprep.subr.bf16.mxu0 %v1946
        %2535 = vmatpush1.bf16.msra.mxu0 %v1945
        %2536 = vmatprep.subr.bf16.mxu0 %v1950
        %2537 = vmatpush1.bf16.msra.mxu0 %v1949
        %2538 = vmatprep.subr.bf16.mxu0 %v1954
        %2539 = vmatpush1.bf16.msra.mxu0 %v1953
        %2540 = vmatprep.subr.bf16.mxu0 %v1958
        %2541 = vmatpush1.bf16.msra.mxu0 %v1957
        %2542 = vmatprep.subr.bf16.mxu0 %v1962
        %2543 = vmatpush1.bf16.msra.mxu0 %v1961
        %2544 = vmatprep.subr.bf16.mxu0 %v1966
        %2545 = vmatpush1.bf16.msra.mxu0 %v1965
        %2546 = vmatprep.subr.bf16.mxu0 %v1970
        %2547 = vmatpush1.bf16.msra.mxu0 %v1969
        %2548 = vmatprep.subr.bf16.mxu0 %v1974
        %2549 = vmatpush1.bf16.msra.mxu0 %v1973
        %2550 = vmatprep.mubr.bf16.mxu0 %v942
        %2551 = vmatmul.mubr.bf16.gmra.mrb[0].mxu0 %v941
        %v2552 = vpop.f32.mrb[0].mxu0
        %v2553 = vadd.f32 %v2512, %v2552
        %v2554 = vpop.f32.mrb[0].mxu0
        %v2555 = vadd.f32 %v2514, %v2554
        %v2556 = vpop.f32.mrb[0].mxu0
        %v2557 = vpop.f32.mrb[0].mxu0
        %2558 = vdwg.mxu0
        %v2559 = vld [vmem:[%s445] sm:$0xf]
        %v2561 = vlaneseq
        %v2562 = vshrl.u32 %v2561, 7
        %v2563 = vsub.s32 0, %v2562
        %v2564 = vrot.slane %v2559, %v2563
        %v2565 = vlaneseq
        %v2566 = vshrl.u32 %v2565, 7
        %v2567 = vsub.s32 1, %v2566
        %v2568 = vrot.slane %v2559, %v2567
        %v2569 = vlaneseq
        %v2570 = vshrl.u32 %v2569, 7
        %v2571 = vsub.s32 2, %v2570
        %v2572 = vrot.slane %v2559, %v2571
        %v2573 = vlaneseq
        %v2574 = vshrl.u32 %v2573, 7
        %v2575 = vsub.s32 3, %v2574
        %v2576 = vrot.slane %v2559, %v2575
        %v2581 = vadd.f32 %v2389, %v2564
        %v2582 = vadd.f32 %v2391, %v2568
        %v2583 = vadd.f32 %v2553, %v2572
        %v2584 = vadd.f32 %v2555, %v2576
        %v2585 = vmax.f32 %v2581, 0.0
        %v2586 = vmax.f32 %v2582, 0.0
        %v2587 = vmax.f32 %v2583, 0.0
        %v2588 = vmax.f32 %v2584, 0.0
        %v2589 = vpack.c.bf16 %v2585, %v2585
        %v2590 = vpack.c.bf16 %v2586, %v2586
        %v2591 = vpack.c.bf16 %v2587, %v2587
        %v2592 = vpack.c.bf16 %v2588, %v2588
        %v2593 = vld [vmem:[#allocation2] sm:$0xff]
        %v2594 = vld [vmem:[#allocation2 + $0x8] sm:$0xff]
        %v2595 = vld [vmem:[#allocation2 + $0x10] sm:$0xff]
        %v2596 = vld [vmem:[#allocation2 + $0x18] sm:$0xff]
        %v2597 = vld [vmem:[#allocation2 + $0x20] sm:$0xff]
        %v2598 = vld [vmem:[#allocation2 + $0x28] sm:$0xff]
        %v2599 = vld [vmem:[#allocation2 + $0x30] sm:$0xff]
        %v2600 = vld [vmem:[#allocation2 + $0x38] sm:$0xff]
        %v2601 = vld [vmem:[%s454] sm:$0xff]
        %v2602 = vld [vmem:[%s454 + $0x8] sm:$0xff]
        %v2603 = vld [vmem:[%s454 + $0x10] sm:$0xff]
        %v2604 = vld [vmem:[%s454 + $0x18] sm:$0xff]
        %v2605 = vld [vmem:[%s454 + $0x20] sm:$0xff]
        %v2606 = vld [vmem:[%s454 + $0x28] sm:$0xff]
        %v2607 = vld [vmem:[%s454 + $0x30] sm:$0xff]
        %v2608 = vld [vmem:[%s454 + $0x38] sm:$0xff]
        %v2609 = vld [vmem:[%s454 + $0x40] sm:$0xff]
        %v2610 = vld [vmem:[%s454 + $0x48] sm:$0xff]
        %v2611 = vld [vmem:[%s454 + $0x50] sm:$0xff]
        %v2612 = vld [vmem:[%s454 + $0x58] sm:$0xff]
        %v2613 = vld [vmem:[%s454 + $0x60] sm:$0xff]
        %v2614 = vld [vmem:[%s454 + $0x68] sm:$0xff]
        %v2615 = vld [vmem:[%s454 + $0x70] sm:$0xff]
        %v2616 = vld [vmem:[%s454 + $0x78] sm:$0xff]
        %v2617 = vld [vmem:[%s454 + $0x80] sm:$0xff]
        %v2618 = vld [vmem:[%s454 + $0x88] sm:$0xff]
        %v2619 = vld [vmem:[%s454 + $0x90] sm:$0xff]
        %v2620 = vld [vmem:[%s454 + $0x98] sm:$0xff]
        %v2621 = vld [vmem:[%s454 + $0xa0] sm:$0xff]
        %v2622 = vld [vmem:[%s454 + $0xa8] sm:$0xff]
        %v2623 = vld [vmem:[%s454 + $0xb0] sm:$0xff]
        %v2624 = vld [vmem:[%s454 + $0xb8] sm:$0xff]
        %v2625 = vld [vmem:[%s454 + $0xc0] sm:$0xff]
        %v2626 = vld [vmem:[%s454 + $0xc8] sm:$0xff]
        %v2627 = vld [vmem:[%s454 + $0xd0] sm:$0xff]
        %v2628 = vld [vmem:[%s454 + $0xd8] sm:$0xff]
        %v2629 = vld [vmem:[%s454 + $0xe0] sm:$0xff]
        %v2630 = vld [vmem:[%s454 + $0xe8] sm:$0xff]
        %v2631 = vld [vmem:[%s454 + $0xf0] sm:$0xff]
        %v2632 = vld [vmem:[%s454 + $0xf8] sm:$0xff]
        %v2633 = vld [vmem:[%s454 + $0x100] sm:$0xff]
        %v2634 = vld [vmem:[%s454 + $0x108] sm:$0xff]
        %v2635 = vld [vmem:[%s454 + $0x110] sm:$0xff]
        %v2636 = vld [vmem:[%s454 + $0x118] sm:$0xff]
        %v2637 = vld [vmem:[%s454 + $0x120] sm:$0xff]
        %v2638 = vld [vmem:[%s454 + $0x128] sm:$0xff]
        %v2639 = vld [vmem:[%s454 + $0x130] sm:$0xff]
        %v2640 = vld [vmem:[%s454 + $0x138] sm:$0xff]
        %v2641 = vld [vmem:[%s454 + $0x140] sm:$0xff]
        %v2642 = vld [vmem:[%s454 + $0x148] sm:$0xff]
        %v2643 = vld [vmem:[%s454 + $0x150] sm:$0xff]
        %v2644 = vld [vmem:[%s454 + $0x158] sm:$0xff]
        %v2645 = vld [vmem:[%s454 + $0x160] sm:$0xff]
        %v2646 = vld [vmem:[%s454 + $0x168] sm:$0xff]
        %v2647 = vld [vmem:[%s454 + $0x170] sm:$0xff]
        %v2648 = vld [vmem:[%s454 + $0x178] sm:$0xff]
        %v2649 = vld [vmem:[%s454 + $0x180] sm:$0xff]
        %v2650 = vld [vmem:[%s454 + $0x188] sm:$0xff]
        %v2651 = vld [vmem:[%s454 + $0x190] sm:$0xff]
        %v2652 = vld [vmem:[%s454 + $0x198] sm:$0xff]
        %v2653 = vld [vmem:[%s454 + $0x1a0] sm:$0xff]
        %v2654 = vld [vmem:[%s454 + $0x1a8] sm:$0xff]
        %v2655 = vld [vmem:[%s454 + $0x1b0] sm:$0xff]
        %v2656 = vld [vmem:[%s454 + $0x1b8] sm:$0xff]
        %v2657 = vld [vmem:[%s454 + $0x1c0] sm:$0xff]
        %v2658 = vld [vmem:[%s454 + $0x1c8] sm:$0xff]
        %v2659 = vld [vmem:[%s454 + $0x1d0] sm:$0xff]
        %v2660 = vld [vmem:[%s454 + $0x1d8] sm:$0xff]
        %v2661 = vld [vmem:[%s454 + $0x1e0] sm:$0xff]
        %v2662 = vld [vmem:[%s454 + $0x1e8] sm:$0xff]
        %v2663 = vld [vmem:[%s454 + $0x1f0] sm:$0xff]
        %v2664 = vld [vmem:[%s454 + $0x1f8] sm:$0xff]
        %v2665 = vld [vmem:[%s454 + $0x200] sm:$0xff]
        %v2666 = vld [vmem:[%s454 + $0x208] sm:$0xff]
        %v2667 = vld [vmem:[%s454 + $0x210] sm:$0xff]
        %v2668 = vld [vmem:[%s454 + $0x218] sm:$0xff]
        %v2669 = vld [vmem:[%s454 + $0x220] sm:$0xff]
        %v2670 = vld [vmem:[%s454 + $0x228] sm:$0xff]
        %v2671 = vld [vmem:[%s454 + $0x230] sm:$0xff]
        %v2672 = vld [vmem:[%s454 + $0x238] sm:$0xff]
        %v2673 = vld [vmem:[%s454 + $0x240] sm:$0xff]
        %v2674 = vld [vmem:[%s454 + $0x248] sm:$0xff]
        %v2675 = vld [vmem:[%s454 + $0x250] sm:$0xff]
        %v2676 = vld [vmem:[%s454 + $0x258] sm:$0xff]
        %v2677 = vld [vmem:[%s454 + $0x260] sm:$0xff]
        %v2678 = vld [vmem:[%s454 + $0x268] sm:$0xff]
        %v2679 = vld [vmem:[%s454 + $0x270] sm:$0xff]
        %v2680 = vld [vmem:[%s454 + $0x278] sm:$0xff]
        %v2681 = vld [vmem:[%s454 + $0x280] sm:$0xff]
        %v2682 = vld [vmem:[%s454 + $0x288] sm:$0xff]
        %v2683 = vld [vmem:[%s454 + $0x290] sm:$0xff]
        %v2684 = vld [vmem:[%s454 + $0x298] sm:$0xff]
        %v2685 = vld [vmem:[%s454 + $0x2a0] sm:$0xff]
        %v2686 = vld [vmem:[%s454 + $0x2a8] sm:$0xff]
        %v2687 = vld [vmem:[%s454 + $0x2b0] sm:$0xff]
        %v2688 = vld [vmem:[%s454 + $0x2b8] sm:$0xff]
        %v2689 = vld [vmem:[%s454 + $0x2c0] sm:$0xff]
        %v2690 = vld [vmem:[%s454 + $0x2c8] sm:$0xff]
        %v2691 = vld [vmem:[%s454 + $0x2d0] sm:$0xff]
        %v2692 = vld [vmem:[%s454 + $0x2d8] sm:$0xff]
        %v2693 = vld [vmem:[%s454 + $0x2e0] sm:$0xff]
        %v2694 = vld [vmem:[%s454 + $0x2e8] sm:$0xff]
        %v2695 = vld [vmem:[%s454 + $0x2f0] sm:$0xff]
        %v2696 = vld [vmem:[%s454 + $0x2f8] sm:$0xff]
        %v2697 = vld [vmem:[%s454 + $0x300] sm:$0xff]
        %v2698 = vld [vmem:[%s454 + $0x308] sm:$0xff]
        %v2699 = vld [vmem:[%s454 + $0x310] sm:$0xff]
        %v2700 = vld [vmem:[%s454 + $0x318] sm:$0xff]
        %v2701 = vld [vmem:[%s454 + $0x320] sm:$0xff]
        %v2702 = vld [vmem:[%s454 + $0x328] sm:$0xff]
        %v2703 = vld [vmem:[%s454 + $0x330] sm:$0xff]
        %v2704 = vld [vmem:[%s454 + $0x338] sm:$0xff]
        %v2705 = vld [vmem:[%s454 + $0x340] sm:$0xff]
        %v2706 = vld [vmem:[%s454 + $0x348] sm:$0xff]
        %v2707 = vld [vmem:[%s454 + $0x350] sm:$0xff]
        %v2708 = vld [vmem:[%s454 + $0x358] sm:$0xff]
        %v2709 = vld [vmem:[%s454 + $0x360] sm:$0xff]
        %v2710 = vld [vmem:[%s454 + $0x368] sm:$0xff]
        %v2711 = vld [vmem:[%s454 + $0x370] sm:$0xff]
        %v2712 = vld [vmem:[%s454 + $0x378] sm:$0xff]
        %v2713 = vld [vmem:[%s454 + $0x380] sm:$0xff]
        %v2714 = vld [vmem:[%s454 + $0x388] sm:$0xff]
        %v2715 = vld [vmem:[%s454 + $0x390] sm:$0xff]
        %v2716 = vld [vmem:[%s454 + $0x398] sm:$0xff]
        %v2717 = vld [vmem:[%s454 + $0x3a0] sm:$0xff]
        %v2718 = vld [vmem:[%s454 + $0x3a8] sm:$0xff]
        %v2719 = vld [vmem:[%s454 + $0x3b0] sm:$0xff]
        %v2720 = vld [vmem:[%s454 + $0x3b8] sm:$0xff]
        %v2721 = vld [vmem:[%s454 + $0x3c0] sm:$0xff]
        %v2722 = vld [vmem:[%s454 + $0x3c8] sm:$0xff]
        %v2723 = vld [vmem:[%s454 + $0x3d0] sm:$0xff]
        %v2724 = vld [vmem:[%s454 + $0x3d8] sm:$0xff]
        %v2725 = vld [vmem:[%s454 + $0x3e0] sm:$0xff]
        %v2726 = vld [vmem:[%s454 + $0x3e8] sm:$0xff]
        %v2727 = vld [vmem:[%s454 + $0x3f0] sm:$0xff]
        %v2728 = vld [vmem:[%s454 + $0x3f8] sm:$0xff]
        %v2729 = vld [vmem:[%s454 + $0x400] sm:$0xff]
        %v2730 = vld [vmem:[%s454 + $0x408] sm:$0xff]
        %v2731 = vld [vmem:[%s454 + $0x410] sm:$0xff]
        %v2732 = vld [vmem:[%s454 + $0x418] sm:$0xff]
        %v2733 = vld [vmem:[%s454 + $0x420] sm:$0xff]
        %v2734 = vld [vmem:[%s454 + $0x428] sm:$0xff]
        %v2735 = vld [vmem:[%s454 + $0x430] sm:$0xff]
        %v2736 = vld [vmem:[%s454 + $0x438] sm:$0xff]
        %v2737 = vld [vmem:[%s454 + $0x440] sm:$0xff]
        %v2738 = vld [vmem:[%s454 + $0x448] sm:$0xff]
        %v2739 = vld [vmem:[%s454 + $0x450] sm:$0xff]
        %v2740 = vld [vmem:[%s454 + $0x458] sm:$0xff]
        %v2741 = vld [vmem:[%s454 + $0x460] sm:$0xff]
        %v2742 = vld [vmem:[%s454 + $0x468] sm:$0xff]
        %v2743 = vld [vmem:[%s454 + $0x470] sm:$0xff]
        %v2744 = vld [vmem:[%s454 + $0x478] sm:$0xff]
        %v2745 = vld [vmem:[%s454 + $0x480] sm:$0xff]
        %v2746 = vld [vmem:[%s454 + $0x488] sm:$0xff]
        %v2747 = vld [vmem:[%s454 + $0x490] sm:$0xff]
        %v2748 = vld [vmem:[%s454 + $0x498] sm:$0xff]
        %v2749 = vld [vmem:[%s454 + $0x4a0] sm:$0xff]
        %v2750 = vld [vmem:[%s454 + $0x4a8] sm:$0xff]
        %v2751 = vld [vmem:[%s454 + $0x4b0] sm:$0xff]
        %v2752 = vld [vmem:[%s454 + $0x4b8] sm:$0xff]
        %v2753 = vld [vmem:[%s454 + $0x4c0] sm:$0xff]
        %v2754 = vld [vmem:[%s454 + $0x4c8] sm:$0xff]
        %v2755 = vld [vmem:[%s454 + $0x4d0] sm:$0xff]
        %v2756 = vld [vmem:[%s454 + $0x4d8] sm:$0xff]
        %v2757 = vld [vmem:[%s454 + $0x4e0] sm:$0xff]
        %v2758 = vld [vmem:[%s454 + $0x4e8] sm:$0xff]
        %v2759 = vld [vmem:[%s454 + $0x4f0] sm:$0xff]
        %v2760 = vld [vmem:[%s454 + $0x4f8] sm:$0xff]
        %v2761 = vld [vmem:[%s454 + $0x500] sm:$0xff]
        %v2762 = vld [vmem:[%s454 + $0x508] sm:$0xff]
        %v2763 = vld [vmem:[%s454 + $0x510] sm:$0xff]
        %v2764 = vld [vmem:[%s454 + $0x518] sm:$0xff]
        %v2765 = vld [vmem:[%s454 + $0x520] sm:$0xff]
        %v2766 = vld [vmem:[%s454 + $0x528] sm:$0xff]
        %v2767 = vld [vmem:[%s454 + $0x530] sm:$0xff]
        %v2768 = vld [vmem:[%s454 + $0x538] sm:$0xff]
        %v2769 = vld [vmem:[%s454 + $0x540] sm:$0xff]
        %v2770 = vld [vmem:[%s454 + $0x548] sm:$0xff]
        %v2771 = vld [vmem:[%s454 + $0x550] sm:$0xff]
        %v2772 = vld [vmem:[%s454 + $0x558] sm:$0xff]
        %v2773 = vld [vmem:[%s454 + $0x560] sm:$0xff]
        %v2774 = vld [vmem:[%s454 + $0x568] sm:$0xff]
        %v2775 = vld [vmem:[%s454 + $0x570] sm:$0xff]
        %v2776 = vld [vmem:[%s454 + $0x578] sm:$0xff]
        %v2777 = vld [vmem:[%s454 + $0x580] sm:$0xff]
        %v2778 = vld [vmem:[%s454 + $0x588] sm:$0xff]
        %v2779 = vld [vmem:[%s454 + $0x590] sm:$0xff]
        %v2780 = vld [vmem:[%s454 + $0x598] sm:$0xff]
        %v2781 = vld [vmem:[%s454 + $0x5a0] sm:$0xff]
        %v2782 = vld [vmem:[%s454 + $0x5a8] sm:$0xff]
        %v2783 = vld [vmem:[%s454 + $0x5b0] sm:$0xff]
        %v2784 = vld [vmem:[%s454 + $0x5b8] sm:$0xff]
        %v2785 = vld [vmem:[%s454 + $0x5c0] sm:$0xff]
        %v2786 = vld [vmem:[%s454 + $0x5c8] sm:$0xff]
        %v2787 = vld [vmem:[%s454 + $0x5d0] sm:$0xff]
        %v2788 = vld [vmem:[%s454 + $0x5d8] sm:$0xff]
        %v2789 = vld [vmem:[%s454 + $0x5e0] sm:$0xff]
        %v2790 = vld [vmem:[%s454 + $0x5e8] sm:$0xff]
        %v2791 = vld [vmem:[%s454 + $0x5f0] sm:$0xff]
        %v2792 = vld [vmem:[%s454 + $0x5f8] sm:$0xff]
        %v2793 = vld [vmem:[%s454 + $0x600] sm:$0xff]
        %v2794 = vld [vmem:[%s454 + $0x608] sm:$0xff]
        %v2795 = vld [vmem:[%s454 + $0x610] sm:$0xff]
        %v2796 = vld [vmem:[%s454 + $0x618] sm:$0xff]
        %v2797 = vld [vmem:[%s454 + $0x620] sm:$0xff]
        %v2798 = vld [vmem:[%s454 + $0x628] sm:$0xff]
        %v2799 = vld [vmem:[%s454 + $0x630] sm:$0xff]
        %v2800 = vld [vmem:[%s454 + $0x638] sm:$0xff]
        %v2801 = vld [vmem:[%s454 + $0x640] sm:$0xff]
        %v2802 = vld [vmem:[%s454 + $0x648] sm:$0xff]
        %v2803 = vld [vmem:[%s454 + $0x650] sm:$0xff]
        %v2804 = vld [vmem:[%s454 + $0x658] sm:$0xff]
        %v2805 = vld [vmem:[%s454 + $0x660] sm:$0xff]
        %v2806 = vld [vmem:[%s454 + $0x668] sm:$0xff]
        %v2807 = vld [vmem:[%s454 + $0x670] sm:$0xff]
        %v2808 = vld [vmem:[%s454 + $0x678] sm:$0xff]
        %v2809 = vld [vmem:[%s454 + $0x680] sm:$0xff]
        %v2810 = vld [vmem:[%s454 + $0x688] sm:$0xff]
        %v2811 = vld [vmem:[%s454 + $0x690] sm:$0xff]
        %v2812 = vld [vmem:[%s454 + $0x698] sm:$0xff]
        %v2813 = vld [vmem:[%s454 + $0x6a0] sm:$0xff]
        %v2814 = vld [vmem:[%s454 + $0x6a8] sm:$0xff]
        %v2815 = vld [vmem:[%s454 + $0x6b0] sm:$0xff]
        %v2816 = vld [vmem:[%s454 + $0x6b8] sm:$0xff]
        %v2817 = vld [vmem:[%s454 + $0x6c0] sm:$0xff]
        %v2818 = vld [vmem:[%s454 + $0x6c8] sm:$0xff]
        %v2819 = vld [vmem:[%s454 + $0x6d0] sm:$0xff]
        %v2820 = vld [vmem:[%s454 + $0x6d8] sm:$0xff]
        %v2821 = vld [vmem:[%s454 + $0x6e0] sm:$0xff]
        %v2822 = vld [vmem:[%s454 + $0x6e8] sm:$0xff]
        %v2823 = vld [vmem:[%s454 + $0x6f0] sm:$0xff]
        %v2824 = vld [vmem:[%s454 + $0x6f8] sm:$0xff]
        %v2825 = vld [vmem:[%s454 + $0x700] sm:$0xff]
        %v2826 = vld [vmem:[%s454 + $0x708] sm:$0xff]
        %v2827 = vld [vmem:[%s454 + $0x710] sm:$0xff]
        %v2828 = vld [vmem:[%s454 + $0x718] sm:$0xff]
        %v2829 = vld [vmem:[%s454 + $0x720] sm:$0xff]
        %v2830 = vld [vmem:[%s454 + $0x728] sm:$0xff]
        %v2831 = vld [vmem:[%s454 + $0x730] sm:$0xff]
        %v2832 = vld [vmem:[%s454 + $0x738] sm:$0xff]
        %v2833 = vld [vmem:[%s454 + $0x740] sm:$0xff]
        %v2834 = vld [vmem:[%s454 + $0x748] sm:$0xff]
        %v2835 = vld [vmem:[%s454 + $0x750] sm:$0xff]
        %v2836 = vld [vmem:[%s454 + $0x758] sm:$0xff]
        %v2837 = vld [vmem:[%s454 + $0x760] sm:$0xff]
        %v2838 = vld [vmem:[%s454 + $0x768] sm:$0xff]
        %v2839 = vld [vmem:[%s454 + $0x770] sm:$0xff]
        %v2840 = vld [vmem:[%s454 + $0x778] sm:$0xff]
        %v2841 = vld [vmem:[%s454 + $0x780] sm:$0xff]
        %v2842 = vld [vmem:[%s454 + $0x788] sm:$0xff]
        %v2843 = vld [vmem:[%s454 + $0x790] sm:$0xff]
        %v2844 = vld [vmem:[%s454 + $0x798] sm:$0xff]
        %v2845 = vld [vmem:[%s454 + $0x7a0] sm:$0xff]
        %v2846 = vld [vmem:[%s454 + $0x7a8] sm:$0xff]
        %v2847 = vld [vmem:[%s454 + $0x7b0] sm:$0xff]
        %v2848 = vld [vmem:[%s454 + $0x7b8] sm:$0xff]
        %v2849 = vld [vmem:[%s454 + $0x7c0] sm:$0xff]
        %v2850 = vld [vmem:[%s454 + $0x7c8] sm:$0xff]
        %v2851 = vld [vmem:[%s454 + $0x7d0] sm:$0xff]
        %v2852 = vld [vmem:[%s454 + $0x7d8] sm:$0xff]
        %v2853 = vld [vmem:[%s454 + $0x7e0] sm:$0xff]
        %v2854 = vld [vmem:[%s454 + $0x7e8] sm:$0xff]
        %v2855 = vld [vmem:[%s454 + $0x7f0] sm:$0xff]
        %v2856 = vld [vmem:[%s454 + $0x7f8] sm:$0xff]
        %v3113 = vunpack.c.l.b16 %v2601
        %v3114 = vunpack.c.h.b16 %v2601
        %v3115 = vunpack.c.l.b16 %v2602
        %v3116 = vunpack.c.h.b16 %v2602
        %v3117 = vunpack.c.l.b16 %v2603
        %v3118 = vunpack.c.h.b16 %v2603
        %v3119 = vunpack.c.l.b16 %v2604
        %v3120 = vunpack.c.h.b16 %v2604
        %v3121 = vunpack.c.l.b16 %v2605
        %v3122 = vunpack.c.h.b16 %v2605
        %v3123 = vunpack.c.l.b16 %v2606
        %v3124 = vunpack.c.h.b16 %v2606
        %v3125 = vunpack.c.l.b16 %v2607
        %v3126 = vunpack.c.h.b16 %v2607
        %v3127 = vunpack.c.l.b16 %v2608
        %v3128 = vunpack.c.h.b16 %v2608
        %v3129 = vunpack.c.l.b16 %v2609
        %v3130 = vunpack.c.h.b16 %v2609
        %v3131 = vunpack.c.l.b16 %v2610
        %v3132 = vunpack.c.h.b16 %v2610
        %v3133 = vunpack.c.l.b16 %v2611
        %v3134 = vunpack.c.h.b16 %v2611
        %v3135 = vunpack.c.l.b16 %v2612
        %v3136 = vunpack.c.h.b16 %v2612
        %v3137 = vunpack.c.l.b16 %v2613
        %v3138 = vunpack.c.h.b16 %v2613
        %v3139 = vunpack.c.l.b16 %v2614
        %v3140 = vunpack.c.h.b16 %v2614
        %v3141 = vunpack.c.l.b16 %v2615
        %v3142 = vunpack.c.h.b16 %v2615
        %v3143 = vunpack.c.l.b16 %v2616
        %v3144 = vunpack.c.h.b16 %v2616
        %v3145 = vunpack.c.l.b16 %v2617
        %v3146 = vunpack.c.h.b16 %v2617
        %v3147 = vunpack.c.l.b16 %v2618
        %v3148 = vunpack.c.h.b16 %v2618
        %v3149 = vunpack.c.l.b16 %v2619
        %v3150 = vunpack.c.h.b16 %v2619
        %v3151 = vunpack.c.l.b16 %v2620
        %v3152 = vunpack.c.h.b16 %v2620
        %v3153 = vunpack.c.l.b16 %v2621
        %v3154 = vunpack.c.h.b16 %v2621
        %v3155 = vunpack.c.l.b16 %v2622
        %v3156 = vunpack.c.h.b16 %v2622
        %v3157 = vunpack.c.l.b16 %v2623
        %v3158 = vunpack.c.h.b16 %v2623
        %v3159 = vunpack.c.l.b16 %v2624
        %v3160 = vunpack.c.h.b16 %v2624
        %v3161 = vunpack.c.l.b16 %v2625
        %v3162 = vunpack.c.h.b16 %v2625
        %v3163 = vunpack.c.l.b16 %v2626
        %v3164 = vunpack.c.h.b16 %v2626
        %v3165 = vunpack.c.l.b16 %v2627
        %v3166 = vunpack.c.h.b16 %v2627
        %v3167 = vunpack.c.l.b16 %v2628
        %v3168 = vunpack.c.h.b16 %v2628
        %v3169 = vunpack.c.l.b16 %v2629
        %v3170 = vunpack.c.h.b16 %v2629
        %v3171 = vunpack.c.l.b16 %v2630
        %v3172 = vunpack.c.h.b16 %v2630
        %v3173 = vunpack.c.l.b16 %v2631
        %v3174 = vunpack.c.h.b16 %v2631
        %v3175 = vunpack.c.l.b16 %v2632
        %v3176 = vunpack.c.h.b16 %v2632
        %v3177 = vunpack.c.l.b16 %v2633
        %v3178 = vunpack.c.h.b16 %v2633
        %v3179 = vunpack.c.l.b16 %v2634
        %v3180 = vunpack.c.h.b16 %v2634
        %v3181 = vunpack.c.l.b16 %v2635
        %v3182 = vunpack.c.h.b16 %v2635
        %v3183 = vunpack.c.l.b16 %v2636
        %v3184 = vunpack.c.h.b16 %v2636
        %v3185 = vunpack.c.l.b16 %v2637
        %v3186 = vunpack.c.h.b16 %v2637
        %v3187 = vunpack.c.l.b16 %v2638
        %v3188 = vunpack.c.h.b16 %v2638
        %v3189 = vunpack.c.l.b16 %v2639
        %v3190 = vunpack.c.h.b16 %v2639
        %v3191 = vunpack.c.l.b16 %v2640
        %v3192 = vunpack.c.h.b16 %v2640
        %v3193 = vunpack.c.l.b16 %v2641
        %v3194 = vunpack.c.h.b16 %v2641
        %v3195 = vunpack.c.l.b16 %v2642
        %v3196 = vunpack.c.h.b16 %v2642
        %v3197 = vunpack.c.l.b16 %v2643
        %v3198 = vunpack.c.h.b16 %v2643
        %v3199 = vunpack.c.l.b16 %v2644
        %v3200 = vunpack.c.h.b16 %v2644
        %v3201 = vunpack.c.l.b16 %v2645
        %v3202 = vunpack.c.h.b16 %v2645
        %v3203 = vunpack.c.l.b16 %v2646
        %v3204 = vunpack.c.h.b16 %v2646
        %v3205 = vunpack.c.l.b16 %v2647
        %v3206 = vunpack.c.h.b16 %v2647
        %v3207 = vunpack.c.l.b16 %v2648
        %v3208 = vunpack.c.h.b16 %v2648
        %v3209 = vunpack.c.l.b16 %v2649
        %v3210 = vunpack.c.h.b16 %v2649
        %v3211 = vunpack.c.l.b16 %v2650
        %v3212 = vunpack.c.h.b16 %v2650
        %v3213 = vunpack.c.l.b16 %v2651
        %v3214 = vunpack.c.h.b16 %v2651
        %v3215 = vunpack.c.l.b16 %v2652
        %v3216 = vunpack.c.h.b16 %v2652
        %v3217 = vunpack.c.l.b16 %v2653
        %v3218 = vunpack.c.h.b16 %v2653
        %v3219 = vunpack.c.l.b16 %v2654
        %v3220 = vunpack.c.h.b16 %v2654
        %v3221 = vunpack.c.l.b16 %v2655
        %v3222 = vunpack.c.h.b16 %v2655
        %v3223 = vunpack.c.l.b16 %v2656
        %v3224 = vunpack.c.h.b16 %v2656
        %v3225 = vunpack.c.l.b16 %v2657
        %v3226 = vunpack.c.h.b16 %v2657
        %v3227 = vunpack.c.l.b16 %v2658
        %v3228 = vunpack.c.h.b16 %v2658
        %v3229 = vunpack.c.l.b16 %v2659
        %v3230 = vunpack.c.h.b16 %v2659
        %v3231 = vunpack.c.l.b16 %v2660
        %v3232 = vunpack.c.h.b16 %v2660
        %v3233 = vunpack.c.l.b16 %v2661
        %v3234 = vunpack.c.h.b16 %v2661
        %v3235 = vunpack.c.l.b16 %v2662
        %v3236 = vunpack.c.h.b16 %v2662
        %v3237 = vunpack.c.l.b16 %v2663
        %v3238 = vunpack.c.h.b16 %v2663
        %v3239 = vunpack.c.l.b16 %v2664
        %v3240 = vunpack.c.h.b16 %v2664
        %v3241 = vunpack.c.l.b16 %v2665
        %v3242 = vunpack.c.h.b16 %v2665
        %v3243 = vunpack.c.l.b16 %v2666
        %v3244 = vunpack.c.h.b16 %v2666
        %v3245 = vunpack.c.l.b16 %v2667
        %v3246 = vunpack.c.h.b16 %v2667
        %v3247 = vunpack.c.l.b16 %v2668
        %v3248 = vunpack.c.h.b16 %v2668
        %v3249 = vunpack.c.l.b16 %v2669
        %v3250 = vunpack.c.h.b16 %v2669
        %v3251 = vunpack.c.l.b16 %v2670
        %v3252 = vunpack.c.h.b16 %v2670
        %v3253 = vunpack.c.l.b16 %v2671
        %v3254 = vunpack.c.h.b16 %v2671
        %v3255 = vunpack.c.l.b16 %v2672
        %v3256 = vunpack.c.h.b16 %v2672
        %v3257 = vunpack.c.l.b16 %v2673
        %v3258 = vunpack.c.h.b16 %v2673
        %v3259 = vunpack.c.l.b16 %v2674
        %v3260 = vunpack.c.h.b16 %v2674
        %v3261 = vunpack.c.l.b16 %v2675
        %v3262 = vunpack.c.h.b16 %v2675
        %v3263 = vunpack.c.l.b16 %v2676
        %v3264 = vunpack.c.h.b16 %v2676
        %v3265 = vunpack.c.l.b16 %v2677
        %v3266 = vunpack.c.h.b16 %v2677
        %v3267 = vunpack.c.l.b16 %v2678
        %v3268 = vunpack.c.h.b16 %v2678
        %v3269 = vunpack.c.l.b16 %v2679
        %v3270 = vunpack.c.h.b16 %v2679
        %v3271 = vunpack.c.l.b16 %v2680
        %v3272 = vunpack.c.h.b16 %v2680
        %v3273 = vunpack.c.l.b16 %v2681
        %v3274 = vunpack.c.h.b16 %v2681
        %v3275 = vunpack.c.l.b16 %v2682
        %v3276 = vunpack.c.h.b16 %v2682
        %v3277 = vunpack.c.l.b16 %v2683
        %v3278 = vunpack.c.h.b16 %v2683
        %v3279 = vunpack.c.l.b16 %v2684
        %v3280 = vunpack.c.h.b16 %v2684
        %v3281 = vunpack.c.l.b16 %v2685
        %v3282 = vunpack.c.h.b16 %v2685
        %v3283 = vunpack.c.l.b16 %v2686
        %v3284 = vunpack.c.h.b16 %v2686
        %v3285 = vunpack.c.l.b16 %v2687
        %v3286 = vunpack.c.h.b16 %v2687
        %v3287 = vunpack.c.l.b16 %v2688
        %v3288 = vunpack.c.h.b16 %v2688
        %v3289 = vunpack.c.l.b16 %v2689
        %v3290 = vunpack.c.h.b16 %v2689
        %v3291 = vunpack.c.l.b16 %v2690
        %v3292 = vunpack.c.h.b16 %v2690
        %v3293 = vunpack.c.l.b16 %v2691
        %v3294 = vunpack.c.h.b16 %v2691
        %v3295 = vunpack.c.l.b16 %v2692
        %v3296 = vunpack.c.h.b16 %v2692
        %v3297 = vunpack.c.l.b16 %v2693
        %v3298 = vunpack.c.h.b16 %v2693
        %v3299 = vunpack.c.l.b16 %v2694
        %v3300 = vunpack.c.h.b16 %v2694
        %v3301 = vunpack.c.l.b16 %v2695
        %v3302 = vunpack.c.h.b16 %v2695
        %v3303 = vunpack.c.l.b16 %v2696
        %v3304 = vunpack.c.h.b16 %v2696
        %v3305 = vunpack.c.l.b16 %v2697
        %v3306 = vunpack.c.h.b16 %v2697
        %v3307 = vunpack.c.l.b16 %v2698
        %v3308 = vunpack.c.h.b16 %v2698
        %v3309 = vunpack.c.l.b16 %v2699
        %v3310 = vunpack.c.h.b16 %v2699
        %v3311 = vunpack.c.l.b16 %v2700
        %v3312 = vunpack.c.h.b16 %v2700
        %v3313 = vunpack.c.l.b16 %v2701
        %v3314 = vunpack.c.h.b16 %v2701
        %v3315 = vunpack.c.l.b16 %v2702
        %v3316 = vunpack.c.h.b16 %v2702
        %v3317 = vunpack.c.l.b16 %v2703
        %v3318 = vunpack.c.h.b16 %v2703
        %v3319 = vunpack.c.l.b16 %v2704
        %v3320 = vunpack.c.h.b16 %v2704
        %v3321 = vunpack.c.l.b16 %v2705
        %v3322 = vunpack.c.h.b16 %v2705
        %v3323 = vunpack.c.l.b16 %v2706
        %v3324 = vunpack.c.h.b16 %v2706
        %v3325 = vunpack.c.l.b16 %v2707
        %v3326 = vunpack.c.h.b16 %v2707
        %v3327 = vunpack.c.l.b16 %v2708
        %v3328 = vunpack.c.h.b16 %v2708
        %v3329 = vunpack.c.l.b16 %v2709
        %v3330 = vunpack.c.h.b16 %v2709
        %v3331 = vunpack.c.l.b16 %v2710
        %v3332 = vunpack.c.h.b16 %v2710
        %v3333 = vunpack.c.l.b16 %v2711
        %v3334 = vunpack.c.h.b16 %v2711
        %v3335 = vunpack.c.l.b16 %v2712
        %v3336 = vunpack.c.h.b16 %v2712
        %v3337 = vunpack.c.l.b16 %v2713
        %v3338 = vunpack.c.h.b16 %v2713
        %v3339 = vunpack.c.l.b16 %v2714
        %v3340 = vunpack.c.h.b16 %v2714
        %v3341 = vunpack.c.l.b16 %v2715
        %v3342 = vunpack.c.h.b16 %v2715
        %v3343 = vunpack.c.l.b16 %v2716
        %v3344 = vunpack.c.h.b16 %v2716
        %v3345 = vunpack.c.l.b16 %v2717
        %v3346 = vunpack.c.h.b16 %v2717
        %v3347 = vunpack.c.l.b16 %v2718
        %v3348 = vunpack.c.h.b16 %v2718
        %v3349 = vunpack.c.l.b16 %v2719
        %v3350 = vunpack.c.h.b16 %v2719
        %v3351 = vunpack.c.l.b16 %v2720
        %v3352 = vunpack.c.h.b16 %v2720
        %v3353 = vunpack.c.l.b16 %v2721
        %v3354 = vunpack.c.h.b16 %v2721
        %v3355 = vunpack.c.l.b16 %v2722
        %v3356 = vunpack.c.h.b16 %v2722
        %v3357 = vunpack.c.l.b16 %v2723
        %v3358 = vunpack.c.h.b16 %v2723
        %v3359 = vunpack.c.l.b16 %v2724
        %v3360 = vunpack.c.h.b16 %v2724
        %v3361 = vunpack.c.l.b16 %v2725
        %v3362 = vunpack.c.h.b16 %v2725
        %v3363 = vunpack.c.l.b16 %v2726
        %v3364 = vunpack.c.h.b16 %v2726
        %v3365 = vunpack.c.l.b16 %v2727
        %v3366 = vunpack.c.h.b16 %v2727
        %v3367 = vunpack.c.l.b16 %v2728
        %v3368 = vunpack.c.h.b16 %v2728
        %v3369 = vunpack.c.l.b16 %v2729
        %v3370 = vunpack.c.h.b16 %v2729
        %v3371 = vunpack.c.l.b16 %v2730
        %v3372 = vunpack.c.h.b16 %v2730
        %v3373 = vunpack.c.l.b16 %v2731
        %v3374 = vunpack.c.h.b16 %v2731
        %v3375 = vunpack.c.l.b16 %v2732
        %v3376 = vunpack.c.h.b16 %v2732
        %v3377 = vunpack.c.l.b16 %v2733
        %v3378 = vunpack.c.h.b16 %v2733
        %v3379 = vunpack.c.l.b16 %v2734
        %v3380 = vunpack.c.h.b16 %v2734
        %v3381 = vunpack.c.l.b16 %v2735
        %v3382 = vunpack.c.h.b16 %v2735
        %v3383 = vunpack.c.l.b16 %v2736
        %v3384 = vunpack.c.h.b16 %v2736
        %v3385 = vunpack.c.l.b16 %v2737
        %v3386 = vunpack.c.h.b16 %v2737
        %v3387 = vunpack.c.l.b16 %v2738
        %v3388 = vunpack.c.h.b16 %v2738
        %v3389 = vunpack.c.l.b16 %v2739
        %v3390 = vunpack.c.h.b16 %v2739
        %v3391 = vunpack.c.l.b16 %v2740
        %v3392 = vunpack.c.h.b16 %v2740
        %v3393 = vunpack.c.l.b16 %v2741
        %v3394 = vunpack.c.h.b16 %v2741
        %v3395 = vunpack.c.l.b16 %v2742
        %v3396 = vunpack.c.h.b16 %v2742
        %v3397 = vunpack.c.l.b16 %v2743
        %v3398 = vunpack.c.h.b16 %v2743
        %v3399 = vunpack.c.l.b16 %v2744
        %v3400 = vunpack.c.h.b16 %v2744
        %v3401 = vunpack.c.l.b16 %v2745
        %v3402 = vunpack.c.h.b16 %v2745
        %v3403 = vunpack.c.l.b16 %v2746
        %v3404 = vunpack.c.h.b16 %v2746
        %v3405 = vunpack.c.l.b16 %v2747
        %v3406 = vunpack.c.h.b16 %v2747
        %v3407 = vunpack.c.l.b16 %v2748
        %v3408 = vunpack.c.h.b16 %v2748
        %v3409 = vunpack.c.l.b16 %v2749
        %v3410 = vunpack.c.h.b16 %v2749
        %v3411 = vunpack.c.l.b16 %v2750
        %v3412 = vunpack.c.h.b16 %v2750
        %v3413 = vunpack.c.l.b16 %v2751
        %v3414 = vunpack.c.h.b16 %v2751
        %v3415 = vunpack.c.l.b16 %v2752
        %v3416 = vunpack.c.h.b16 %v2752
        %v3417 = vunpack.c.l.b16 %v2753
        %v3418 = vunpack.c.h.b16 %v2753
        %v3419 = vunpack.c.l.b16 %v2754
        %v3420 = vunpack.c.h.b16 %v2754
        %v3421 = vunpack.c.l.b16 %v2755
        %v3422 = vunpack.c.h.b16 %v2755
        %v3423 = vunpack.c.l.b16 %v2756
        %v3424 = vunpack.c.h.b16 %v2756
        %v3425 = vunpack.c.l.b16 %v2757
        %v3426 = vunpack.c.h.b16 %v2757
        %v3427 = vunpack.c.l.b16 %v2758
        %v3428 = vunpack.c.h.b16 %v2758
        %v3429 = vunpack.c.l.b16 %v2759
        %v3430 = vunpack.c.h.b16 %v2759
        %v3431 = vunpack.c.l.b16 %v2760
        %v3432 = vunpack.c.h.b16 %v2760
        %v3433 = vunpack.c.l.b16 %v2761
        %v3434 = vunpack.c.h.b16 %v2761
        %v3435 = vunpack.c.l.b16 %v2762
        %v3436 = vunpack.c.h.b16 %v2762
        %v3437 = vunpack.c.l.b16 %v2763
        %v3438 = vunpack.c.h.b16 %v2763
        %v3439 = vunpack.c.l.b16 %v2764
        %v3440 = vunpack.c.h.b16 %v2764
        %v3441 = vunpack.c.l.b16 %v2765
        %v3442 = vunpack.c.h.b16 %v2765
        %v3443 = vunpack.c.l.b16 %v2766
        %v3444 = vunpack.c.h.b16 %v2766
        %v3445 = vunpack.c.l.b16 %v2767
        %v3446 = vunpack.c.h.b16 %v2767
        %v3447 = vunpack.c.l.b16 %v2768
        %v3448 = vunpack.c.h.b16 %v2768
        %v3449 = vunpack.c.l.b16 %v2769
        %v3450 = vunpack.c.h.b16 %v2769
        %v3451 = vunpack.c.l.b16 %v2770
        %v3452 = vunpack.c.h.b16 %v2770
        %v3453 = vunpack.c.l.b16 %v2771
        %v3454 = vunpack.c.h.b16 %v2771
        %v3455 = vunpack.c.l.b16 %v2772
        %v3456 = vunpack.c.h.b16 %v2772
        %v3457 = vunpack.c.l.b16 %v2773
        %v3458 = vunpack.c.h.b16 %v2773
        %v3459 = vunpack.c.l.b16 %v2774
        %v3460 = vunpack.c.h.b16 %v2774
        %v3461 = vunpack.c.l.b16 %v2775
        %v3462 = vunpack.c.h.b16 %v2775
        %v3463 = vunpack.c.l.b16 %v2776
        %v3464 = vunpack.c.h.b16 %v2776
        %v3465 = vunpack.c.l.b16 %v2777
        %v3466 = vunpack.c.h.b16 %v2777
        %v3467 = vunpack.c.l.b16 %v2778
        %v3468 = vunpack.c.h.b16 %v2778
        %v3469 = vunpack.c.l.b16 %v2779
        %v3470 = vunpack.c.h.b16 %v2779
        %v3471 = vunpack.c.l.b16 %v2780
        %v3472 = vunpack.c.h.b16 %v2780
        %v3473 = vunpack.c.l.b16 %v2781
        %v3474 = vunpack.c.h.b16 %v2781
        %v3475 = vunpack.c.l.b16 %v2782
        %v3476 = vunpack.c.h.b16 %v2782
        %v3477 = vunpack.c.l.b16 %v2783
        %v3478 = vunpack.c.h.b16 %v2783
        %v3479 = vunpack.c.l.b16 %v2784
        %v3480 = vunpack.c.h.b16 %v2784
        %v3481 = vunpack.c.l.b16 %v2785
        %v3482 = vunpack.c.h.b16 %v2785
        %v3483 = vunpack.c.l.b16 %v2786
        %v3484 = vunpack.c.h.b16 %v2786
        %v3485 = vunpack.c.l.b16 %v2787
        %v3486 = vunpack.c.h.b16 %v2787
        %v3487 = vunpack.c.l.b16 %v2788
        %v3488 = vunpack.c.h.b16 %v2788
        %v3489 = vunpack.c.l.b16 %v2789
        %v3490 = vunpack.c.h.b16 %v2789
        %v3491 = vunpack.c.l.b16 %v2790
        %v3492 = vunpack.c.h.b16 %v2790
        %v3493 = vunpack.c.l.b16 %v2791
        %v3494 = vunpack.c.h.b16 %v2791
        %v3495 = vunpack.c.l.b16 %v2792
        %v3496 = vunpack.c.h.b16 %v2792
        %v3497 = vunpack.c.l.b16 %v2793
        %v3498 = vunpack.c.h.b16 %v2793
        %v3499 = vunpack.c.l.b16 %v2794
        %v3500 = vunpack.c.h.b16 %v2794
        %v3501 = vunpack.c.l.b16 %v2795
        %v3502 = vunpack.c.h.b16 %v2795
        %v3503 = vunpack.c.l.b16 %v2796
        %v3504 = vunpack.c.h.b16 %v2796
        %v3505 = vunpack.c.l.b16 %v2797
        %v3506 = vunpack.c.h.b16 %v2797
        %v3507 = vunpack.c.l.b16 %v2798
        %v3508 = vunpack.c.h.b16 %v2798
        %v3509 = vunpack.c.l.b16 %v2799
        %v3510 = vunpack.c.h.b16 %v2799
        %v3511 = vunpack.c.l.b16 %v2800
        %v3512 = vunpack.c.h.b16 %v2800
        %v3513 = vunpack.c.l.b16 %v2801
        %v3514 = vunpack.c.h.b16 %v2801
        %v3515 = vunpack.c.l.b16 %v2802
        %v3516 = vunpack.c.h.b16 %v2802
        %v3517 = vunpack.c.l.b16 %v2803
        %v3518 = vunpack.c.h.b16 %v2803
        %v3519 = vunpack.c.l.b16 %v2804
        %v3520 = vunpack.c.h.b16 %v2804
        %v3521 = vunpack.c.l.b16 %v2805
        %v3522 = vunpack.c.h.b16 %v2805
        %v3523 = vunpack.c.l.b16 %v2806
        %v3524 = vunpack.c.h.b16 %v2806
        %v3525 = vunpack.c.l.b16 %v2807
        %v3526 = vunpack.c.h.b16 %v2807
        %v3527 = vunpack.c.l.b16 %v2808
        %v3528 = vunpack.c.h.b16 %v2808
        %v3529 = vunpack.c.l.b16 %v2809
        %v3530 = vunpack.c.h.b16 %v2809
        %v3531 = vunpack.c.l.b16 %v2810
        %v3532 = vunpack.c.h.b16 %v2810
        %v3533 = vunpack.c.l.b16 %v2811
        %v3534 = vunpack.c.h.b16 %v2811
        %v3535 = vunpack.c.l.b16 %v2812
        %v3536 = vunpack.c.h.b16 %v2812
        %v3537 = vunpack.c.l.b16 %v2813
        %v3538 = vunpack.c.h.b16 %v2813
        %v3539 = vunpack.c.l.b16 %v2814
        %v3540 = vunpack.c.h.b16 %v2814
        %v3541 = vunpack.c.l.b16 %v2815
        %v3542 = vunpack.c.h.b16 %v2815
        %v3543 = vunpack.c.l.b16 %v2816
        %v3544 = vunpack.c.h.b16 %v2816
        %v3545 = vunpack.c.l.b16 %v2817
        %v3546 = vunpack.c.h.b16 %v2817
        %v3547 = vunpack.c.l.b16 %v2818
        %v3548 = vunpack.c.h.b16 %v2818
        %v3549 = vunpack.c.l.b16 %v2819
        %v3550 = vunpack.c.h.b16 %v2819
        %v3551 = vunpack.c.l.b16 %v2820
        %v3552 = vunpack.c.h.b16 %v2820
        %v3553 = vunpack.c.l.b16 %v2821
        %v3554 = vunpack.c.h.b16 %v2821
        %v3555 = vunpack.c.l.b16 %v2822
        %v3556 = vunpack.c.h.b16 %v2822
        %v3557 = vunpack.c.l.b16 %v2823
        %v3558 = vunpack.c.h.b16 %v2823
        %v3559 = vunpack.c.l.b16 %v2824
        %v3560 = vunpack.c.h.b16 %v2824
        %v3561 = vunpack.c.l.b16 %v2825
        %v3562 = vunpack.c.h.b16 %v2825
        %v3563 = vunpack.c.l.b16 %v2826
        %v3564 = vunpack.c.h.b16 %v2826
        %v3565 = vunpack.c.l.b16 %v2827
        %v3566 = vunpack.c.h.b16 %v2827
        %v3567 = vunpack.c.l.b16 %v2828
        %v3568 = vunpack.c.h.b16 %v2828
        %v3569 = vunpack.c.l.b16 %v2829
        %v3570 = vunpack.c.h.b16 %v2829
        %v3571 = vunpack.c.l.b16 %v2830
        %v3572 = vunpack.c.h.b16 %v2830
        %v3573 = vunpack.c.l.b16 %v2831
        %v3574 = vunpack.c.h.b16 %v2831
        %v3575 = vunpack.c.l.b16 %v2832
        %v3576 = vunpack.c.h.b16 %v2832
        %v3577 = vunpack.c.l.b16 %v2833
        %v3578 = vunpack.c.h.b16 %v2833
        %v3579 = vunpack.c.l.b16 %v2834
        %v3580 = vunpack.c.h.b16 %v2834
        %v3581 = vunpack.c.l.b16 %v2835
        %v3582 = vunpack.c.h.b16 %v2835
        %v3583 = vunpack.c.l.b16 %v2836
        %v3584 = vunpack.c.h.b16 %v2836
        %v3585 = vunpack.c.l.b16 %v2837
        %v3586 = vunpack.c.h.b16 %v2837
        %v3587 = vunpack.c.l.b16 %v2838
        %v3588 = vunpack.c.h.b16 %v2838
        %v3589 = vunpack.c.l.b16 %v2839
        %v3590 = vunpack.c.h.b16 %v2839
        %v3591 = vunpack.c.l.b16 %v2840
        %v3592 = vunpack.c.h.b16 %v2840
        %v3593 = vunpack.c.l.b16 %v2841
        %v3594 = vunpack.c.h.b16 %v2841
        %v3595 = vunpack.c.l.b16 %v2842
        %v3596 = vunpack.c.h.b16 %v2842
        %v3597 = vunpack.c.l.b16 %v2843
        %v3598 = vunpack.c.h.b16 %v2843
        %v3599 = vunpack.c.l.b16 %v2844
        %v3600 = vunpack.c.h.b16 %v2844
        %v3601 = vunpack.c.l.b16 %v2845
        %v3602 = vunpack.c.h.b16 %v2845
        %v3603 = vunpack.c.l.b16 %v2846
        %v3604 = vunpack.c.h.b16 %v2846
        %v3605 = vunpack.c.l.b16 %v2847
        %v3606 = vunpack.c.h.b16 %v2847
        %v3607 = vunpack.c.l.b16 %v2848
        %v3608 = vunpack.c.h.b16 %v2848
        %v3609 = vunpack.c.l.b16 %v2849
        %v3610 = vunpack.c.h.b16 %v2849
        %v3611 = vunpack.c.l.b16 %v2850
        %v3612 = vunpack.c.h.b16 %v2850
        %v3613 = vunpack.c.l.b16 %v2851
        %v3614 = vunpack.c.h.b16 %v2851
        %v3615 = vunpack.c.l.b16 %v2852
        %v3616 = vunpack.c.h.b16 %v2852
        %v3617 = vunpack.c.l.b16 %v2853
        %v3618 = vunpack.c.h.b16 %v2853
        %v3619 = vunpack.c.l.b16 %v2854
        %v3620 = vunpack.c.h.b16 %v2854
        %v3621 = vunpack.c.l.b16 %v2855
        %v3622 = vunpack.c.h.b16 %v2855
        %v3623 = vunpack.c.l.b16 %v2856
        %v3624 = vunpack.c.h.b16 %v2856
        %v3625 = vpack.c.b16 %v3121, %v3113
        %v3626 = vpack.c.b16 %v3122, %v3114
        %v3627 = vpack.c.b16 %v3123, %v3115
        %v3628 = vpack.c.b16 %v3124, %v3116
        %v3629 = vpack.c.b16 %v3125, %v3117
        %v3630 = vpack.c.b16 %v3126, %v3118
        %v3631 = vpack.c.b16 %v3127, %v3119
        %v3632 = vpack.c.b16 %v3128, %v3120
        %v3633 = vpack.c.b16 %v3137, %v3129
        %v3634 = vpack.c.b16 %v3138, %v3130
        %v3635 = vpack.c.b16 %v3139, %v3131
        %v3636 = vpack.c.b16 %v3140, %v3132
        %v3637 = vpack.c.b16 %v3141, %v3133
        %v3638 = vpack.c.b16 %v3142, %v3134
        %v3639 = vpack.c.b16 %v3143, %v3135
        %v3640 = vpack.c.b16 %v3144, %v3136
        %v3641 = vpack.c.b16 %v3153, %v3145
        %v3642 = vpack.c.b16 %v3154, %v3146
        %v3643 = vpack.c.b16 %v3155, %v3147
        %v3644 = vpack.c.b16 %v3156, %v3148
        %v3645 = vpack.c.b16 %v3157, %v3149
        %v3646 = vpack.c.b16 %v3158, %v3150
        %v3647 = vpack.c.b16 %v3159, %v3151
        %v3648 = vpack.c.b16 %v3160, %v3152
        %v3649 = vpack.c.b16 %v3169, %v3161
        %v3650 = vpack.c.b16 %v3170, %v3162
        %v3651 = vpack.c.b16 %v3171, %v3163
        %v3652 = vpack.c.b16 %v3172, %v3164
        %v3653 = vpack.c.b16 %v3173, %v3165
        %v3654 = vpack.c.b16 %v3174, %v3166
        %v3655 = vpack.c.b16 %v3175, %v3167
        %v3656 = vpack.c.b16 %v3176, %v3168
        %v3657 = vpack.c.b16 %v3185, %v3177
        %v3658 = vpack.c.b16 %v3186, %v3178
        %v3659 = vpack.c.b16 %v3187, %v3179
        %v3660 = vpack.c.b16 %v3188, %v3180
        %v3661 = vpack.c.b16 %v3189, %v3181
        %v3662 = vpack.c.b16 %v3190, %v3182
        %v3663 = vpack.c.b16 %v3191, %v3183
        %v3664 = vpack.c.b16 %v3192, %v3184
        %v3665 = vpack.c.b16 %v3201, %v3193
        %v3666 = vpack.c.b16 %v3202, %v3194
        %v3667 = vpack.c.b16 %v3203, %v3195
        %v3668 = vpack.c.b16 %v3204, %v3196
        %v3669 = vpack.c.b16 %v3205, %v3197
        %v3670 = vpack.c.b16 %v3206, %v3198
        %v3671 = vpack.c.b16 %v3207, %v3199
        %v3672 = vpack.c.b16 %v3208, %v3200
        %v3673 = vpack.c.b16 %v3217, %v3209
        %v3674 = vpack.c.b16 %v3218, %v3210
        %v3675 = vpack.c.b16 %v3219, %v3211
        %v3676 = vpack.c.b16 %v3220, %v3212
        %v3677 = vpack.c.b16 %v3221, %v3213
        %v3678 = vpack.c.b16 %v3222, %v3214
        %v3679 = vpack.c.b16 %v3223, %v3215
        %v3680 = vpack.c.b16 %v3224, %v3216
        %v3681 = vpack.c.b16 %v3233, %v3225
        %v3682 = vpack.c.b16 %v3234, %v3226
        %v3683 = vpack.c.b16 %v3235, %v3227
        %v3684 = vpack.c.b16 %v3236, %v3228
        %v3685 = vpack.c.b16 %v3237, %v3229
        %v3686 = vpack.c.b16 %v3238, %v3230
        %v3687 = vpack.c.b16 %v3239, %v3231
        %v3688 = vpack.c.b16 %v3240, %v3232
        %v3689 = vpack.c.b16 %v3249, %v3241
        %v3690 = vpack.c.b16 %v3250, %v3242
        %v3691 = vpack.c.b16 %v3251, %v3243
        %v3692 = vpack.c.b16 %v3252, %v3244
        %v3693 = vpack.c.b16 %v3253, %v3245
        %v3694 = vpack.c.b16 %v3254, %v3246
        %v3695 = vpack.c.b16 %v3255, %v3247
        %v3696 = vpack.c.b16 %v3256, %v3248
        %v3697 = vpack.c.b16 %v3265, %v3257
        %v3698 = vpack.c.b16 %v3266, %v3258
        %v3699 = vpack.c.b16 %v3267, %v3259
        %v3700 = vpack.c.b16 %v3268, %v3260
        %v3701 = vpack.c.b16 %v3269, %v3261
        %v3702 = vpack.c.b16 %v3270, %v3262
        %v3703 = vpack.c.b16 %v3271, %v3263
        %v3704 = vpack.c.b16 %v3272, %v3264
        %v3705 = vpack.c.b16 %v3281, %v3273
        %v3706 = vpack.c.b16 %v3282, %v3274
        %v3707 = vpack.c.b16 %v3283, %v3275
        %v3708 = vpack.c.b16 %v3284, %v3276
        %v3709 = vpack.c.b16 %v3285, %v3277
        %v3710 = vpack.c.b16 %v3286, %v3278
        %v3711 = vpack.c.b16 %v3287, %v3279
        %v3712 = vpack.c.b16 %v3288, %v3280
        %v3713 = vpack.c.b16 %v3297, %v3289
        %v3714 = vpack.c.b16 %v3298, %v3290
        %v3715 = vpack.c.b16 %v3299, %v3291
        %v3716 = vpack.c.b16 %v3300, %v3292
        %v3717 = vpack.c.b16 %v3301, %v3293
        %v3718 = vpack.c.b16 %v3302, %v3294
        %v3719 = vpack.c.b16 %v3303, %v3295
        %v3720 = vpack.c.b16 %v3304, %v3296
        %v3721 = vpack.c.b16 %v3313, %v3305
        %v3722 = vpack.c.b16 %v3314, %v3306
        %v3723 = vpack.c.b16 %v3315, %v3307
        %v3724 = vpack.c.b16 %v3316, %v3308
        %v3725 = vpack.c.b16 %v3317, %v3309
        %v3726 = vpack.c.b16 %v3318, %v3310
        %v3727 = vpack.c.b16 %v3319, %v3311
        %v3728 = vpack.c.b16 %v3320, %v3312
        %v3729 = vpack.c.b16 %v3329, %v3321
        %v3730 = vpack.c.b16 %v3330, %v3322
        %v3731 = vpack.c.b16 %v3331, %v3323
        %v3732 = vpack.c.b16 %v3332, %v3324
        %v3733 = vpack.c.b16 %v3333, %v3325
        %v3734 = vpack.c.b16 %v3334, %v3326
        %v3735 = vpack.c.b16 %v3335, %v3327
        %v3736 = vpack.c.b16 %v3336, %v3328
        %v3737 = vpack.c.b16 %v3345, %v3337
        %v3738 = vpack.c.b16 %v3346, %v3338
        %v3739 = vpack.c.b16 %v3347, %v3339
        %v3740 = vpack.c.b16 %v3348, %v3340
        %v3741 = vpack.c.b16 %v3349, %v3341
        %v3742 = vpack.c.b16 %v3350, %v3342
        %v3743 = vpack.c.b16 %v3351, %v3343
        %v3744 = vpack.c.b16 %v3352, %v3344
        %v3745 = vpack.c.b16 %v3361, %v3353
        %v3746 = vpack.c.b16 %v3362, %v3354
        %v3747 = vpack.c.b16 %v3363, %v3355
        %v3748 = vpack.c.b16 %v3364, %v3356
        %v3749 = vpack.c.b16 %v3365, %v3357
        %v3750 = vpack.c.b16 %v3366, %v3358
        %v3751 = vpack.c.b16 %v3367, %v3359
        %v3752 = vpack.c.b16 %v3368, %v3360
        %v3753 = vpack.c.b16 %v3377, %v3369
        %v3754 = vpack.c.b16 %v3378, %v3370
        %v3755 = vpack.c.b16 %v3379, %v3371
        %v3756 = vpack.c.b16 %v3380, %v3372
        %v3757 = vpack.c.b16 %v3381, %v3373
        %v3758 = vpack.c.b16 %v3382, %v3374
        %v3759 = vpack.c.b16 %v3383, %v3375
        %v3760 = vpack.c.b16 %v3384, %v3376
        %v3761 = vpack.c.b16 %v3393, %v3385
        %v3762 = vpack.c.b16 %v3394, %v3386
        %v3763 = vpack.c.b16 %v3395, %v3387
        %v3764 = vpack.c.b16 %v3396, %v3388
        %v3765 = vpack.c.b16 %v3397, %v3389
        %v3766 = vpack.c.b16 %v3398, %v3390
        %v3767 = vpack.c.b16 %v3399, %v3391
        %v3768 = vpack.c.b16 %v3400, %v3392
        %v3769 = vpack.c.b16 %v3409, %v3401
        %v3770 = vpack.c.b16 %v3410, %v3402
        %v3771 = vpack.c.b16 %v3411, %v3403
        %v3772 = vpack.c.b16 %v3412, %v3404
        %v3773 = vpack.c.b16 %v3413, %v3405
        %v3774 = vpack.c.b16 %v3414, %v3406
        %v3775 = vpack.c.b16 %v3415, %v3407
        %v3776 = vpack.c.b16 %v3416, %v3408
        %v3777 = vpack.c.b16 %v3425, %v3417
        %v3778 = vpack.c.b16 %v3426, %v3418
        %v3779 = vpack.c.b16 %v3427, %v3419
        %v3780 = vpack.c.b16 %v3428, %v3420
        %v3781 = vpack.c.b16 %v3429, %v3421
        %v3782 = vpack.c.b16 %v3430, %v3422
        %v3783 = vpack.c.b16 %v3431, %v3423
        %v3784 = vpack.c.b16 %v3432, %v3424
        %v3785 = vpack.c.b16 %v3441, %v3433
        %v3786 = vpack.c.b16 %v3442, %v3434
        %v3787 = vpack.c.b16 %v3443, %v3435
        %v3788 = vpack.c.b16 %v3444, %v3436
        %v3789 = vpack.c.b16 %v3445, %v3437
        %v3790 = vpack.c.b16 %v3446, %v3438
        %v3791 = vpack.c.b16 %v3447, %v3439
        %v3792 = vpack.c.b16 %v3448, %v3440
        %v3793 = vpack.c.b16 %v3457, %v3449
        %v3794 = vpack.c.b16 %v3458, %v3450
        %v3795 = vpack.c.b16 %v3459, %v3451
        %v3796 = vpack.c.b16 %v3460, %v3452
        %v3797 = vpack.c.b16 %v3461, %v3453
        %v3798 = vpack.c.b16 %v3462, %v3454
        %v3799 = vpack.c.b16 %v3463, %v3455
        %v3800 = vpack.c.b16 %v3464, %v3456
        %v3801 = vpack.c.b16 %v3473, %v3465
        %v3802 = vpack.c.b16 %v3474, %v3466
        %v3803 = vpack.c.b16 %v3475, %v3467
        %v3804 = vpack.c.b16 %v3476, %v3468
        %v3805 = vpack.c.b16 %v3477, %v3469
        %v3806 = vpack.c.b16 %v3478, %v3470
        %v3807 = vpack.c.b16 %v3479, %v3471
        %v3808 = vpack.c.b16 %v3480, %v3472
        %v3809 = vpack.c.b16 %v3489, %v3481
        %v3810 = vpack.c.b16 %v3490, %v3482
        %v3811 = vpack.c.b16 %v3491, %v3483
        %v3812 = vpack.c.b16 %v3492, %v3484
        %v3813 = vpack.c.b16 %v3493, %v3485
        %v3814 = vpack.c.b16 %v3494, %v3486
        %v3815 = vpack.c.b16 %v3495, %v3487
        %v3816 = vpack.c.b16 %v3496, %v3488
        %v3817 = vpack.c.b16 %v3505, %v3497
        %v3818 = vpack.c.b16 %v3506, %v3498
        %v3819 = vpack.c.b16 %v3507, %v3499
        %v3820 = vpack.c.b16 %v3508, %v3500
        %v3821 = vpack.c.b16 %v3509, %v3501
        %v3822 = vpack.c.b16 %v3510, %v3502
        %v3823 = vpack.c.b16 %v3511, %v3503
        %v3824 = vpack.c.b16 %v3512, %v3504
        %v3825 = vpack.c.b16 %v3521, %v3513
        %v3826 = vpack.c.b16 %v3522, %v3514
        %v3827 = vpack.c.b16 %v3523, %v3515
        %v3828 = vpack.c.b16 %v3524, %v3516
        %v3829 = vpack.c.b16 %v3525, %v3517
        %v3830 = vpack.c.b16 %v3526, %v3518
        %v3831 = vpack.c.b16 %v3527, %v3519
        %v3832 = vpack.c.b16 %v3528, %v3520
        %v3833 = vpack.c.b16 %v3537, %v3529
        %v3834 = vpack.c.b16 %v3538, %v3530
        %v3835 = vpack.c.b16 %v3539, %v3531
        %v3836 = vpack.c.b16 %v3540, %v3532
        %v3837 = vpack.c.b16 %v3541, %v3533
        %v3838 = vpack.c.b16 %v3542, %v3534
        %v3839 = vpack.c.b16 %v3543, %v3535
        %v3840 = vpack.c.b16 %v3544, %v3536
        %v3841 = vpack.c.b16 %v3553, %v3545
        %v3842 = vpack.c.b16 %v3554, %v3546
        %v3843 = vpack.c.b16 %v3555, %v3547
        %v3844 = vpack.c.b16 %v3556, %v3548
        %v3845 = vpack.c.b16 %v3557, %v3549
        %v3846 = vpack.c.b16 %v3558, %v3550
        %v3847 = vpack.c.b16 %v3559, %v3551
        %v3848 = vpack.c.b16 %v3560, %v3552
        %v3849 = vpack.c.b16 %v3569, %v3561
        %v3850 = vpack.c.b16 %v3570, %v3562
        %v3851 = vpack.c.b16 %v3571, %v3563
        %v3852 = vpack.c.b16 %v3572, %v3564
        %v3853 = vpack.c.b16 %v3573, %v3565
        %v3854 = vpack.c.b16 %v3574, %v3566
        %v3855 = vpack.c.b16 %v3575, %v3567
        %v3856 = vpack.c.b16 %v3576, %v3568
        %v3857 = vpack.c.b16 %v3585, %v3577
        %v3858 = vpack.c.b16 %v3586, %v3578
        %v3859 = vpack.c.b16 %v3587, %v3579
        %v3860 = vpack.c.b16 %v3588, %v3580
        %v3861 = vpack.c.b16 %v3589, %v3581
        %v3862 = vpack.c.b16 %v3590, %v3582
        %v3863 = vpack.c.b16 %v3591, %v3583
        %v3864 = vpack.c.b16 %v3592, %v3584
        %v3865 = vpack.c.b16 %v3601, %v3593
        %v3866 = vpack.c.b16 %v3602, %v3594
        %v3867 = vpack.c.b16 %v3603, %v3595
        %v3868 = vpack.c.b16 %v3604, %v3596
        %v3869 = vpack.c.b16 %v3605, %v3597
        %v3870 = vpack.c.b16 %v3606, %v3598
        %v3871 = vpack.c.b16 %v3607, %v3599
        %v3872 = vpack.c.b16 %v3608, %v3600
        %v3873 = vpack.c.b16 %v3617, %v3609
        %v3874 = vpack.c.b16 %v3618, %v3610
        %v3875 = vpack.c.b16 %v3619, %v3611
        %v3876 = vpack.c.b16 %v3620, %v3612
        %v3877 = vpack.c.b16 %v3621, %v3613
        %v3878 = vpack.c.b16 %v3622, %v3614
        %v3879 = vpack.c.b16 %v3623, %v3615
        %v3880 = vpack.c.b16 %v3624, %v3616
        %4137 = vmatprep.subr.bf16.mxu0 %v3626
        %4138 = vmatpush1.bf16.msra.mxu0 %v3625
        %4139 = vmatprep.subr.bf16.mxu0 %v3634
        %4140 = vmatpush1.bf16.msra.mxu0 %v3633
        %4141 = vmatprep.subr.bf16.mxu0 %v3642
        %4142 = vmatpush1.bf16.msra.mxu0 %v3641
        %4143 = vmatprep.subr.bf16.mxu0 %v3650
        %4144 = vmatpush1.bf16.msra.mxu0 %v3649
        %4145 = vmatprep.subr.bf16.mxu0 %v3658
        %4146 = vmatpush1.bf16.msra.mxu0 %v3657
        %4147 = vmatprep.subr.bf16.mxu0 %v3666
        %4148 = vmatpush1.bf16.msra.mxu0 %v3665
        %4149 = vmatprep.subr.bf16.mxu0 %v3674
        %4150 = vmatpush1.bf16.msra.mxu0 %v3673
        %4151 = vmatprep.subr.bf16.mxu0 %v3682
        %4152 = vmatpush1.bf16.msra.mxu0 %v3681
        %4153 = vmatprep.subr.bf16.mxu0 %v3690
        %4154 = vmatpush1.bf16.msra.mxu0 %v3689
        %4155 = vmatprep.subr.bf16.mxu0 %v3698
        %4156 = vmatpush1.bf16.msra.mxu0 %v3697
        %4157 = vmatprep.subr.bf16.mxu0 %v3706
        %4158 = vmatpush1.bf16.msra.mxu0 %v3705
        %4159 = vmatprep.subr.bf16.mxu0 %v3714
        %4160 = vmatpush1.bf16.msra.mxu0 %v3713
        %4161 = vmatprep.subr.bf16.mxu0 %v3722
        %4162 = vmatpush1.bf16.msra.mxu0 %v3721
        %4163 = vmatprep.subr.bf16.mxu0 %v3730
        %4164 = vmatpush1.bf16.msra.mxu0 %v3729
        %4165 = vmatprep.subr.bf16.mxu0 %v3738
        %4166 = vmatpush1.bf16.msra.mxu0 %v3737
        %4167 = vmatprep.subr.bf16.mxu0 %v3746
        %4168 = vmatpush1.bf16.msra.mxu0 %v3745
        %4169 = vmatprep.mubr.bf16.mxu0 %v2590
        %4170 = vmatmul.mubr.bf16.gmra.mrb[0].mxu0 %v2589
        %v4171 = vpop.f32.mrb[0].mxu0
        %v4172 = vadd.f32 0.0, %v4171
        %v4173 = vpop.f32.mrb[0].mxu0
        %v4174 = vadd.f32 0.0, %v4173
        %v4175 = vpop.f32.mrb[0].mxu0
        %v4176 = vpop.f32.mrb[0].mxu0
        %4177 = vdwg.mxu0
        %4178 = vmatprep.subr.bf16.mxu0 %v3754
        %4179 = vmatpush1.bf16.msra.mxu0 %v3753
        %4180 = vmatprep.subr.bf16.mxu0 %v3762
        %4181 = vmatpush1.bf16.msra.mxu0 %v3761
        %4182 = vmatprep.subr.bf16.mxu0 %v3770
        %4183 = vmatpush1.bf16.msra.mxu0 %v3769
        %4184 = vmatprep.subr.bf16.mxu0 %v3778
        %4185 = vmatpush1.bf16.msra.mxu0 %v3777
        %4186 = vmatprep.subr.bf16.mxu0 %v3786
        %4187 = vmatpush1.bf16.msra.mxu0 %v3785
        %4188 = vmatprep.subr.bf16.mxu0 %v3794
        %4189 = vmatpush1.bf16.msra.mxu0 %v3793
        %4190 = vmatprep.subr.bf16.mxu0 %v3802
        %4191 = vmatpush1.bf16.msra.mxu0 %v3801
        %4192 = vmatprep.subr.bf16.mxu0 %v3810
        %4193 = vmatpush1.bf16.msra.mxu0 %v3809
        %4194 = vmatprep.subr.bf16.mxu0 %v3818
        %4195 = vmatpush1.bf16.msra.mxu0 %v3817
        %4196 = vmatprep.subr.bf16.mxu0 %v3826
        %4197 = vmatpush1.bf16.msra.mxu0 %v3825
        %4198 = vmatprep.subr.bf16.mxu0 %v3834
        %4199 = vmatpush1.bf16.msra.mxu0 %v3833
        %4200 = vmatprep.subr.bf16.mxu0 %v3842
        %4201 = vmatpush1.bf16.msra.mxu0 %v3841
        %4202 = vmatprep.subr.bf16.mxu0 %v3850
        %4203 = vmatpush1.bf16.msra.mxu0 %v3849
        %4204 = vmatprep.subr.bf16.mxu0 %v3858
        %4205 = vmatpush1.bf16.msra.mxu0 %v3857
        %4206 = vmatprep.subr.bf16.mxu0 %v3866
        %4207 = vmatpush1.bf16.msra.mxu0 %v3865
        %4208 = vmatprep.subr.bf16.mxu0 %v3874
        %4209 = vmatpush1.bf16.msra.mxu0 %v3873
        %4210 = vmatprep.mubr.bf16.mxu0 %v2592
        %4211 = vmatmul.mubr.bf16.gmra.mrb[0].mxu0 %v2591
        %v4212 = vpop.f32.mrb[0].mxu0
        %v4213 = vadd.f32 %v4172, %v4212
        %v4214 = vpop.f32.mrb[0].mxu0
        %v4215 = vadd.f32 %v4174, %v4214
        %v4216 = vpop.f32.mrb[0].mxu0
        %v4217 = vpop.f32.mrb[0].mxu0
        %4218 = vdwg.mxu0
        %4219 = vmatprep.subr.bf16.mxu0 %v3628
        %4220 = vmatpush1.bf16.msra.mxu0 %v3627
        %4221 = vmatprep.subr.bf16.mxu0 %v3636
        %4222 = vmatpush1.bf16.msra.mxu0 %v3635
        %4223 = vmatprep.subr.bf16.mxu0 %v3644
        %4224 = vmatpush1.bf16.msra.mxu0 %v3643
        %4225 = vmatprep.subr.bf16.mxu0 %v3652
        %4226 = vmatpush1.bf16.msra.mxu0 %v3651
        %4227 = vmatprep.subr.bf16.mxu0 %v3660
        %4228 = vmatpush1.bf16.msra.mxu0 %v3659
        %4229 = vmatprep.subr.bf16.mxu0 %v3668
        %4230 = vmatpush1.bf16.msra.mxu0 %v3667
        %4231 = vmatprep.subr.bf16.mxu0 %v3676
        %4232 = vmatpush1.bf16.msra.mxu0 %v3675
        %4233 = vmatprep.subr.bf16.mxu0 %v3684
        %4234 = vmatpush1.bf16.msra.mxu0 %v3683
        %4235 = vmatprep.subr.bf16.mxu0 %v3692
        %4236 = vmatpush1.bf16.msra.mxu0 %v3691
        %4237 = vmatprep.subr.bf16.mxu0 %v3700
        %4238 = vmatpush1.bf16.msra.mxu0 %v3699
        %4239 = vmatprep.subr.bf16.mxu0 %v3708
        %4240 = vmatpush1.bf16.msra.mxu0 %v3707
        %4241 = vmatprep.subr.bf16.mxu0 %v3716
        %4242 = vmatpush1.bf16.msra.mxu0 %v3715
        %4243 = vmatprep.subr.bf16.mxu0 %v3724
        %4244 = vmatpush1.bf16.msra.mxu0 %v3723
        %4245 = vmatprep.subr.bf16.mxu0 %v3732
        %4246 = vmatpush1.bf16.msra.mxu0 %v3731
        %4247 = vmatprep.subr.bf16.mxu0 %v3740
        %4248 = vmatpush1.bf16.msra.mxu0 %v3739
        %4249 = vmatprep.subr.bf16.mxu0 %v3748
        %4250 = vmatpush1.bf16.msra.mxu0 %v3747
        %4251 = vmatprep.mubr.bf16.mxu0 %v2590
        %4252 = vmatmul.mubr.bf16.gmra.mrb[0].mxu0 %v2589
        %v4253 = vpop.f32.mrb[0].mxu0
        %v4254 = vadd.f32 0.0, %v4253
        %v4255 = vpop.f32.mrb[0].mxu0
        %v4256 = vadd.f32 0.0, %v4255
        %v4257 = vpop.f32.mrb[0].mxu0
        %v4258 = vpop.f32.mrb[0].mxu0
        %4259 = vdwg.mxu0
        %4260 = vmatprep.subr.bf16.mxu0 %v3756
        %4261 = vmatpush1.bf16.msra.mxu0 %v3755
        %4262 = vmatprep.subr.bf16.mxu0 %v3764
        %4263 = vmatpush1.bf16.msra.mxu0 %v3763
        %4264 = vmatprep.subr.bf16.mxu0 %v3772
        %4265 = vmatpush1.bf16.msra.mxu0 %v3771
        %4266 = vmatprep.subr.bf16.mxu0 %v3780
        %4267 = vmatpush1.bf16.msra.mxu0 %v3779
        %4268 = vmatprep.subr.bf16.mxu0 %v3788
        %4269 = vmatpush1.bf16.msra.mxu0 %v3787
        %4270 = vmatprep.subr.bf16.mxu0 %v3796
        %4271 = vmatpush1.bf16.msra.mxu0 %v3795
        %4272 = vmatprep.subr.bf16.mxu0 %v3804
        %4273 = vmatpush1.bf16.msra.mxu0 %v3803
        %4274 = vmatprep.subr.bf16.mxu0 %v3812
        %4275 = vmatpush1.bf16.msra.mxu0 %v3811
        %4276 = vmatprep.subr.bf16.mxu0 %v3820
        %4277 = vmatpush1.bf16.msra.mxu0 %v3819
        %4278 = vmatprep.subr.bf16.mxu0 %v3828
        %4279 = vmatpush1.bf16.msra.mxu0 %v3827
        %4280 = vmatprep.subr.bf16.mxu0 %v3836
        %4281 = vmatpush1.bf16.msra.mxu0 %v3835
        %4282 = vmatprep.subr.bf16.mxu0 %v3844
        %4283 = vmatpush1.bf16.msra.mxu0 %v3843
        %4284 = vmatprep.subr.bf16.mxu0 %v3852
        %4285 = vmatpush1.bf16.msra.mxu0 %v3851
        %4286 = vmatprep.subr.bf16.mxu0 %v3860
        %4287 = vmatpush1.bf16.msra.mxu0 %v3859
        %4288 = vmatprep.subr.bf16.mxu0 %v3868
        %4289 = vmatpush1.bf16.msra.mxu0 %v3867
        %4290 = vmatprep.subr.bf16.mxu0 %v3876
        %4291 = vmatpush1.bf16.msra.mxu0 %v3875
        %4292 = vmatprep.mubr.bf16.mxu0 %v2592
        %4293 = vmatmul.mubr.bf16.gmra.mrb[0].mxu0 %v2591
        %v4294 = vpop.f32.mrb[0].mxu0
        %v4295 = vadd.f32 %v4254, %v4294
        %v4296 = vpop.f32.mrb[0].mxu0
        %v4297 = vadd.f32 %v4256, %v4296
        %v4298 = vpop.f32.mrb[0].mxu0
        %v4299 = vpop.f32.mrb[0].mxu0
        %4300 = vdwg.mxu0
        %4301 = vmatprep.subr.bf16.mxu0 %v3630
        %4302 = vmatpush1.bf16.msra.mxu0 %v3629
        %4303 = vmatprep.subr.bf16.mxu0 %v3638
        %4304 = vmatpush1.bf16.msra.mxu0 %v3637
        %4305 = vmatprep.subr.bf16.mxu0 %v3646
        %4306 = vmatpush1.bf16.msra.mxu0 %v3645
        %4307 = vmatprep.subr.bf16.mxu0 %v3654
        %4308 = vmatpush1.bf16.msra.mxu0 %v3653
        %4309 = vmatprep.subr.bf16.mxu0 %v3662
        %4310 = vmatpush1.bf16.msra.mxu0 %v3661
        %4311 = vmatprep.subr.bf16.mxu0 %v3670
        %4312 = vmatpush1.bf16.msra.mxu0 %v3669
        %4313 = vmatprep.subr.bf16.mxu0 %v3678
        %4314 = vmatpush1.bf16.msra.mxu0 %v3677
        %4315 = vmatprep.subr.bf16.mxu0 %v3686
        %4316 = vmatpush1.bf16.msra.mxu0 %v3685
        %4317 = vmatprep.subr.bf16.mxu0 %v3694
        %4318 = vmatpush1.bf16.msra.mxu0 %v3693
        %4319 = vmatprep.subr.bf16.mxu0 %v3702
        %4320 = vmatpush1.bf16.msra.mxu0 %v3701
        %4321 = vmatprep.subr.bf16.mxu0 %v3710
        %4322 = vmatpush1.bf16.msra.mxu0 %v3709
        %4323 = vmatprep.subr.bf16.mxu0 %v3718
        %4324 = vmatpush1.bf16.msra.mxu0 %v3717
        %4325 = vmatprep.subr.bf16.mxu0 %v3726
        %4326 = vmatpush1.bf16.msra.mxu0 %v3725
        %4327 = vmatprep.subr.bf16.mxu0 %v3734
        %4328 = vmatpush1.bf16.msra.mxu0 %v3733
        %4329 = vmatprep.subr.bf16.mxu0 %v3742
        %4330 = vmatpush1.bf16.msra.mxu0 %v3741
        %4331 = vmatprep.subr.bf16.mxu0 %v3750
        %4332 = vmatpush1.bf16.msra.mxu0 %v3749
        %4333 = vmatprep.mubr.bf16.mxu0 %v2590
        %4334 = vmatmul.mubr.bf16.gmra.mrb[0].mxu0 %v2589
        %v4335 = vpop.f32.mrb[0].mxu0
        %v4336 = vadd.f32 0.0, %v4335
        %v4337 = vpop.f32.mrb[0].mxu0
        %v4338 = vadd.f32 0.0, %v4337
        %v4339 = vpop.f32.mrb[0].mxu0
        %v4340 = vpop.f32.mrb[0].mxu0
        %4341 = vdwg.mxu0
        %4342 = vmatprep.subr.bf16.mxu0 %v3758
        %4343 = vmatpush1.bf16.msra.mxu0 %v3757
        %4344 = vmatprep.subr.bf16.mxu0 %v3766
        %4345 = vmatpush1.bf16.msra.mxu0 %v3765
        %4346 = vmatprep.subr.bf16.mxu0 %v3774
        %4347 = vmatpush1.bf16.msra.mxu0 %v3773
        %4348 = vmatprep.subr.bf16.mxu0 %v3782
        %4349 = vmatpush1.bf16.msra.mxu0 %v3781
        %4350 = vmatprep.subr.bf16.mxu0 %v3790
        %4351 = vmatpush1.bf16.msra.mxu0 %v3789
        %4352 = vmatprep.subr.bf16.mxu0 %v3798
        %4353 = vmatpush1.bf16.msra.mxu0 %v3797
        %4354 = vmatprep.subr.bf16.mxu0 %v3806
        %4355 = vmatpush1.bf16.msra.mxu0 %v3805
        %4356 = vmatprep.subr.bf16.mxu0 %v3814
        %4357 = vmatpush1.bf16.msra.mxu0 %v3813
        %4358 = vmatprep.subr.bf16.mxu0 %v3822
        %4359 = vmatpush1.bf16.msra.mxu0 %v3821
        %4360 = vmatprep.subr.bf16.mxu0 %v3830
        %4361 = vmatpush1.bf16.msra.mxu0 %v3829
        %4362 = vmatprep.subr.bf16.mxu0 %v3838
        %4363 = vmatpush1.bf16.msra.mxu0 %v3837
        %4364 = vmatprep.subr.bf16.mxu0 %v3846
        %4365 = vmatpush1.bf16.msra.mxu0 %v3845
        %4366 = vmatprep.subr.bf16.mxu0 %v3854
        %4367 = vmatpush1.bf16.msra.mxu0 %v3853
        %4368 = vmatprep.subr.bf16.mxu0 %v3862
        %4369 = vmatpush1.bf16.msra.mxu0 %v3861
        %4370 = vmatprep.subr.bf16.mxu0 %v3870
        %4371 = vmatpush1.bf16.msra.mxu0 %v3869
        %4372 = vmatprep.subr.bf16.mxu0 %v3878
        %4373 = vmatpush1.bf16.msra.mxu0 %v3877
        %4374 = vmatprep.mubr.bf16.mxu0 %v2592
        %4375 = vmatmul.mubr.bf16.gmra.mrb[0].mxu0 %v2591
        %v4376 = vpop.f32.mrb[0].mxu0
        %v4377 = vadd.f32 %v4336, %v4376
        %v4378 = vpop.f32.mrb[0].mxu0
        %v4379 = vadd.f32 %v4338, %v4378
        %v4380 = vpop.f32.mrb[0].mxu0
        %v4381 = vpop.f32.mrb[0].mxu0
        %4382 = vdwg.mxu0
        %4383 = vmatprep.subr.bf16.mxu0 %v3632
        %4384 = vmatpush1.bf16.msra.mxu0 %v3631
        %4385 = vmatprep.subr.bf16.mxu0 %v3640
        %4386 = vmatpush1.bf16.msra.mxu0 %v3639
        %4387 = vmatprep.subr.bf16.mxu0 %v3648
        %4388 = vmatpush1.bf16.msra.mxu0 %v3647
        %4389 = vmatprep.subr.bf16.mxu0 %v3656
        %4390 = vmatpush1.bf16.msra.mxu0 %v3655
        %4391 = vmatprep.subr.bf16.mxu0 %v3664
        %4392 = vmatpush1.bf16.msra.mxu0 %v3663
        %4393 = vmatprep.subr.bf16.mxu0 %v3672
        %4394 = vmatpush1.bf16.msra.mxu0 %v3671
        %4395 = vmatprep.subr.bf16.mxu0 %v3680
        %4396 = vmatpush1.bf16.msra.mxu0 %v3679
        %4397 = vmatprep.subr.bf16.mxu0 %v3688
        %4398 = vmatpush1.bf16.msra.mxu0 %v3687
        %4399 = vmatprep.subr.bf16.mxu0 %v3696
        %4400 = vmatpush1.bf16.msra.mxu0 %v3695
        %4401 = vmatprep.subr.bf16.mxu0 %v3704
        %4402 = vmatpush1.bf16.msra.mxu0 %v3703
        %4403 = vmatprep.subr.bf16.mxu0 %v3712
        %4404 = vmatpush1.bf16.msra.mxu0 %v3711
        %4405 = vmatprep.subr.bf16.mxu0 %v3720
        %4406 = vmatpush1.bf16.msra.mxu0 %v3719
        %4407 = vmatprep.subr.bf16.mxu0 %v3728
        %4408 = vmatpush1.bf16.msra.mxu0 %v3727
        %4409 = vmatprep.subr.bf16.mxu0 %v3736
        %4410 = vmatpush1.bf16.msra.mxu0 %v3735
        %4411 = vmatprep.subr.bf16.mxu0 %v3744
        %4412 = vmatpush1.bf16.msra.mxu0 %v3743
        %4413 = vmatprep.subr.bf16.mxu0 %v3752
        %4414 = vmatpush1.bf16.msra.mxu0 %v3751
        %4415 = vmatprep.mubr.bf16.mxu0 %v2590
        %4416 = vmatmul.mubr.bf16.gmra.mrb[0].mxu0 %v2589
        %v4417 = vpop.f32.mrb[0].mxu0
        %v4418 = vadd.f32 0.0, %v4417
        %v4419 = vpop.f32.mrb[0].mxu0
        %v4420 = vadd.f32 0.0, %v4419
        %v4421 = vpop.f32.mrb[0].mxu0
        %v4422 = vpop.f32.mrb[0].mxu0
        %4423 = vdwg.mxu0
        %4424 = vmatprep.subr.bf16.mxu0 %v3760
        %4425 = vmatpush1.bf16.msra.mxu0 %v3759
        %4426 = vmatprep.subr.bf16.mxu0 %v3768
        %4427 = vmatpush1.bf16.msra.mxu0 %v3767
        %4428 = vmatprep.subr.bf16.mxu0 %v3776
        %4429 = vmatpush1.bf16.msra.mxu0 %v3775
        %4430 = vmatprep.subr.bf16.mxu0 %v3784
        %4431 = vmatpush1.bf16.msra.mxu0 %v3783
        %4432 = vmatprep.subr.bf16.mxu0 %v3792
        %4433 = vmatpush1.bf16.msra.mxu0 %v3791
        %4434 = vmatprep.subr.bf16.mxu0 %v3800
        %4435 = vmatpush1.bf16.msra.mxu0 %v3799
        %4436 = vmatprep.subr.bf16.mxu0 %v3808
        %4437 = vmatpush1.bf16.msra.mxu0 %v3807
        %4438 = vmatprep.subr.bf16.mxu0 %v3816
        %4439 = vmatpush1.bf16.msra.mxu0 %v3815
        %4440 = vmatprep.subr.bf16.mxu0 %v3824
        %4441 = vmatpush1.bf16.msra.mxu0 %v3823
        %4442 = vmatprep.subr.bf16.mxu0 %v3832
        %4443 = vmatpush1.bf16.msra.mxu0 %v3831
        %4444 = vmatprep.subr.bf16.mxu0 %v3840
        %4445 = vmatpush1.bf16.msra.mxu0 %v3839
        %4446 = vmatprep.subr.bf16.mxu0 %v3848
        %4447 = vmatpush1.bf16.msra.mxu0 %v3847
        %4448 = vmatprep.subr.bf16.mxu0 %v3856
        %4449 = vmatpush1.bf16.msra.mxu0 %v3855
        %4450 = vmatprep.subr.bf16.mxu0 %v3864
        %4451 = vmatpush1.bf16.msra.mxu0 %v3863
        %4452 = vmatprep.subr.bf16.mxu0 %v3872
        %4453 = vmatpush1.bf16.msra.mxu0 %v3871
        %4454 = vmatprep.subr.bf16.mxu0 %v3880
        %4455 = vmatpush1.bf16.msra.mxu0 %v3879
        %4456 = vmatprep.mubr.bf16.mxu0 %v2592
        %4457 = vmatmul.mubr.bf16.gmra.mrb[0].mxu0 %v2591
        %v4458 = vpop.f32.mrb[0].mxu0
        %v4459 = vadd.f32 %v4418, %v4458
        %v4460 = vpop.f32.mrb[0].mxu0
        %v4461 = vadd.f32 %v4420, %v4460
        %v4462 = vpop.f32.mrb[0].mxu0
        %v4463 = vpop.f32.mrb[0].mxu0
        %4464 = vdwg.mxu0
        %v4465 = vadd.f32 %v2593, %v4213
        %v4466 = vadd.f32 %v2594, %v4215
        %v4467 = vadd.f32 %v2595, %v4295
        %v4468 = vadd.f32 %v2596, %v4297
        %v4469 = vadd.f32 %v2597, %v4377
        %v4470 = vadd.f32 %v2598, %v4379
        %v4471 = vadd.f32 %v2599, %v4459
        %v4472 = vadd.f32 %v2600, %v4461
        %4473 = vst [vmem:[#allocation2] sm:$0xff] %v4465
        %4474 = vst [vmem:[#allocation2 + $0x8] sm:$0xff] %v4466
        %4475 = vst [vmem:[#allocation2 + $0x10] sm:$0xff] %v4467
        %4476 = vst [vmem:[#allocation2 + $0x18] sm:$0xff] %v4468
        %4477 = vst [vmem:[#allocation2 + $0x20] sm:$0xff] %v4469
        %4478 = vst [vmem:[#allocation2 + $0x28] sm:$0xff] %v4470
        %4479 = vst [vmem:[#allocation2 + $0x30] sm:$0xff] %v4471
        %4480 = vst [vmem:[#allocation2 + $0x38] sm:$0xff] %v4472
        %p4481 = scmp.eq.s32.totalorder %s24, 1
        // Predicated region
        $region97: #{tpu_custom_call.1} parent=55 // pred_check
          %p4482 = pneg %p4481
        $region98: #{tpu_custom_call.1} parent=55 // pred_check_branch
          %4484 = sbr.rel (%p4482) target = $region100
        $region99: #{tpu_custom_call.1} parent=55 // pred_region
          %v4485 = vld [vmem:[#allocation2] sm:$0xff]
          %v4486 = vld [vmem:[#allocation2 + $0x8] sm:$0xff]
          %v4487 = vld [vmem:[#allocation2 + $0x10] sm:$0xff]
          %v4488 = vld [vmem:[#allocation2 + $0x18] sm:$0xff]
          %v4489 = vld [vmem:[#allocation2 + $0x20] sm:$0xff]
          %v4490 = vld [vmem:[#allocation2 + $0x28] sm:$0xff]
          %v4491 = vld [vmem:[#allocation2 + $0x30] sm:$0xff]
          %v4492 = vld [vmem:[#allocation2 + $0x38] sm:$0xff]
          %v4493 = vld [vmem:[#allocation12] sm:$0xff]
          %v4495 = vlaneseq
          %v4496 = vshrl.u32 %v4495, 7
          %v4497 = vsub.s32 0, %v4496
          %v4498 = vrot.slane %v4493, %v4497
          %v4499 = vlaneseq
          %v4500 = vshrl.u32 %v4499, 7
          %v4501 = vsub.s32 1, %v4500
          %v4502 = vrot.slane %v4493, %v4501
          %v4503 = vlaneseq
          %v4504 = vshrl.u32 %v4503, 7
          %v4505 = vsub.s32 2, %v4504
          %v4506 = vrot.slane %v4493, %v4505
          %v4507 = vlaneseq
          %v4508 = vshrl.u32 %v4507, 7
          %v4509 = vsub.s32 3, %v4508
          %v4510 = vrot.slane %v4493, %v4509
          %v4511 = vlaneseq
          %v4512 = vshrl.u32 %v4511, 7
          %v4513 = vsub.s32 4, %v4512
          %v4514 = vrot.slane %v4493, %v4513
          %v4515 = vlaneseq
          %v4516 = vshrl.u32 %v4515, 7
          %v4517 = vsub.s32 5, %v4516
          %v4518 = vrot.slane %v4493, %v4517
          %v4519 = vlaneseq
          %v4520 = vshrl.u32 %v4519, 7
          %v4521 = vsub.s32 6, %v4520
          %v4522 = vrot.slane %v4493, %v4521
          %v4523 = vlaneseq
          %v4524 = vshrl.u32 %v4523, 7
          %v4525 = vsub.s32 7, %v4524
          %v4526 = vrot.slane %v4493, %v4525
          %v4535 = vadd.f32 %v4485, %v4498
          %v4536 = vadd.f32 %v4486, %v4502
          %v4537 = vadd.f32 %v4487, %v4506
          %v4538 = vadd.f32 %v4488, %v4510
          %v4539 = vadd.f32 %v4489, %v4514
          %v4540 = vadd.f32 %v4490, %v4518
          %v4541 = vadd.f32 %v4491, %v4522
          %v4542 = vadd.f32 %v4492, %v4526
          %v4543 = vmax.f32 %v4535, 0.0
          %v4544 = vmax.f32 %v4536, 0.0
          %v4545 = vmax.f32 %v4537, 0.0
          %v4546 = vmax.f32 %v4538, 0.0
          %v4547 = vmax.f32 %v4539, 0.0
          %v4548 = vmax.f32 %v4540, 0.0
          %v4549 = vmax.f32 %v4541, 0.0
          %v4550 = vmax.f32 %v4542, 0.0
          %v4551 = vpack.c.bf16 %v4543, %v4543
          %v4552 = vpack.c.bf16 %v4544, %v4544
          %v4553 = vpack.c.bf16 %v4545, %v4545
          %v4554 = vpack.c.bf16 %v4546, %v4546
          %v4555 = vpack.c.bf16 %v4547, %v4547
          %v4556 = vpack.c.bf16 %v4548, %v4548
          %v4557 = vpack.c.bf16 %v4549, %v4549
          %v4558 = vpack.c.bf16 %v4550, %v4550
          %v4559 = vld [vmem:[#allocation13] sm:$0xf]
          %v4560 = vld [vmem:[#allocation13 + $0x4] sm:$0xf]
          %v4561 = vld [vmem:[#allocation13 + $0x8] sm:$0xf]
          %v4562 = vld [vmem:[#allocation13 + $0xc] sm:$0xf]
          %v4563 = vld [vmem:[#allocation13 + $0x10] sm:$0xf]
          %v4564 = vld [vmem:[#allocation13 + $0x14] sm:$0xf]
          %v4565 = vld [vmem:[#allocation13 + $0x18] sm:$0xf]
          %v4566 = vld [vmem:[#allocation13 + $0x1c] sm:$0xf]
          %v4567 = vld [vmem:[#allocation13 + $0x20] sm:$0xf]
          %v4568 = vld [vmem:[#allocation13 + $0x24] sm:$0xf]
          %v4569 = vld [vmem:[#allocation13 + $0x28] sm:$0xf]
          %v4570 = vld [vmem:[#allocation13 + $0x2c] sm:$0xf]
          %v4571 = vld [vmem:[#allocation13 + $0x30] sm:$0xf]
          %v4572 = vld [vmem:[#allocation13 + $0x34] sm:$0xf]
          %v4573 = vld [vmem:[#allocation13 + $0x38] sm:$0xf]
          %v4574 = vld [vmem:[#allocation13 + $0x3c] sm:$0xf]
          %v4575 = vld [vmem:[#allocation13 + $0x40] sm:$0xf]
          %v4576 = vld [vmem:[#allocation13 + $0x44] sm:$0xf]
          %v4577 = vld [vmem:[#allocation13 + $0x48] sm:$0xf]
          %v4578 = vld [vmem:[#allocation13 + $0x4c] sm:$0xf]
          %v4579 = vld [vmem:[#allocation13 + $0x50] sm:$0xf]
          %v4580 = vld [vmem:[#allocation13 + $0x54] sm:$0xf]
          %v4581 = vld [vmem:[#allocation13 + $0x58] sm:$0xf]
          %v4582 = vld [vmem:[#allocation13 + $0x5c] sm:$0xf]
          %v4583 = vld [vmem:[#allocation13 + $0x60] sm:$0xf]
          %v4584 = vld [vmem:[#allocation13 + $0x64] sm:$0xf]
          %v4585 = vld [vmem:[#allocation13 + $0x68] sm:$0xf]
          %v4586 = vld [vmem:[#allocation13 + $0x6c] sm:$0xf]
          %v4587 = vld [vmem:[#allocation13 + $0x70] sm:$0xf]
          %v4588 = vld [vmem:[#allocation13 + $0x74] sm:$0xf]
          %v4589 = vld [vmem:[#allocation13 + $0x78] sm:$0xf]
          %v4590 = vld [vmem:[#allocation13 + $0x7c] sm:$0xf]
          %v4591 = vld [vmem:[#allocation13 + $0x80] sm:$0xf]
          %v4592 = vld [vmem:[#allocation13 + $0x84] sm:$0xf]
          %v4593 = vld [vmem:[#allocation13 + $0x88] sm:$0xf]
          %v4594 = vld [vmem:[#allocation13 + $0x8c] sm:$0xf]
          %v4595 = vld [vmem:[#allocation13 + $0x90] sm:$0xf]
          %v4596 = vld [vmem:[#allocation13 + $0x94] sm:$0xf]
          %v4597 = vld [vmem:[#allocation13 + $0x98] sm:$0xf]
          %v4598 = vld [vmem:[#allocation13 + $0x9c] sm:$0xf]
          %v4599 = vld [vmem:[#allocation13 + $0xa0] sm:$0xf]
          %v4600 = vld [vmem:[#allocation13 + $0xa4] sm:$0xf]
          %v4601 = vld [vmem:[#allocation13 + $0xa8] sm:$0xf]
          %v4602 = vld [vmem:[#allocation13 + $0xac] sm:$0xf]
          %v4603 = vld [vmem:[#allocation13 + $0xb0] sm:$0xf]
          %v4604 = vld [vmem:[#allocation13 + $0xb4] sm:$0xf]
          %v4605 = vld [vmem:[#allocation13 + $0xb8] sm:$0xf]
          %v4606 = vld [vmem:[#allocation13 + $0xbc] sm:$0xf]
          %v4607 = vld [vmem:[#allocation13 + $0xc0] sm:$0xf]
          %v4608 = vld [vmem:[#allocation13 + $0xc4] sm:$0xf]
          %v4609 = vld [vmem:[#allocation13 + $0xc8] sm:$0xf]
          %v4610 = vld [vmem:[#allocation13 + $0xcc] sm:$0xf]
          %v4611 = vld [vmem:[#allocation13 + $0xd0] sm:$0xf]
          %v4612 = vld [vmem:[#allocation13 + $0xd4] sm:$0xf]
          %v4613 = vld [vmem:[#allocation13 + $0xd8] sm:$0xf]
          %v4614 = vld [vmem:[#allocation13 + $0xdc] sm:$0xf]
          %v4615 = vld [vmem:[#allocation13 + $0xe0] sm:$0xf]
          %v4616 = vld [vmem:[#allocation13 + $0xe4] sm:$0xf]
          %v4617 = vld [vmem:[#allocation13 + $0xe8] sm:$0xf]
          %v4618 = vld [vmem:[#allocation13 + $0xec] sm:$0xf]
          %v4619 = vld [vmem:[#allocation13 + $0xf0] sm:$0xf]
          %v4620 = vld [vmem:[#allocation13 + $0xf4] sm:$0xf]
          %v4621 = vld [vmem:[#allocation13 + $0xf8] sm:$0xf]
          %v4622 = vld [vmem:[#allocation13 + $0xfc] sm:$0xf]
          %v4623 = vld [vmem:[#allocation13 + $0x100] sm:$0xf]
          %v4624 = vld [vmem:[#allocation13 + $0x104] sm:$0xf]
          %v4625 = vld [vmem:[#allocation13 + $0x108] sm:$0xf]
          %v4626 = vld [vmem:[#allocation13 + $0x10c] sm:$0xf]
          %v4627 = vld [vmem:[#allocation13 + $0x110] sm:$0xf]
          %v4628 = vld [vmem:[#allocation13 + $0x114] sm:$0xf]
          %v4629 = vld [vmem:[#allocation13 + $0x118] sm:$0xf]
          %v4630 = vld [vmem:[#allocation13 + $0x11c] sm:$0xf]
          %v4631 = vld [vmem:[#allocation13 + $0x120] sm:$0xf]
          %v4632 = vld [vmem:[#allocation13 + $0x124] sm:$0xf]
          %v4633 = vld [vmem:[#allocation13 + $0x128] sm:$0xf]
          %v4634 = vld [vmem:[#allocation13 + $0x12c] sm:$0xf]
          %v4635 = vld [vmem:[#allocation13 + $0x130] sm:$0xf]
          %v4636 = vld [vmem:[#allocation13 + $0x134] sm:$0xf]
          %v4637 = vld [vmem:[#allocation13 + $0x138] sm:$0xf]
          %v4638 = vld [vmem:[#allocation13 + $0x13c] sm:$0xf]
          %v4639 = vld [vmem:[#allocation13 + $0x140] sm:$0xf]
          %v4640 = vld [vmem:[#allocation13 + $0x144] sm:$0xf]
          %v4641 = vld [vmem:[#allocation13 + $0x148] sm:$0xf]
          %v4642 = vld [vmem:[#allocation13 + $0x14c] sm:$0xf]
          %v4643 = vld [vmem:[#allocation13 + $0x150] sm:$0xf]
          %v4644 = vld [vmem:[#allocation13 + $0x154] sm:$0xf]
          %v4645 = vld [vmem:[#allocation13 + $0x158] sm:$0xf]
          %v4646 = vld [vmem:[#allocation13 + $0x15c] sm:$0xf]
          %v4647 = vld [vmem:[#allocation13 + $0x160] sm:$0xf]
          %v4648 = vld [vmem:[#allocation13 + $0x164] sm:$0xf]
          %v4649 = vld [vmem:[#allocation13 + $0x168] sm:$0xf]
          %v4650 = vld [vmem:[#allocation13 + $0x16c] sm:$0xf]
          %v4651 = vld [vmem:[#allocation13 + $0x170] sm:$0xf]
          %v4652 = vld [vmem:[#allocation13 + $0x174] sm:$0xf]
          %v4653 = vld [vmem:[#allocation13 + $0x178] sm:$0xf]
          %v4654 = vld [vmem:[#allocation13 + $0x17c] sm:$0xf]
          %v4655 = vld [vmem:[#allocation13 + $0x180] sm:$0xf]
          %v4656 = vld [vmem:[#allocation13 + $0x184] sm:$0xf]
          %v4657 = vld [vmem:[#allocation13 + $0x188] sm:$0xf]
          %v4658 = vld [vmem:[#allocation13 + $0x18c] sm:$0xf]
          %v4659 = vld [vmem:[#allocation13 + $0x190] sm:$0xf]
          %v4660 = vld [vmem:[#allocation13 + $0x194] sm:$0xf]
          %v4661 = vld [vmem:[#allocation13 + $0x198] sm:$0xf]
          %v4662 = vld [vmem:[#allocation13 + $0x19c] sm:$0xf]
          %v4663 = vld [vmem:[#allocation13 + $0x1a0] sm:$0xf]
          %v4664 = vld [vmem:[#allocation13 + $0x1a4] sm:$0xf]
          %v4665 = vld [vmem:[#allocation13 + $0x1a8] sm:$0xf]
          %v4666 = vld [vmem:[#allocation13 + $0x1ac] sm:$0xf]
          %v4667 = vld [vmem:[#allocation13 + $0x1b0] sm:$0xf]
          %v4668 = vld [vmem:[#allocation13 + $0x1b4] sm:$0xf]
          %v4669 = vld [vmem:[#allocation13 + $0x1b8] sm:$0xf]
          %v4670 = vld [vmem:[#allocation13 + $0x1bc] sm:$0xf]
          %v4671 = vld [vmem:[#allocation13 + $0x1c0] sm:$0xf]
          %v4672 = vld [vmem:[#allocation13 + $0x1c4] sm:$0xf]
          %v4673 = vld [vmem:[#allocation13 + $0x1c8] sm:$0xf]
          %v4674 = vld [vmem:[#allocation13 + $0x1cc] sm:$0xf]
          %v4675 = vld [vmem:[#allocation13 + $0x1d0] sm:$0xf]
          %v4676 = vld [vmem:[#allocation13 + $0x1d4] sm:$0xf]
          %v4677 = vld [vmem:[#allocation13 + $0x1d8] sm:$0xf]
          %v4678 = vld [vmem:[#allocation13 + $0x1dc] sm:$0xf]
          %v4679 = vld [vmem:[#allocation13 + $0x1e0] sm:$0xf]
          %v4680 = vld [vmem:[#allocation13 + $0x1e4] sm:$0xf]
          %v4681 = vld [vmem:[#allocation13 + $0x1e8] sm:$0xf]
          %v4682 = vld [vmem:[#allocation13 + $0x1ec] sm:$0xf]
          %v4683 = vld [vmem:[#allocation13 + $0x1f0] sm:$0xf]
          %v4684 = vld [vmem:[#allocation13 + $0x1f4] sm:$0xf]
          %v4685 = vld [vmem:[#allocation13 + $0x1f8] sm:$0xf]
          %v4686 = vld [vmem:[#allocation13 + $0x1fc] sm:$0xf]
          %v4687 = vld [vmem:[#allocation15] sm:$0x1]
          %v4689 = vlaneseq
          %v4690 = vshrl.u32 %v4689, 7
          %v4691 = vsub.s32 0, %v4690
          %v4692 = vrot.slane %v4687, %v4691
          %v4822 = vunpack.c.l.b16 %v4559
          %v4823 = vunpack.c.l.b16 %v4560
          %v4824 = vunpack.c.l.b16 %v4561
          %v4825 = vunpack.c.l.b16 %v4562
          %v4826 = vunpack.c.l.b16 %v4563
          %v4827 = vunpack.c.l.b16 %v4564
          %v4828 = vunpack.c.l.b16 %v4565
          %v4829 = vunpack.c.l.b16 %v4566
          %v4830 = vunpack.c.l.b16 %v4567
          %v4831 = vunpack.c.l.b16 %v4568
          %v4832 = vunpack.c.l.b16 %v4569
          %v4833 = vunpack.c.l.b16 %v4570
          %v4834 = vunpack.c.l.b16 %v4571
          %v4835 = vunpack.c.l.b16 %v4572
          %v4836 = vunpack.c.l.b16 %v4573
          %v4837 = vunpack.c.l.b16 %v4574
          %v4838 = vunpack.c.l.b16 %v4575
          %v4839 = vunpack.c.l.b16 %v4576
          %v4840 = vunpack.c.l.b16 %v4577
          %v4841 = vunpack.c.l.b16 %v4578
          %v4842 = vunpack.c.l.b16 %v4579
          %v4843 = vunpack.c.l.b16 %v4580
          %v4844 = vunpack.c.l.b16 %v4581
          %v4845 = vunpack.c.l.b16 %v4582
          %v4846 = vunpack.c.l.b16 %v4583
          %v4847 = vunpack.c.l.b16 %v4584
          %v4848 = vunpack.c.l.b16 %v4585
          %v4849 = vunpack.c.l.b16 %v4586
          %v4850 = vunpack.c.l.b16 %v4587
          %v4851 = vunpack.c.l.b16 %v4588
          %v4852 = vunpack.c.l.b16 %v4589
          %v4853 = vunpack.c.l.b16 %v4590
          %v4854 = vunpack.c.l.b16 %v4591
          %v4855 = vunpack.c.l.b16 %v4592
          %v4856 = vunpack.c.l.b16 %v4593
          %v4857 = vunpack.c.l.b16 %v4594
          %v4858 = vunpack.c.l.b16 %v4595
          %v4859 = vunpack.c.l.b16 %v4596
          %v4860 = vunpack.c.l.b16 %v4597
          %v4861 = vunpack.c.l.b16 %v4598
          %v4862 = vunpack.c.l.b16 %v4599
          %v4863 = vunpack.c.l.b16 %v4600
          %v4864 = vunpack.c.l.b16 %v4601
          %v4865 = vunpack.c.l.b16 %v4602
          %v4866 = vunpack.c.l.b16 %v4603
          %v4867 = vunpack.c.l.b16 %v4604
          %v4868 = vunpack.c.l.b16 %v4605
          %v4869 = vunpack.c.l.b16 %v4606
          %v4870 = vunpack.c.l.b16 %v4607
          %v4871 = vunpack.c.l.b16 %v4608
          %v4872 = vunpack.c.l.b16 %v4609
          %v4873 = vunpack.c.l.b16 %v4610
          %v4874 = vunpack.c.l.b16 %v4611
          %v4875 = vunpack.c.l.b16 %v4612
          %v4876 = vunpack.c.l.b16 %v4613
          %v4877 = vunpack.c.l.b16 %v4614
          %v4878 = vunpack.c.l.b16 %v4615
          %v4879 = vunpack.c.l.b16 %v4616
          %v4880 = vunpack.c.l.b16 %v4617
          %v4881 = vunpack.c.l.b16 %v4618
          %v4882 = vunpack.c.l.b16 %v4619
          %v4883 = vunpack.c.l.b16 %v4620
          %v4884 = vunpack.c.l.b16 %v4621
          %v4885 = vunpack.c.l.b16 %v4622
          %v4886 = vunpack.c.l.b16 %v4623
          %v4887 = vunpack.c.l.b16 %v4624
          %v4888 = vunpack.c.l.b16 %v4625
          %v4889 = vunpack.c.l.b16 %v4626
          %v4890 = vunpack.c.l.b16 %v4627
          %v4891 = vunpack.c.l.b16 %v4628
          %v4892 = vunpack.c.l.b16 %v4629
          %v4893 = vunpack.c.l.b16 %v4630
          %v4894 = vunpack.c.l.b16 %v4631
          %v4895 = vunpack.c.l.b16 %v4632
          %v4896 = vunpack.c.l.b16 %v4633
          %v4897 = vunpack.c.l.b16 %v4634
          %v4898 = vunpack.c.l.b16 %v4635
          %v4899 = vunpack.c.l.b16 %v4636
          %v4900 = vunpack.c.l.b16 %v4637
          %v4901 = vunpack.c.l.b16 %v4638
          %v4902 = vunpack.c.l.b16 %v4639
          %v4903 = vunpack.c.l.b16 %v4640
          %v4904 = vunpack.c.l.b16 %v4641
          %v4905 = vunpack.c.l.b16 %v4642
          %v4906 = vunpack.c.l.b16 %v4643
          %v4907 = vunpack.c.l.b16 %v4644
          %v4908 = vunpack.c.l.b16 %v4645
          %v4909 = vunpack.c.l.b16 %v4646
          %v4910 = vunpack.c.l.b16 %v4647
          %v4911 = vunpack.c.l.b16 %v4648
          %v4912 = vunpack.c.l.b16 %v4649
          %v4913 = vunpack.c.l.b16 %v4650
          %v4914 = vunpack.c.l.b16 %v4651
          %v4915 = vunpack.c.l.b16 %v4652
          %v4916 = vunpack.c.l.b16 %v4653
          %v4917 = vunpack.c.l.b16 %v4654
          %v4918 = vunpack.c.l.b16 %v4655
          %v4919 = vunpack.c.l.b16 %v4656
          %v4920 = vunpack.c.l.b16 %v4657
          %v4921 = vunpack.c.l.b16 %v4658
          %v4922 = vunpack.c.l.b16 %v4659
          %v4923 = vunpack.c.l.b16 %v4660
          %v4924 = vunpack.c.l.b16 %v4661
          %v4925 = vunpack.c.l.b16 %v4662
          %v4926 = vunpack.c.l.b16 %v4663
          %v4927 = vunpack.c.l.b16 %v4664
          %v4928 = vunpack.c.l.b16 %v4665
          %v4929 = vunpack.c.l.b16 %v4666
          %v4930 = vunpack.c.l.b16 %v4667
          %v4931 = vunpack.c.l.b16 %v4668
          %v4932 = vunpack.c.l.b16 %v4669
          %v4933 = vunpack.c.l.b16 %v4670
          %v4934 = vunpack.c.l.b16 %v4671
          %v4935 = vunpack.c.l.b16 %v4672
          %v4936 = vunpack.c.l.b16 %v4673
          %v4937 = vunpack.c.l.b16 %v4674
          %v4938 = vunpack.c.l.b16 %v4675
          %v4939 = vunpack.c.l.b16 %v4676
          %v4940 = vunpack.c.l.b16 %v4677
          %v4941 = vunpack.c.l.b16 %v4678
          %v4942 = vunpack.c.l.b16 %v4679
          %v4943 = vunpack.c.l.b16 %v4680
          %v4944 = vunpack.c.l.b16 %v4681
          %v4945 = vunpack.c.l.b16 %v4682
          %v4946 = vunpack.c.l.b16 %v4683
          %v4947 = vunpack.c.l.b16 %v4684
          %v4948 = vunpack.c.l.b16 %v4685
          %v4949 = vunpack.c.l.b16 %v4686
          %v4950 = vpack.c.b16 %v4823, %v4822
          %v4951 = vpack.c.b16 %v4825, %v4824
          %v4952 = vpack.c.b16 %v4827, %v4826
          %v4953 = vpack.c.b16 %v4829, %v4828
          %v4954 = vpack.c.b16 %v4831, %v4830
          %v4955 = vpack.c.b16 %v4833, %v4832
          %v4956 = vpack.c.b16 %v4835, %v4834
          %v4957 = vpack.c.b16 %v4837, %v4836
          %v4958 = vpack.c.b16 %v4839, %v4838
          %v4959 = vpack.c.b16 %v4841, %v4840
          %v4960 = vpack.c.b16 %v4843, %v4842
          %v4961 = vpack.c.b16 %v4845, %v4844
          %v4962 = vpack.c.b16 %v4847, %v4846
          %v4963 = vpack.c.b16 %v4849, %v4848
          %v4964 = vpack.c.b16 %v4851, %v4850
          %v4965 = vpack.c.b16 %v4853, %v4852
          %v4966 = vpack.c.b16 %v4855, %v4854
          %v4967 = vpack.c.b16 %v4857, %v4856
          %v4968 = vpack.c.b16 %v4859, %v4858
          %v4969 = vpack.c.b16 %v4861, %v4860
          %v4970 = vpack.c.b16 %v4863, %v4862
          %v4971 = vpack.c.b16 %v4865, %v4864
          %v4972 = vpack.c.b16 %v4867, %v4866
          %v4973 = vpack.c.b16 %v4869, %v4868
          %v4974 = vpack.c.b16 %v4871, %v4870
          %v4975 = vpack.c.b16 %v4873, %v4872
          %v4976 = vpack.c.b16 %v4875, %v4874
          %v4977 = vpack.c.b16 %v4877, %v4876
          %v4978 = vpack.c.b16 %v4879, %v4878
          %v4979 = vpack.c.b16 %v4881, %v4880
          %v4980 = vpack.c.b16 %v4883, %v4882
          %v4981 = vpack.c.b16 %v4885, %v4884
          %v4982 = vpack.c.b16 %v4887, %v4886
          %v4983 = vpack.c.b16 %v4889, %v4888
          %v4984 = vpack.c.b16 %v4891, %v4890
          %v4985 = vpack.c.b16 %v4893, %v4892
          %v4986 = vpack.c.b16 %v4895, %v4894
          %v4987 = vpack.c.b16 %v4897, %v4896
          %v4988 = vpack.c.b16 %v4899, %v4898
          %v4989 = vpack.c.b16 %v4901, %v4900
          %v4990 = vpack.c.b16 %v4903, %v4902
          %v4991 = vpack.c.b16 %v4905, %v4904
          %v4992 = vpack.c.b16 %v4907, %v4906
          %v4993 = vpack.c.b16 %v4909, %v4908
          %v4994 = vpack.c.b16 %v4911, %v4910
          %v4995 = vpack.c.b16 %v4913, %v4912
          %v4996 = vpack.c.b16 %v4915, %v4914
          %v4997 = vpack.c.b16 %v4917, %v4916
          %v4998 = vpack.c.b16 %v4919, %v4918
          %v4999 = vpack.c.b16 %v4921, %v4920
          %v5000 = vpack.c.b16 %v4923, %v4922
          %v5001 = vpack.c.b16 %v4925, %v4924
          %v5002 = vpack.c.b16 %v4927, %v4926
          %v5003 = vpack.c.b16 %v4929, %v4928
          %v5004 = vpack.c.b16 %v4931, %v4930
          %v5005 = vpack.c.b16 %v4933, %v4932
          %v5006 = vpack.c.b16 %v4935, %v4934
          %v5007 = vpack.c.b16 %v4937, %v4936
          %v5008 = vpack.c.b16 %v4939, %v4938
          %v5009 = vpack.c.b16 %v4941, %v4940
          %v5010 = vpack.c.b16 %v4943, %v4942
          %v5011 = vpack.c.b16 %v4945, %v4944
          %v5012 = vpack.c.b16 %v4947, %v4946
          %v5013 = vpack.c.b16 %v4949, %v4948
          %5078 = vmatprep.subr.bf16.mxu0 0
          %5079 = vmatpush1.bf16.msra.mxu0 %v4950
          %5080 = vmatprep.subr.bf16.mxu0 0
          %5081 = vmatpush1.bf16.msra.mxu0 %v4951
          %5082 = vmatprep.subr.bf16.mxu0 0
          %5083 = vmatpush1.bf16.msra.mxu0 %v4952
          %5084 = vmatprep.subr.bf16.mxu0 0
          %5085 = vmatpush1.bf16.msra.mxu0 %v4953
          %5086 = vmatprep.subr.bf16.mxu0 0
          %5087 = vmatpush1.bf16.msra.mxu0 %v4954
          %5088 = vmatprep.subr.bf16.mxu0 0
          %5089 = vmatpush1.bf16.msra.mxu0 %v4955
          %5090 = vmatprep.subr.bf16.mxu0 0
          %5091 = vmatpush1.bf16.msra.mxu0 %v4956
          %5092 = vmatprep.subr.bf16.mxu0 0
          %5093 = vmatpush1.bf16.msra.mxu0 %v4957
          %5094 = vmatprep.subr.bf16.mxu0 0
          %5095 = vmatpush1.bf16.msra.mxu0 %v4958
          %5096 = vmatprep.subr.bf16.mxu0 0
          %5097 = vmatpush1.bf16.msra.mxu0 %v4959
          %5098 = vmatprep.subr.bf16.mxu0 0
          %5099 = vmatpush1.bf16.msra.mxu0 %v4960
          %5100 = vmatprep.subr.bf16.mxu0 0
          %5101 = vmatpush1.bf16.msra.mxu0 %v4961
          %5102 = vmatprep.subr.bf16.mxu0 0
          %5103 = vmatpush1.bf16.msra.mxu0 %v4962
          %5104 = vmatprep.subr.bf16.mxu0 0
          %5105 = vmatpush1.bf16.msra.mxu0 %v4963
          %5106 = vmatprep.subr.bf16.mxu0 0
          %5107 = vmatpush1.bf16.msra.mxu0 %v4964
          %5108 = vmatprep.subr.bf16.mxu0 0
          %5109 = vmatpush1.bf16.msra.mxu0 %v4965
          %5110 = vmatprep.mubr.bf16.mxu0 %v4552
          %5111 = vmatmul.mubr.bf16.gmra.mrb[0].mxu0 %v4551
          %v5112 = vpop.f32.mrb[0].mxu0
          %v5113 = vadd.f32 %v4692, %v5112
          %v5114 = vpop.f32.mrb[0].mxu0
          %v5115 = vpop.f32.mrb[0].mxu0
          %v5116 = vpop.f32.mrb[0].mxu0
          %5117 = vdwg.mxu0
          %5118 = vmatprep.subr.bf16.mxu0 0
          %5119 = vmatpush1.bf16.msra.mxu0 %v4966
          %5120 = vmatprep.subr.bf16.mxu0 0
          %5121 = vmatpush1.bf16.msra.mxu0 %v4967
          %5122 = vmatprep.subr.bf16.mxu0 0
          %5123 = vmatpush1.bf16.msra.mxu0 %v4968
          %5124 = vmatprep.subr.bf16.mxu0 0
          %5125 = vmatpush1.bf16.msra.mxu0 %v4969
          %5126 = vmatprep.subr.bf16.mxu0 0
          %5127 = vmatpush1.bf16.msra.mxu0 %v4970
          %5128 = vmatprep.subr.bf16.mxu0 0
          %5129 = vmatpush1.bf16.msra.mxu0 %v4971
          %5130 = vmatprep.subr.bf16.mxu0 0
          %5131 = vmatpush1.bf16.msra.mxu0 %v4972
          %5132 = vmatprep.subr.bf16.mxu0 0
          %5133 = vmatpush1.bf16.msra.mxu0 %v4973
          %5134 = vmatprep.subr.bf16.mxu0 0
          %5135 = vmatpush1.bf16.msra.mxu0 %v4974
          %5136 = vmatprep.subr.bf16.mxu0 0
          %5137 = vmatpush1.bf16.msra.mxu0 %v4975
          %5138 = vmatprep.subr.bf16.mxu0 0
          %5139 = vmatpush1.bf16.msra.mxu0 %v4976
          %5140 = vmatprep.subr.bf16.mxu0 0
          %5141 = vmatpush1.bf16.msra.mxu0 %v4977
          %5142 = vmatprep.subr.bf16.mxu0 0
          %5143 = vmatpush1.bf16.msra.mxu0 %v4978
          %5144 = vmatprep.subr.bf16.mxu0 0
          %5145 = vmatpush1.bf16.msra.mxu0 %v4979
          %5146 = vmatprep.subr.bf16.mxu0 0
          %5147 = vmatpush1.bf16.msra.mxu0 %v4980
          %5148 = vmatprep.subr.bf16.mxu0 0
          %5149 = vmatpush1.bf16.msra.mxu0 %v4981
          %5150 = vmatprep.mubr.bf16.mxu0 %v4554
          %5151 = vmatmul.mubr.bf16.gmra.mrb[0].mxu0 %v4553
          %v5152 = vpop.f32.mrb[0].mxu0
          %v5153 = vadd.f32 %v5113, %v5152
          %v5154 = vpop.f32.mrb[0].mxu0
          %v5155 = vpop.f32.mrb[0].mxu0
          %v5156 = vpop.f32.mrb[0].mxu0
          %5157 = vdwg.mxu0
          %5158 = vmatprep.subr.bf16.mxu0 0
          %5159 = vmatpush1.bf16.msra.mxu0 %v4982
          %5160 = vmatprep.subr.bf16.mxu0 0
          %5161 = vmatpush1.bf16.msra.mxu0 %v4983
          %5162 = vmatprep.subr.bf16.mxu0 0
          %5163 = vmatpush1.bf16.msra.mxu0 %v4984
          %5164 = vmatprep.subr.bf16.mxu0 0
          %5165 = vmatpush1.bf16.msra.mxu0 %v4985
          %5166 = vmatprep.subr.bf16.mxu0 0
          %5167 = vmatpush1.bf16.msra.mxu0 %v4986
          %5168 = vmatprep.subr.bf16.mxu0 0
          %5169 = vmatpush1.bf16.msra.mxu0 %v4987
          %5170 = vmatprep.subr.bf16.mxu0 0
          %5171 = vmatpush1.bf16.msra.mxu0 %v4988
          %5172 = vmatprep.subr.bf16.mxu0 0
          %5173 = vmatpush1.bf16.msra.mxu0 %v4989
          %5174 = vmatprep.subr.bf16.mxu0 0
          %5175 = vmatpush1.bf16.msra.mxu0 %v4990
          %5176 = vmatprep.subr.bf16.mxu0 0
          %5177 = vmatpush1.bf16.msra.mxu0 %v4991
          %5178 = vmatprep.subr.bf16.mxu0 0
          %5179 = vmatpush1.bf16.msra.mxu0 %v4992
          %5180 = vmatprep.subr.bf16.mxu0 0
          %5181 = vmatpush1.bf16.msra.mxu0 %v4993
          %5182 = vmatprep.subr.bf16.mxu0 0
          %5183 = vmatpush1.bf16.msra.mxu0 %v4994
          %5184 = vmatprep.subr.bf16.mxu0 0
          %5185 = vmatpush1.bf16.msra.mxu0 %v4995
          %5186 = vmatprep.subr.bf16.mxu0 0
          %5187 = vmatpush1.bf16.msra.mxu0 %v4996
          %5188 = vmatprep.subr.bf16.mxu0 0
          %5189 = vmatpush1.bf16.msra.mxu0 %v4997
          %5190 = vmatprep.mubr.bf16.mxu0 %v4556
          %5191 = vmatmul.mubr.bf16.gmra.mrb[0].mxu0 %v4555
          %v5192 = vpop.f32.mrb[0].mxu0
          %v5193 = vadd.f32 %v5153, %v5192
          %v5194 = vpop.f32.mrb[0].mxu0
          %v5195 = vpop.f32.mrb[0].mxu0
          %v5196 = vpop.f32.mrb[0].mxu0
          %5197 = vdwg.mxu0
          %5198 = vmatprep.subr.bf16.mxu0 0
          %5199 = vmatpush1.bf16.msra.mxu0 %v4998
          %5200 = vmatprep.subr.bf16.mxu0 0
          %5201 = vmatpush1.bf16.msra.mxu0 %v4999
          %5202 = vmatprep.subr.bf16.mxu0 0
          %5203 = vmatpush1.bf16.msra.mxu0 %v5000
          %5204 = vmatprep.subr.bf16.mxu0 0
          %5205 = vmatpush1.bf16.msra.mxu0 %v5001
          %5206 = vmatprep.subr.bf16.mxu0 0
          %5207 = vmatpush1.bf16.msra.mxu0 %v5002
          %5208 = vmatprep.subr.bf16.mxu0 0
          %5209 = vmatpush1.bf16.msra.mxu0 %v5003
          %5210 = vmatprep.subr.bf16.mxu0 0
          %5211 = vmatpush1.bf16.msra.mxu0 %v5004
          %5212 = vmatprep.subr.bf16.mxu0 0
          %5213 = vmatpush1.bf16.msra.mxu0 %v5005
          %5214 = vmatprep.subr.bf16.mxu0 0
          %5215 = vmatpush1.bf16.msra.mxu0 %v5006
          %5216 = vmatprep.subr.bf16.mxu0 0
          %5217 = vmatpush1.bf16.msra.mxu0 %v5007
          %5218 = vmatprep.subr.bf16.mxu0 0
          %5219 = vmatpush1.bf16.msra.mxu0 %v5008
          %5220 = vmatprep.subr.bf16.mxu0 0
          %5221 = vmatpush1.bf16.msra.mxu0 %v5009
          %5222 = vmatprep.subr.bf16.mxu0 0
          %5223 = vmatpush1.bf16.msra.mxu0 %v5010
          %5224 = vmatprep.subr.bf16.mxu0 0
          %5225 = vmatpush1.bf16.msra.mxu0 %v5011
          %5226 = vmatprep.subr.bf16.mxu0 0
          %5227 = vmatpush1.bf16.msra.mxu0 %v5012
          %5228 = vmatprep.subr.bf16.mxu0 0
          %5229 = vmatpush1.bf16.msra.mxu0 %v5013
          %5230 = vmatprep.mubr.bf16.mxu0 %v4558
          %5231 = vmatmul.mubr.bf16.gmra.mrb[0].mxu0 %v4557
          %v5232 = vpop.f32.mrb[0].mxu0
          %v5233 = vadd.f32 %v5193, %v5232
          %v5234 = vpop.f32.mrb[0].mxu0
          %v5235 = vpop.f32.mrb[0].mxu0
          %v5236 = vpop.f32.mrb[0].mxu0
          %5237 = vdwg.mxu0
          %v5238 = vlaneseq
          %v5239 = vand.u32 %v5238, 127
          %vm5240 = vcmp.lt.s32.totalorder %v5239, 19
          %v5241 = vmax.f32 %v5233, 0.0
          %v5242 = vsel %vm5240, %v5241, -inf
          %5243 = vmax.xlane.f32.xlu0 %v5242
          %v5244 = vpop.xlane.xlu0 %5243
          %v5245 = vsub.f32 %v5242, %v5244
          %v5246 = vmul.f32 %v5245, 1.442695
          %v5247 = vpow.pop %v5246
          %5248 = vadd.xlane.f32.xlu0 %v5247
          %v5249 = vpop.xlane.xlu0 %5248
          %v5250 = vlog2.pop %v5249
          %v5251 = vmul.f32 %v5250, 0.6931472
          %v5252 = vsub.f32 %v5241, %v5244
          %v5253 = vsub.f32 %v5252, %v5251
          %v5254 = vsel %vm5240, %v5253, %v5233
          %5255 = vst [vmem:[#allocation16] sm:$0xff] %v5254
        $region100: #{tpu_custom_call.1} parent=55 // pred_fallthru
          _
        // Predicated region
        $region101: #{tpu_custom_call.1} parent=55 // pred_check
          %p5256 = pneg %p246
        $region102: #{tpu_custom_call.1} parent=55 // pred_check_branch
          %5258 = sbr.rel (%p5256) target = $region104
        $region103: #{tpu_custom_call.1} parent=55 // pred_region
          %s5260 = ssub.s32 128, 128
          %5261 = vsyncadd [#allocation5], %s5260
          %s5263 = sshll.u32 [#allocation16], 4
          %s5264 = int_to_ptr.vmem [resolvable:$true] %s5263
          %5266 = dma.vmem_to_hbm [thread:$0]  %s5264, 128, %s9, [#allocation5]
        $region104: #{tpu_custom_call.1} parent=55 // pred_fallthru
          _
        // Predicated region
        $region105: #{tpu_custom_call.1} parent=55 // pred_check
          %p5267 = pneg %p246
        $region106: #{tpu_custom_call.1} parent=55 // pred_check_branch
          %5269 = sbr.rel (%p5267) target = $region108
        $region107: #{tpu_custom_call.1} parent=55 // pred_region
          %5270 = dma.done [#allocation5], 128
        $region108: #{tpu_custom_call.1} parent=55 // pred_fallthru
          _
      $region56: #{tpu_custom_call.1} parent=5 // pred_fallthru
        _
      %p5271 = scmp.le.s32.totalorder 2, %s19
      // Predicated region
      $region109: #{tpu_custom_call.1} parent=5 // pred_check
        %p5272 = pneg %p5271
      $region110: #{tpu_custom_call.1} parent=5 // pred_check_branch
        %5274 = sbr.rel (%p5272) target = $region112
      $region111: #{tpu_custom_call.1} parent=5 // pred_region
        %s5275 = ssub.s32 %s19, 2
      $region112: #{tpu_custom_call.1} parent=5 // pred_fallthru
        _
    $region6: #{tpu_custom_call.1} parent=1 // loop_footer
      %s23 = sadd.s32 1, %s19
    $region7: #{tpu_custom_call.1} parent=1 // loop_footer_branch
      %18 = sbr.rel target = $region3
    $region8: #{tpu_custom_call.1} parent=1 // loop_exit
      _
    %5276 = vsyncpa [#allocation4], 1
    %s5277 = scalar_lea.sflag [#allocation4], 1
    %5278 = vsyncpa %s5277, 1
    %5279 = vsyncpa [#allocation7], 1
    %5280 = vsyncpa [#allocation14], 1
    %5281 = vsyncpa [#allocation5], 1
    %s5282 = scalar_lea.sflag [#allocation5], 1
    %5283 = vsyncpa %s5282, 1

</llo_original>
